<compile_context>
chip_gen: v7x
topology: tpu7x:2x2x1
jax: 0.10.0
libtpu: 0.0.40
codegen_flags: <defaults>
</compile_context>

<pallas_src>
import functools

import jax
import jax.numpy as jnp
from jax import lax
from jax.experimental import pallas as pl
from jax.experimental.pallas import tpu as pltpu

EPS = 1e-5


def _conv_in_relu_kernel(xp_ref, w_ref, o_ref, *, Ho, Wo, K, relu):
    # xp_ref : (1, Ho+K-1, Wo+K-1, Cin)  bf16   reflect-padded input sample
    # w_ref  : (K*K, Cin, Cout)          bf16   conv weights, tap-major
    # o_ref  : (1, Ho*Wo, Cout)          f32    normalized (+ReLU) output
    Cin = xp_ref.shape[-1]
    HW = Ho * Wo

    # Conv as K*K shifted sub-matmuls (static unroll), MXU with f32 accumulate.
    acc = None
    for kh in range(K):
        for kw in range(K):
            xs = xp_ref[0, kh:kh + Ho, kw:kw + Wo, :]        # (Ho, Wo, Cin) bf16
            xs = xs.reshape(HW, Cin)
            t = jnp.dot(xs, w_ref[kh * K + kw],              # (Cin, Cout)
                        preferred_element_type=jnp.float32)
            acc = t if acc is None else acc + t              # (HW, Cout) f32

    # Bias intentionally omitted: InstanceNorm(affine=False) cancels it exactly.
    mu = jnp.mean(acc, axis=0, keepdims=True)                # (1, Cout)
    ms = jnp.mean(acc * acc, axis=0, keepdims=True)
    var = jnp.maximum(ms - mu * mu, 0.0)                     # biased variance
    yn = (acc - mu) * lax.rsqrt(var + EPS)
    if relu:
        yn = jnp.maximum(yn, 0.0)
    o_ref[0] = yn


def conv_block_forward(x_nchw, weight_oikk, bias_o=None, *, ksize=3, pad=1,
                       add_activation=True):
    """x_nchw: (N, Cin, H, W) float32. Returns (N, Cout, Ho, Wo) float32.

    bias_o is accepted for API parity with nn.Conv2d but unused: the following
    InstanceNorm2d(affine=False) cancels a per-channel bias exactly.
    """
    del bias_o
    N, Cin, H, W = x_nchw.shape
    Cout = weight_oikk.shape[0]
    K = ksize
    Ho = H + 2 * pad - K + 1
    Wo = W + 2 * pad - K + 1
    HW = Ho * Wo
    Hp, Wp = H + 2 * pad, W + 2 * pad

    # --- glue (plain JAX): layout, reflect pad, bf16 cast, weight repack ---
    x = jnp.transpose(x_nchw, (0, 2, 3, 1))                  # NHWC
    xp = jnp.pad(x, ((0, 0), (pad, pad), (pad, pad), (0, 0)), mode="reflect")
    xp = xp.astype(jnp.bfloat16)                             # (N, Hp, Wp, Cin)

    # PyTorch (Cout, Cin, K, K) -> (K, K, Cin, Cout) -> (K*K, Cin, Cout)
    w = jnp.transpose(weight_oikk, (2, 3, 1, 0)).reshape(K * K, Cin, Cout)
    w = w.astype(jnp.bfloat16)

    # VMEM budget: double-buffered input/weights/output + compute temporaries.
    in_bytes = Hp * Wp * Cin * 2
    w_bytes = K * K * Cin * Cout * 2
    out_bytes = HW * Cout * 4
    tmp_bytes = HW * Cout * 4 + 2 * HW * Cin * 4              # acc + slice temps
    est = 2 * in_bytes + 2 * w_bytes + 2 * out_bytes + tmp_bytes + (4 << 20)
    vmem_limit = int(min(max(est, 8 << 20), 32 << 20))

    kernel = functools.partial(_conv_in_relu_kernel, Ho=Ho, Wo=Wo, K=K,
                               relu=bool(add_activation))

    out = pl.pallas_call(
        kernel,
        out_shape=jax.ShapeDtypeStruct((N, HW, Cout), jnp.float32),
        grid_spec=pltpu.PrefetchScalarGridSpec(
            num_scalar_prefetch=0,
            grid=(N,),
            in_specs=[
                pl.BlockSpec((1, Hp, Wp, Cin), lambda n: (n, 0, 0, 0)),
                pl.BlockSpec((K * K, Cin, Cout), lambda n: (0, 0, 0)),
            ],
            out_specs=pl.BlockSpec((1, HW, Cout), lambda n: (n, 0, 0)),
        ),
        compiler_params=pltpu.CompilerParams(
            dimension_semantics=("parallel",),
            vmem_limit_bytes=vmem_limit,
        ),
    )(xp, w)

    out = out.reshape(N, Ho, Wo, Cout)
    # NCHW round-trip kept only to match the PyTorch module's interface.
    return jnp.transpose(out, (0, 3, 1, 2))


def _reference(x_nchw, weight_oikk, bias_o, *, ksize=3, pad=1,
               conv_dtype=jnp.float32):
    """Independent reference via lax.conv_general_dilated (NHWC/HWIO)."""
    x = jnp.transpose(x_nchw, (0, 2, 3, 1))
    xp = jnp.pad(x, ((0, 0), (pad, pad), (pad, pad), (0, 0)), mode="reflect")
    w_hwio = jnp.transpose(weight_oikk, (2, 3, 1, 0))
    y = lax.conv_general_dilated(
        xp.astype(conv_dtype), w_hwio.astype(conv_dtype),
        window_strides=(1, 1), padding="VALID",
        dimension_numbers=("NHWC", "HWIO", "NHWC"),
        preferred_element_type=jnp.float32,
    ) + bias_o.reshape(1, 1, 1, -1)
    mu = jnp.mean(y, axis=(1, 2), keepdims=True)
    var = jnp.mean((y - mu) ** 2, axis=(1, 2), keepdims=True)
    yn = (y - mu) / jnp.sqrt(var + EPS)
    out = jnp.maximum(yn, 0.0)
    return jnp.transpose(out, (0, 3, 1, 2))


if __name__ == "__main__":
    N, Cin, Cout, H, W, K = 2, 4, 8, 16, 16, 3

    key = jax.random.PRNGKey(0)
    kx, kw_, kb = jax.random.split(key, 3)
    x = jax.random.normal(kx, (N, Cin, H, W), dtype=jnp.float32)
    weight = jax.random.normal(kw_, (Cout, Cin, K, K), dtype=jnp.float32) * 0.1
    bias = jax.random.normal(kb, (Cout,), dtype=jnp.float32) * 0.1

    fwd = jax.jit(functools.partial(conv_block_forward, ksize=K, pad=1))
    out = jax.block_until_ready(fwd(x, weight, bias))

    assert out.shape == (N, Cout, H, W), out.shape

    # Apples-to-apples (same bf16 conv inputs, f32 accumulation) -> tight check.
    ref_bf16 = _reference(x, weight, bias, ksize=K, pad=1,
                          conv_dtype=jnp.bfloat16)
    err_b = float(jnp.max(jnp.abs(out - ref_bf16)))
    assert jnp.allclose(out, ref_bf16, rtol=2e-3, atol=2e-3), err_b

    # Full f32 reference -> loose check (bf16 input quantization only).
    ref_f32 = _reference(x, weight, bias, ksize=K, pad=1,
                         conv_dtype=jnp.float32)
    err_f = float(jnp.max(jnp.abs(out - ref_f32)))
    assert jnp.allclose(out, ref_f32, rtol=5e-2, atol=5e-2), err_f

    print("KERNEL_OK")
</pallas_src>

<mosaic_0001>
module attributes {stable_mosaic.version = 11 : i64} {
  func.func @_conv_in_relu_kernel(%arg0: i32, %arg1: memref<1x18x18x4xbf16, #tpu.memory_space<vmem>>, %arg2: memref<9x4x8xbf16, #tpu.memory_space<vmem>>, %arg3: memref<1x256x8xf32, #tpu.memory_space<vmem>>) attributes {dimension_semantics = [#tpu.dimension_semantics<parallel>], iteration_bounds = array<i64: 2>, scalar_prefetch = 0 : i64, scratch_operands = 0 : i64, tpu.core_type = #tpu.core_type<tc>, window_params = [{transform_indices = @transform_0, window_bounds = array<i64: 1, 18, 18, 4>}, {pipeline_mode = #tpu.pipeline_mode<synchronous>, transform_indices = @transform_1, window_bounds = array<i64: 9, 4, 8>}, {transform_indices = @transform_2, window_bounds = array<i64: 1, 256, 8>}]} {
    %c0 = arith.constant 0 : index
    %c0_0 = arith.constant 0 : index
    %c0_1 = arith.constant 0 : index
    %c0_2 = arith.constant 0 : index
    %0 = vector.load %arg1[%c0, %c0_0, %c0_1, %c0_2] : memref<1x18x18x4xbf16, #tpu.memory_space<vmem>>, vector<1x16x16x4xbf16>
    %1 = vector.shape_cast %0 : vector<1x16x16x4xbf16> to vector<16x16x4xbf16>
    %2 = vector.shape_cast %1 : vector<16x16x4xbf16> to vector<256x4xbf16>
    %c0_3 = arith.constant 0 : index
    %c0_4 = arith.constant 0 : index
    %c0_5 = arith.constant 0 : index
    %3 = vector.load %arg2[%c0_3, %c0_4, %c0_5] : memref<9x4x8xbf16, #tpu.memory_space<vmem>>, vector<1x4x8xbf16>
    %4 = vector.shape_cast %3 : vector<1x4x8xbf16> to vector<4x8xbf16>
    %cst = arith.constant dense<0.000000e+00> : vector<256x8xf32>
    %5 = tpu.matmul %2, %4, %cst {dimension_numbers = #tpu.dot_dimension_numbers<[1], [0], [0], [1], [0, 0, 1, 1], [], []>} : vector<256x4xbf16>, vector<4x8xbf16>, vector<256x8xf32> -> vector<256x8xf32>
    %c0_6 = arith.constant 0 : index
    %c0_7 = arith.constant 0 : index
    %c1 = arith.constant 1 : index
    %c0_8 = arith.constant 0 : index
    %6 = vector.load %arg1[%c0_6, %c0_7, %c1, %c0_8] : memref<1x18x18x4xbf16, #tpu.memory_space<vmem>>, vector<1x16x16x4xbf16>
    %7 = vector.shape_cast %6 : vector<1x16x16x4xbf16> to vector<16x16x4xbf16>
    %8 = vector.shape_cast %7 : vector<16x16x4xbf16> to vector<256x4xbf16>
    %c1_9 = arith.constant 1 : index
    %c0_10 = arith.constant 0 : index
    %c0_11 = arith.constant 0 : index
    %9 = vector.load %arg2[%c1_9, %c0_10, %c0_11] : memref<9x4x8xbf16, #tpu.memory_space<vmem>>, vector<1x4x8xbf16>
    %10 = vector.shape_cast %9 : vector<1x4x8xbf16> to vector<4x8xbf16>
    %cst_12 = arith.constant dense<0.000000e+00> : vector<256x8xf32>
    %11 = tpu.matmul %8, %10, %cst_12 {dimension_numbers = #tpu.dot_dimension_numbers<[1], [0], [0], [1], [0, 0, 1, 1], [], []>} : vector<256x4xbf16>, vector<4x8xbf16>, vector<256x8xf32> -> vector<256x8xf32>
    %12 = arith.addf %5, %11 : vector<256x8xf32>
    %c0_13 = arith.constant 0 : index
    %c0_14 = arith.constant 0 : index
    %c2 = arith.constant 2 : index
    %c0_15 = arith.constant 0 : index
    %13 = vector.load %arg1[%c0_13, %c0_14, %c2, %c0_15] : memref<1x18x18x4xbf16, #tpu.memory_space<vmem>>, vector<1x16x16x4xbf16>
    %14 = vector.shape_cast %13 : vector<1x16x16x4xbf16> to vector<16x16x4xbf16>
    %15 = vector.shape_cast %14 : vector<16x16x4xbf16> to vector<256x4xbf16>
    %c2_16 = arith.constant 2 : index
    %c0_17 = arith.constant 0 : index
    %c0_18 = arith.constant 0 : index
    %16 = vector.load %arg2[%c2_16, %c0_17, %c0_18] : memref<9x4x8xbf16, #tpu.memory_space<vmem>>, vector<1x4x8xbf16>
    %17 = vector.shape_cast %16 : vector<1x4x8xbf16> to vector<4x8xbf16>
    %cst_19 = arith.constant dense<0.000000e+00> : vector<256x8xf32>
    %18 = tpu.matmul %15, %17, %cst_19 {dimension_numbers = #tpu.dot_dimension_numbers<[1], [0], [0], [1], [0, 0, 1, 1], [], []>} : vector<256x4xbf16>, vector<4x8xbf16>, vector<256x8xf32> -> vector<256x8xf32>
    %19 = arith.addf %12, %18 : vector<256x8xf32>
    %c0_20 = arith.constant 0 : index
    %c1_21 = arith.constant 1 : index
    %c0_22 = arith.constant 0 : index
    %c0_23 = arith.constant 0 : index
    %20 = vector.load %arg1[%c0_20, %c1_21, %c0_22, %c0_23] : memref<1x18x18x4xbf16, #tpu.memory_space<vmem>>, vector<1x16x16x4xbf16>
    %21 = vector.shape_cast %20 : vector<1x16x16x4xbf16> to vector<16x16x4xbf16>
    %22 = vector.shape_cast %21 : vector<16x16x4xbf16> to vector<256x4xbf16>
    %c3 = arith.constant 3 : index
    %c0_24 = arith.constant 0 : index
    %c0_25 = arith.constant 0 : index
    %23 = vector.load %arg2[%c3, %c0_24, %c0_25] : memref<9x4x8xbf16, #tpu.memory_space<vmem>>, vector<1x4x8xbf16>
    %24 = vector.shape_cast %23 : vector<1x4x8xbf16> to vector<4x8xbf16>
    %cst_26 = arith.constant dense<0.000000e+00> : vector<256x8xf32>
    %25 = tpu.matmul %22, %24, %cst_26 {dimension_numbers = #tpu.dot_dimension_numbers<[1], [0], [0], [1], [0, 0, 1, 1], [], []>} : vector<256x4xbf16>, vector<4x8xbf16>, vector<256x8xf32> -> vector<256x8xf32>
    %26 = arith.addf %19, %25 : vector<256x8xf32>
    %c0_27 = arith.constant 0 : index
    %c1_28 = arith.constant 1 : index
    %c1_29 = arith.constant 1 : index
    %c0_30 = arith.constant 0 : index
    %27 = vector.load %arg1[%c0_27, %c1_28, %c1_29, %c0_30] : memref<1x18x18x4xbf16, #tpu.memory_space<vmem>>, vector<1x16x16x4xbf16>
    %28 = vector.shape_cast %27 : vector<1x16x16x4xbf16> to vector<16x16x4xbf16>
    %29 = vector.shape_cast %28 : vector<16x16x4xbf16> to vector<256x4xbf16>
    %c4 = arith.constant 4 : index
    %c0_31 = arith.constant 0 : index
    %c0_32 = arith.constant 0 : index
    %30 = vector.load %arg2[%c4, %c0_31, %c0_32] : memref<9x4x8xbf16, #tpu.memory_space<vmem>>, vector<1x4x8xbf16>
    %31 = vector.shape_cast %30 : vector<1x4x8xbf16> to vector<4x8xbf16>
    %cst_33 = arith.constant dense<0.000000e+00> : vector<256x8xf32>
    %32 = tpu.matmul %29, %31, %cst_33 {dimension_numbers = #tpu.dot_dimension_numbers<[1], [0], [0], [1], [0, 0, 1, 1], [], []>} : vector<256x4xbf16>, vector<4x8xbf16>, vector<256x8xf32> -> vector<256x8xf32>
    %33 = arith.addf %26, %32 : vector<256x8xf32>
    %c0_34 = arith.constant 0 : index
    %c1_35 = arith.constant 1 : index
    %c2_36 = arith.constant 2 : index
    %c0_37 = arith.constant 0 : index
    %34 = vector.load %arg1[%c0_34, %c1_35, %c2_36, %c0_37] : memref<1x18x18x4xbf16, #tpu.memory_space<vmem>>, vector<1x16x16x4xbf16>
    %35 = vector.shape_cast %34 : vector<1x16x16x4xbf16> to vector<16x16x4xbf16>
    %36 = vector.shape_cast %35 : vector<16x16x4xbf16> to vector<256x4xbf16>
    %c5 = arith.constant 5 : index
    %c0_38 = arith.constant 0 : index
    %c0_39 = arith.constant 0 : index
    %37 = vector.load %arg2[%c5, %c0_38, %c0_39] : memref<9x4x8xbf16, #tpu.memory_space<vmem>>, vector<1x4x8xbf16>
    %38 = vector.shape_cast %37 : vector<1x4x8xbf16> to vector<4x8xbf16>
    %cst_40 = arith.constant dense<0.000000e+00> : vector<256x8xf32>
    %39 = tpu.matmul %36, %38, %cst_40 {dimension_numbers = #tpu.dot_dimension_numbers<[1], [0], [0], [1], [0, 0, 1, 1], [], []>} : vector<256x4xbf16>, vector<4x8xbf16>, vector<256x8xf32> -> vector<256x8xf32>
    %40 = arith.addf %33, %39 : vector<256x8xf32>
    %c0_41 = arith.constant 0 : index
    %c2_42 = arith.constant 2 : index
    %c0_43 = arith.constant 0 : index
    %c0_44 = arith.constant 0 : index
    %41 = vector.load %arg1[%c0_41, %c2_42, %c0_43, %c0_44] : memref<1x18x18x4xbf16, #tpu.memory_space<vmem>>, vector<1x16x16x4xbf16>
    %42 = vector.shape_cast %41 : vector<1x16x16x4xbf16> to vector<16x16x4xbf16>
    %43 = vector.shape_cast %42 : vector<16x16x4xbf16> to vector<256x4xbf16>
    %c6 = arith.constant 6 : index
    %c0_45 = arith.constant 0 : index
    %c0_46 = arith.constant 0 : index
    %44 = vector.load %arg2[%c6, %c0_45, %c0_46] : memref<9x4x8xbf16, #tpu.memory_space<vmem>>, vector<1x4x8xbf16>
    %45 = vector.shape_cast %44 : vector<1x4x8xbf16> to vector<4x8xbf16>
    %cst_47 = arith.constant dense<0.000000e+00> : vector<256x8xf32>
    %46 = tpu.matmul %43, %45, %cst_47 {dimension_numbers = #tpu.dot_dimension_numbers<[1], [0], [0], [1], [0, 0, 1, 1], [], []>} : vector<256x4xbf16>, vector<4x8xbf16>, vector<256x8xf32> -> vector<256x8xf32>
    %47 = arith.addf %40, %46 : vector<256x8xf32>
    %c0_48 = arith.constant 0 : index
    %c2_49 = arith.constant 2 : index
    %c1_50 = arith.constant 1 : index
    %c0_51 = arith.constant 0 : index
    %48 = vector.load %arg1[%c0_48, %c2_49, %c1_50, %c0_51] : memref<1x18x18x4xbf16, #tpu.memory_space<vmem>>, vector<1x16x16x4xbf16>
    %49 = vector.shape_cast %48 : vector<1x16x16x4xbf16> to vector<16x16x4xbf16>
    %50 = vector.shape_cast %49 : vector<16x16x4xbf16> to vector<256x4xbf16>
    %c7 = arith.constant 7 : index
    %c0_52 = arith.constant 0 : index
    %c0_53 = arith.constant 0 : index
    %51 = vector.load %arg2[%c7, %c0_52, %c0_53] : memref<9x4x8xbf16, #tpu.memory_space<vmem>>, vector<1x4x8xbf16>
    %52 = vector.shape_cast %51 : vector<1x4x8xbf16> to vector<4x8xbf16>
    %cst_54 = arith.constant dense<0.000000e+00> : vector<256x8xf32>
    %53 = tpu.matmul %50, %52, %cst_54 {dimension_numbers = #tpu.dot_dimension_numbers<[1], [0], [0], [1], [0, 0, 1, 1], [], []>} : vector<256x4xbf16>, vector<4x8xbf16>, vector<256x8xf32> -> vector<256x8xf32>
    %54 = arith.addf %47, %53 : vector<256x8xf32>
    %c0_55 = arith.constant 0 : index
    %c2_56 = arith.constant 2 : index
    %c2_57 = arith.constant 2 : index
    %c0_58 = arith.constant 0 : index
    %55 = vector.load %arg1[%c0_55, %c2_56, %c2_57, %c0_58] : memref<1x18x18x4xbf16, #tpu.memory_space<vmem>>, vector<1x16x16x4xbf16>
    %56 = vector.shape_cast %55 : vector<1x16x16x4xbf16> to vector<16x16x4xbf16>
    %57 = vector.shape_cast %56 : vector<16x16x4xbf16> to vector<256x4xbf16>
    %c8 = arith.constant 8 : index
    %c0_59 = arith.constant 0 : index
    %c0_60 = arith.constant 0 : index
    %58 = vector.load %arg2[%c8, %c0_59, %c0_60] : memref<9x4x8xbf16, #tpu.memory_space<vmem>>, vector<1x4x8xbf16>
    %59 = vector.shape_cast %58 : vector<1x4x8xbf16> to vector<4x8xbf16>
    %cst_61 = arith.constant dense<0.000000e+00> : vector<256x8xf32>
    %60 = tpu.matmul %57, %59, %cst_61 {dimension_numbers = #tpu.dot_dimension_numbers<[1], [0], [0], [1], [0, 0, 1, 1], [], []>} : vector<256x4xbf16>, vector<4x8xbf16>, vector<256x8xf32> -> vector<256x8xf32>
    %61 = arith.addf %54, %60 : vector<256x8xf32>
    %cst_62 = arith.constant dense<0.000000e+00> : vector<8xf32>
    %62 = vector.multi_reduction <add>, %61, %cst_62 [0] : vector<256x8xf32> to vector<8xf32>
    %63 = vector.shape_cast %62 : vector<8xf32> to vector<1x8xf32>
    %cst_63 = arith.constant 2.560000e+02 : f32
    %64 = vector.broadcast %cst_63 : f32 to vector<1x8xf32>
    %65 = arith.divf %63, %64 : vector<1x8xf32>
    %66 = arith.mulf %61, %61 : vector<256x8xf32>
    %cst_64 = arith.constant dense<0.000000e+00> : vector<8xf32>
    %67 = vector.multi_reduction <add>, %66, %cst_64 [0] : vector<256x8xf32> to vector<8xf32>
    %68 = vector.shape_cast %67 : vector<8xf32> to vector<1x8xf32>
    %cst_65 = arith.constant 2.560000e+02 : f32
    %69 = vector.broadcast %cst_65 : f32 to vector<1x8xf32>
    %70 = arith.divf %68, %69 : vector<1x8xf32>
    %71 = arith.mulf %65, %65 : vector<1x8xf32>
    %72 = arith.subf %70, %71 : vector<1x8xf32>
    %cst_66 = arith.constant 0.000000e+00 : f32
    %73 = vector.broadcast %cst_66 : f32 to vector<1x8xf32>
    %74 = arith.maximumf %72, %73 : vector<1x8xf32>
    %75 = vector.broadcast %65 : vector<1x8xf32> to vector<256x8xf32>
    %76 = arith.subf %61, %75 : vector<256x8xf32>
    %cst_67 = arith.constant 9.99999974E-6 : f32
    %77 = vector.broadcast %cst_67 : f32 to vector<1x8xf32>
    %78 = arith.addf %74, %77 : vector<1x8xf32>
    %79 = math.rsqrt %78 : vector<1x8xf32>
    %80 = vector.broadcast %79 : vector<1x8xf32> to vector<256x8xf32>
    %81 = arith.mulf %76, %80 : vector<256x8xf32>
    %cst_68 = arith.constant 0.000000e+00 : f32
    %82 = vector.broadcast %cst_68 : f32 to vector<256x8xf32>
    %83 = arith.maximumf %81, %82 : vector<256x8xf32>
    %c0_69 = arith.constant 0 : index
    %c0_70 = arith.constant 0 : index
    %c0_71 = arith.constant 0 : index
    %84 = vector.load %arg3[%c0_69, %c0_70, %c0_71] : memref<1x256x8xf32, #tpu.memory_space<vmem>>, vector<1x256x8xf32>
    %85 = vector.shape_cast %84 : vector<1x256x8xf32> to vector<256x8xf32>
    %86 = vector.shape_cast %83 : vector<256x8xf32> to vector<1x256x8xf32>
    tpu.vector_store %arg3[%c0_69, %c0_70, %c0_71], %86 {strides = array<i32>} : memref<1x256x8xf32, #tpu.memory_space<vmem>>, vector<1x256x8xf32>,
    return
  }
  func.func @transform_0(%arg0: i32) -> (i32, i32, i32, i32) {
    %c0_i32 = arith.constant 0 : i32
    %c0_i32_0 = arith.constant 0 : i32
    %c0_i32_1 = arith.constant 0 : i32
    %c0_i32_2 = arith.constant 0 : i32
    return %arg0, %c0_i32, %c0_i32_0, %c0_i32_1 : i32, i32, i32, i32
  }
  func.func @transform_1(%arg0: i32) -> (i32, i32, i32) {
    %c0_i32 = arith.constant 0 : i32
    %c0_i32_0 = arith.constant 0 : i32
    %c0_i32_1 = arith.constant 0 : i32
    %c0_i32_2 = arith.constant 0 : i32
    return %c0_i32, %c0_i32_0, %c0_i32_1 : i32, i32, i32
  }
  func.func @transform_2(%arg0: i32) -> (i32, i32, i32) {
    %c0_i32 = arith.constant 0 : i32
    %c0_i32_0 = arith.constant 0 : i32
    %c0_i32_1 = arith.constant 0 : i32
    return %arg0, %c0_i32, %c0_i32_0 : i32, i32, i32
  }
}

</mosaic_0001>

<llo_original>
// kernel: conv_block_forward.1
$region0: #{conv_block_forward.1}
  #allocation0 [shape = 'u32[]', space=smem, size = 0x4, offset = 0x4, fixed_abs, tag = 'smem constant byte address 0x4 - core index']
  #allocation1 [shape = 'u32[144,128]{1,0:T(1,128)}', space=vmem, size = 0x12000, scoped, tag = 'internal scratch']
  %s0 = inlined_call_operand.vmem [shape: bf16[2,18,18,4], index: 0, kind: input, shape index: {}]
  %s1 = inlined_call_operand.vmem [shape: bf16[9,4,8], index: 1, kind: input, shape index: {}]
  %s2 = inlined_call_operand.vmem [shape: f32[2,256,8], index: 2, kind: output, shape index: {}]
  %s3 = sld [smem:[#allocation0]]
  $region41: #{conv_block_forward.1} parent=0
    _
  %s5 = ssub.s32 1, %s3
  %s6 = scalar_select 0, %s5, %s3
  loop: start=0, step=1, limit=4
  $region2: #{conv_block_forward.1} parent=0 // loop_pre_header
    _
  $region3: #{conv_block_forward.1} parent=0 // loop_header
    %s8 = sphi 0, %s12
    %p9 = scmp.ge.s32.totalorder %s8, 4
    %s18 = sphi 0, %s20
    %s21 = sphi 0, %s18
    %s22 = sphi 0, %s21
    %s38 = sphi 0, %s22
    %s42 = sphi 0, %s42
    %s44 = sphi 0, %s42
    %s45 = sphi 0, %s44
    %s59 = sphi 0, %s45
    %s65 = sphi 0, %s67
    %s68 = sphi 0, %s65
    %s69 = sphi 0, %s68
    %s85 = sphi 0, %s69
  $region4: #{conv_block_forward.1} parent=0 // loop_header_branch
    %11 = sbr.rel (%p9) target = $region8
  $region5: #{conv_block_forward.1} parent=0 // loop_body
    %s13 = ssub.s32 %s8, 1
    %s14 = ssub.s32 %s8, 2
    %s15 = sadd.s32 %s8, 1
    %s16 = ssub.s32 %s8, %s15
    %p17 = scmp.eq.s32.totalorder %s16, 0
    %s19 = sadd.s32 %s18, 1
    %s20 = scalar_select %p17, %s18, %s19
    %p23 = pneg %p17
    %p24 = scmp.eq.s32.totalorder %s8, 1
    %p25 = por %p23, %p24
    %p26 = scmp.ne.s32.totalorder %s18, %s21
    %p27 = scmp.eq.s32.totalorder %s8, 0
    %p28 = por %p26, %p27
    %p29 = scmp.ne.s32.totalorder %s18, %s21
    %p30 = scmp.eq.s32.totalorder %s13, 1
    %p31 = por %p29, %p30
    %p32 = scmp.ne.s32.totalorder %s21, %s22
    %p33 = scmp.eq.s32.totalorder %s13, 0
    %p34 = por %p32, %p33
    %p35 = scmp.ne.s32.totalorder %s21, %s22
    %p36 = scmp.eq.s32.totalorder %s14, 1
    %p37 = por %p35, %p36
    %p39 = scmp.ne.s32.totalorder %s22, %s38
    %p40 = scmp.eq.s32.totalorder %s14, 0
    %p41 = por %p39, %p40
    %s43 = sadd.s32 %s42, 1
    %p46 = scmp.eq.s32.totalorder %s8, 1
    %p47 = scmp.ne.s32.totalorder %s42, %s44
    %p48 = scmp.eq.s32.totalorder %s8, 0
    %p49 = por %p47, %p48
    %p50 = scmp.ne.s32.totalorder %s42, %s44
    %p51 = scmp.eq.s32.totalorder %s13, 1
    %p52 = por %p50, %p51
    %p53 = scmp.ne.s32.totalorder %s44, %s45
    %p54 = scmp.eq.s32.totalorder %s13, 0
    %p55 = por %p53, %p54
    %p56 = scmp.ne.s32.totalorder %s44, %s45
    %p57 = scmp.eq.s32.totalorder %s14, 1
    %p58 = por %p56, %p57
    %p60 = scmp.ne.s32.totalorder %s45, %s59
    %p61 = scmp.eq.s32.totalorder %s14, 0
    %p62 = por %p60, %p61
    %s63 = ssub.s32 %s8, %s15
    %p64 = scmp.eq.s32.totalorder %s63, 0
    %s66 = sadd.s32 %s65, 1
    %s67 = scalar_select %p64, %s65, %s66
    %p70 = pneg %p64
    %p71 = scmp.eq.s32.totalorder %s8, 1
    %p72 = por %p70, %p71
    %p73 = scmp.ne.s32.totalorder %s65, %s68
    %p74 = scmp.eq.s32.totalorder %s8, 0
    %p75 = por %p73, %p74
    %p76 = scmp.ne.s32.totalorder %s65, %s68
    %p77 = scmp.eq.s32.totalorder %s13, 1
    %p78 = por %p76, %p77
    %p79 = scmp.ne.s32.totalorder %s68, %s69
    %p80 = scmp.eq.s32.totalorder %s13, 0
    %p81 = por %p79, %p80
    %p82 = scmp.ne.s32.totalorder %s68, %s69
    %p83 = scmp.eq.s32.totalorder %s14, 1
    %p84 = por %p82, %p83
    %p86 = scmp.ne.s32.totalorder %s69, %s85
    %p87 = scmp.eq.s32.totalorder %s14, 0
    %p88 = por %p86, %p87
    %p89 = scmp.le.s32.totalorder 1, %s8
    %p90 = scmp.lt.s32.totalorder %s8, 3
    %p91 = pnand %p89, %p90
    %p92 = pneg %p91
    // Predicated region
    $region9: #{conv_block_forward.1} parent=5 // pred_check
      _
    $region10: #{conv_block_forward.1} parent=5 // pred_check_branch
      %94 = sbr.rel (%p91) target = $region12
    $region11: #{conv_block_forward.1} parent=5 // pred_region
      %s95 = ssub.s32 %s8, 1
      // Predicated region
      $region13: #{conv_block_forward.1} parent=11 // pred_check
        %p96 = pneg %p55
      $region14: #{conv_block_forward.1} parent=11 // pred_check_branch
        %98 = sbr.rel (%p96) target = $region16
      $region15: #{conv_block_forward.1} parent=11 // pred_region
        _
      $region16: #{conv_block_forward.1} parent=11 // pred_fallthru
        _
    $region12: #{conv_block_forward.1} parent=5 // pred_fallthru
      _
    %p99 = scmp.lt.s32.totalorder %s8, 2
    // Predicated region
    $region17: #{conv_block_forward.1} parent=5 // pred_check
      %p100 = pneg %p99
    $region18: #{conv_block_forward.1} parent=5 // pred_check_branch
      %102 = sbr.rel (%p100) target = $region20
    $region19: #{conv_block_forward.1} parent=5 // pred_region
      // Predicated region
      $region21: #{conv_block_forward.1} parent=19 // pred_check
        %p103 = pneg %p28
      $region22: #{conv_block_forward.1} parent=19 // pred_check_branch
        %105 = sbr.rel (%p103) target = $region24
      $region23: #{conv_block_forward.1} parent=19 // pred_region
        %p106 = scmp.lt.s32.totalorder %s8, 1
        %s107 = scalar_select %p106, %s8, 1
        %s108 = smul.addr %s107, 54
        %s109 = smul.addr %s108, 4
        %s110 = scalar_lea.vmem %s0, %s109
      $region24: #{conv_block_forward.1} parent=19 // pred_fallthru
        _
    $region20: #{conv_block_forward.1} parent=5 // pred_fallthru
      _
    %p111 = scmp.le.s32.totalorder 1, %s8
    %p112 = scmp.lt.s32.totalorder %s8, 3
    %p113 = pnand %p111, %p112
    %p114 = pneg %p113
    // Predicated region
    $region25: #{conv_block_forward.1} parent=5 // pred_check
      _
    $region26: #{conv_block_forward.1} parent=5 // pred_check_branch
      %116 = sbr.rel (%p113) target = $region28
    $region27: #{conv_block_forward.1} parent=5 // pred_region
      %s117 = ssub.s32 %s8, 1
      %p118 = scmp.lt.s32.totalorder %s13, 1
      %s119 = scalar_select %p118, %s13, 1
      %s120 = smul.addr %s119, 54
      %s121 = smul.addr %s120, 4
      %s122 = scalar_lea.vmem %s0, %s121
      %p123 = pneg %p34
      %p124 = pneg %p31
      %p125 = pneg %p55
      %p126 = pneg %p52
      %p127 = pneg %p81
      %p128 = pneg %p78
      %p129 = scmp.lt.s32.totalorder %s13, 1
      %s130 = scalar_select %p129, %s13, 1
      %s131 = smul.addr %s130, 32
      %s132 = smul.addr %s131, 8
      %s133 = scalar_lea.vmem %s2, %s132
      %p134 = scmp.lt.s32.totalorder %s13, 1
      %s135 = scalar_select %p134, %s13, 1
      %s136 = smul.addr %s135, 54
      %s137 = smul.addr %s136, 4
      %s138 = scalar_lea.vmem %s0, %s137
      %p139 = scmp.lt.s32.totalorder %s13, 1
      %s140 = scalar_select %p139, %s13, 1
      %s141 = smul.addr %s140, 32
      %s142 = smul.addr %s141, 8
      %s143 = scalar_lea.vmem %s2, %s142
      %v145 = vld [vmem:[%s138] sm:$0xf]
      %v146 = vld [vmem:[%s138 + $0x4] sm:$0xf]
      %v147 = vld [vmem:[%s138 + $0xc] sm:$0xf]
      %v148 = vld [vmem:[%s138 + $0x10] sm:$0xf]
      %v149 = vld [vmem:[%s138 + $0x18] sm:$0xf]
      %v150 = vld [vmem:[%s138 + $0x1c] sm:$0xf]
      %v151 = vld [vmem:[%s138 + $0x24] sm:$0xf]
      %v152 = vld [vmem:[%s138 + $0x28] sm:$0xf]
      %v153 = vld [vmem:[%s138 + $0x30] sm:$0xf]
      %v154 = vld [vmem:[%s138 + $0x34] sm:$0xf]
      %v155 = vld [vmem:[%s138 + $0x3c] sm:$0xf]
      %v156 = vld [vmem:[%s138 + $0x40] sm:$0xf]
      %v157 = vld [vmem:[%s138 + $0x48] sm:$0xf]
      %v158 = vld [vmem:[%s138 + $0x4c] sm:$0xf]
      %v159 = vld [vmem:[%s138 + $0x54] sm:$0xf]
      %v160 = vld [vmem:[%s138 + $0x58] sm:$0xf]
      %v161 = vld [vmem:[%s138 + $0x60] sm:$0xf]
      %v162 = vld [vmem:[%s138 + $0x64] sm:$0xf]
      %v163 = vld [vmem:[%s138 + $0x6c] sm:$0xf]
      %v164 = vld [vmem:[%s138 + $0x70] sm:$0xf]
      %v165 = vld [vmem:[%s138 + $0x78] sm:$0xf]
      %v166 = vld [vmem:[%s138 + $0x7c] sm:$0xf]
      %v167 = vld [vmem:[%s138 + $0x84] sm:$0xf]
      %v168 = vld [vmem:[%s138 + $0x88] sm:$0xf]
      %v169 = vld [vmem:[%s138 + $0x90] sm:$0xf]
      %v170 = vld [vmem:[%s138 + $0x94] sm:$0xf]
      %v171 = vld [vmem:[%s138 + $0x9c] sm:$0xf]
      %v172 = vld [vmem:[%s138 + $0xa0] sm:$0xf]
      %v173 = vld [vmem:[%s138 + $0xa8] sm:$0xf]
      %v174 = vld [vmem:[%s138 + $0xac] sm:$0xf]
      %v175 = vld [vmem:[%s138 + $0xb4] sm:$0xf]
      %v176 = vld [vmem:[%s138 + $0xb8] sm:$0xf]
      %v177 = vld [vmem:[%s1] sm:$0x3]
      %v178 = vld [vmem:[%s138 + $0x8] sm:$0x1]
      %v179 = vld [vmem:[%s138 + $0x14] sm:$0x1]
      %v180 = vld [vmem:[%s138 + $0x20] sm:$0x1]
      %v181 = vld [vmem:[%s138 + $0x2c] sm:$0x1]
      %v182 = vld [vmem:[%s138 + $0x38] sm:$0x1]
      %v183 = vld [vmem:[%s138 + $0x44] sm:$0x1]
      %v184 = vld [vmem:[%s138 + $0x50] sm:$0x1]
      %v185 = vld [vmem:[%s138 + $0x5c] sm:$0x1]
      %v186 = vld [vmem:[%s138 + $0x68] sm:$0x1]
      %v187 = vld [vmem:[%s138 + $0x74] sm:$0x1]
      %v188 = vld [vmem:[%s138 + $0x80] sm:$0x1]
      %v189 = vld [vmem:[%s138 + $0x8c] sm:$0x1]
      %v190 = vld [vmem:[%s138 + $0x98] sm:$0x1]
      %v191 = vld [vmem:[%s138 + $0xa4] sm:$0x1]
      %v192 = vld [vmem:[%s138 + $0xb0] sm:$0x1]
      %v193 = vld [vmem:[%s138 + $0xbc] sm:$0x1]
      %vm194 = vsmask.f32 3328
      %vm195 = vsmask.f32 7440
      %vm196 = vmor %vm194, %vm195
      %v198 = vshrl.u32 %v145, 16
      %v200 = vrot.slane %v198, 4
      %v201 = vshll.u32 %v145, 16
      %v203 = vrot.slane %v201, 5
      %v204 = vor.u32 %v200, %v203
      %v205 = vrot.slane %v204, 4
      %v207 = vshll.u32 %v146, 16
      %v209 = vrot.slane %v207, 5
      %v210 = vsel %vm196, %v205, %v209
      %v211 = vshrl.u32 %v146, 16
      %v213 = vrot.slane %v211, 4
      %v214 = vor.u32 %v213, %v209
      %v215 = vrot.slane %v214, 4
      %v217 = vshll.u32 %v178, 16
      %v219 = vrot.slane %v217, 5
      %v220 = vsel %vm196, %v215, %v219
      %v222 = vshrl.u32 %v147, 16
      %v224 = vrot.slane %v222, 4
      %v225 = vshll.u32 %v147, 16
      %v227 = vrot.slane %v225, 5
      %v228 = vor.u32 %v224, %v227
      %v229 = vrot.slane %v228, 4
      %v231 = vshll.u32 %v148, 16
      %v233 = vrot.slane %v231, 5
      %v234 = vsel %vm196, %v229, %v233
      %v235 = vshrl.u32 %v148, 16
      %v237 = vrot.slane %v235, 4
      %v238 = vor.u32 %v237, %v233
      %v239 = vrot.slane %v238, 4
      %v241 = vshll.u32 %v179, 16
      %v243 = vrot.slane %v241, 5
      %v244 = vsel %vm196, %v239, %v243
      %v246 = vshrl.u32 %v149, 16
      %v248 = vrot.slane %v246, 4
      %v249 = vshll.u32 %v149, 16
      %v251 = vrot.slane %v249, 5
      %v252 = vor.u32 %v248, %v251
      %v253 = vrot.slane %v252, 4
      %v255 = vshll.u32 %v150, 16
      %v257 = vrot.slane %v255, 5
      %v258 = vsel %vm196, %v253, %v257
      %v259 = vshrl.u32 %v150, 16
      %v261 = vrot.slane %v259, 4
      %v262 = vor.u32 %v261, %v257
      %v263 = vrot.slane %v262, 4
      %v265 = vshll.u32 %v180, 16
      %v267 = vrot.slane %v265, 5
      %v268 = vsel %vm196, %v263, %v267
      %v270 = vshrl.u32 %v151, 16
      %v272 = vrot.slane %v270, 4
      %v273 = vshll.u32 %v151, 16
      %v275 = vrot.slane %v273, 5
      %v276 = vor.u32 %v272, %v275
      %v277 = vrot.slane %v276, 4
      %v279 = vshll.u32 %v152, 16
      %v281 = vrot.slane %v279, 5
      %v282 = vsel %vm196, %v277, %v281
      %v283 = vshrl.u32 %v152, 16
      %v285 = vrot.slane %v283, 4
      %v286 = vor.u32 %v285, %v281
      %v287 = vrot.slane %v286, 4
      %v289 = vshll.u32 %v181, 16
      %v291 = vrot.slane %v289, 5
      %v292 = vsel %vm196, %v287, %v291
      %v294 = vshrl.u32 %v153, 16
      %v296 = vrot.slane %v294, 4
      %v297 = vshll.u32 %v153, 16
      %v299 = vrot.slane %v297, 5
      %v300 = vor.u32 %v296, %v299
      %v301 = vrot.slane %v300, 4
      %v303 = vshll.u32 %v154, 16
      %v305 = vrot.slane %v303, 5
      %v306 = vsel %vm196, %v301, %v305
      %v307 = vshrl.u32 %v154, 16
      %v309 = vrot.slane %v307, 4
      %v310 = vor.u32 %v309, %v305
      %v311 = vrot.slane %v310, 4
      %v313 = vshll.u32 %v182, 16
      %v315 = vrot.slane %v313, 5
      %v316 = vsel %vm196, %v311, %v315
      %v318 = vshrl.u32 %v155, 16
      %v320 = vrot.slane %v318, 4
      %v321 = vshll.u32 %v155, 16
      %v323 = vrot.slane %v321, 5
      %v324 = vor.u32 %v320, %v323
      %v325 = vrot.slane %v324, 4
      %v327 = vshll.u32 %v156, 16
      %v329 = vrot.slane %v327, 5
      %v330 = vsel %vm196, %v325, %v329
      %v331 = vshrl.u32 %v156, 16
      %v333 = vrot.slane %v331, 4
      %v334 = vor.u32 %v333, %v329
      %v335 = vrot.slane %v334, 4
      %v337 = vshll.u32 %v183, 16
      %v339 = vrot.slane %v337, 5
      %v340 = vsel %vm196, %v335, %v339
      %v342 = vshrl.u32 %v157, 16
      %v344 = vrot.slane %v342, 4
      %v345 = vshll.u32 %v157, 16
      %v347 = vrot.slane %v345, 5
      %v348 = vor.u32 %v344, %v347
      %v349 = vrot.slane %v348, 4
      %v351 = vshll.u32 %v158, 16
      %v353 = vrot.slane %v351, 5
      %v354 = vsel %vm196, %v349, %v353
      %v355 = vshrl.u32 %v158, 16
      %v357 = vrot.slane %v355, 4
      %v358 = vor.u32 %v357, %v353
      %v359 = vrot.slane %v358, 4
      %v361 = vshll.u32 %v184, 16
      %v363 = vrot.slane %v361, 5
      %v364 = vsel %vm196, %v359, %v363
      %v366 = vshrl.u32 %v159, 16
      %v368 = vrot.slane %v366, 4
      %v369 = vshll.u32 %v159, 16
      %v371 = vrot.slane %v369, 5
      %v372 = vor.u32 %v368, %v371
      %v373 = vrot.slane %v372, 4
      %v375 = vshll.u32 %v160, 16
      %v377 = vrot.slane %v375, 5
      %v378 = vsel %vm196, %v373, %v377
      %v379 = vshrl.u32 %v160, 16
      %v381 = vrot.slane %v379, 4
      %v382 = vor.u32 %v381, %v377
      %v383 = vrot.slane %v382, 4
      %v385 = vshll.u32 %v185, 16
      %v387 = vrot.slane %v385, 5
      %v388 = vsel %vm196, %v383, %v387
      %v390 = vshrl.u32 %v161, 16
      %v392 = vrot.slane %v390, 4
      %v393 = vshll.u32 %v161, 16
      %v395 = vrot.slane %v393, 5
      %v396 = vor.u32 %v392, %v395
      %v397 = vrot.slane %v396, 4
      %v399 = vshll.u32 %v162, 16
      %v401 = vrot.slane %v399, 5
      %v402 = vsel %vm196, %v397, %v401
      %v403 = vshrl.u32 %v162, 16
      %v405 = vrot.slane %v403, 4
      %v406 = vor.u32 %v405, %v401
      %v407 = vrot.slane %v406, 4
      %v409 = vshll.u32 %v186, 16
      %v411 = vrot.slane %v409, 5
      %v412 = vsel %vm196, %v407, %v411
      %v414 = vshrl.u32 %v163, 16
      %v416 = vrot.slane %v414, 4
      %v417 = vshll.u32 %v163, 16
      %v419 = vrot.slane %v417, 5
      %v420 = vor.u32 %v416, %v419
      %v421 = vrot.slane %v420, 4
      %v423 = vshll.u32 %v164, 16
      %v425 = vrot.slane %v423, 5
      %v426 = vsel %vm196, %v421, %v425
      %v427 = vshrl.u32 %v164, 16
      %v429 = vrot.slane %v427, 4
      %v430 = vor.u32 %v429, %v425
      %v431 = vrot.slane %v430, 4
      %v433 = vshll.u32 %v187, 16
      %v435 = vrot.slane %v433, 5
      %v436 = vsel %vm196, %v431, %v435
      %v438 = vshrl.u32 %v165, 16
      %v440 = vrot.slane %v438, 4
      %v441 = vshll.u32 %v165, 16
      %v443 = vrot.slane %v441, 5
      %v444 = vor.u32 %v440, %v443
      %v445 = vrot.slane %v444, 4
      %v447 = vshll.u32 %v166, 16
      %v449 = vrot.slane %v447, 5
      %v450 = vsel %vm196, %v445, %v449
      %v451 = vshrl.u32 %v166, 16
      %v453 = vrot.slane %v451, 4
      %v454 = vor.u32 %v453, %v449
      %v455 = vrot.slane %v454, 4
      %v457 = vshll.u32 %v188, 16
      %v459 = vrot.slane %v457, 5
      %v460 = vsel %vm196, %v455, %v459
      %v462 = vshrl.u32 %v167, 16
      %v464 = vrot.slane %v462, 4
      %v465 = vshll.u32 %v167, 16
      %v467 = vrot.slane %v465, 5
      %v468 = vor.u32 %v464, %v467
      %v469 = vrot.slane %v468, 4
      %v471 = vshll.u32 %v168, 16
      %v473 = vrot.slane %v471, 5
      %v474 = vsel %vm196, %v469, %v473
      %v475 = vshrl.u32 %v168, 16
      %v477 = vrot.slane %v475, 4
      %v478 = vor.u32 %v477, %v473
      %v479 = vrot.slane %v478, 4
      %v481 = vshll.u32 %v189, 16
      %v483 = vrot.slane %v481, 5
      %v484 = vsel %vm196, %v479, %v483
      %v486 = vshrl.u32 %v169, 16
      %v488 = vrot.slane %v486, 4
      %v489 = vshll.u32 %v169, 16
      %v491 = vrot.slane %v489, 5
      %v492 = vor.u32 %v488, %v491
      %v493 = vrot.slane %v492, 4
      %v495 = vshll.u32 %v170, 16
      %v497 = vrot.slane %v495, 5
      %v498 = vsel %vm196, %v493, %v497
      %v499 = vshrl.u32 %v170, 16
      %v501 = vrot.slane %v499, 4
      %v502 = vor.u32 %v501, %v497
      %v503 = vrot.slane %v502, 4
      %v505 = vshll.u32 %v190, 16
      %v507 = vrot.slane %v505, 5
      %v508 = vsel %vm196, %v503, %v507
      %v510 = vshrl.u32 %v171, 16
      %v512 = vrot.slane %v510, 4
      %v513 = vshll.u32 %v171, 16
      %v515 = vrot.slane %v513, 5
      %v516 = vor.u32 %v512, %v515
      %v517 = vrot.slane %v516, 4
      %v519 = vshll.u32 %v172, 16
      %v521 = vrot.slane %v519, 5
      %v522 = vsel %vm196, %v517, %v521
      %v523 = vshrl.u32 %v172, 16
      %v525 = vrot.slane %v523, 4
      %v526 = vor.u32 %v525, %v521
      %v527 = vrot.slane %v526, 4
      %v529 = vshll.u32 %v191, 16
      %v531 = vrot.slane %v529, 5
      %v532 = vsel %vm196, %v527, %v531
      %v534 = vshrl.u32 %v173, 16
      %v536 = vrot.slane %v534, 4
      %v537 = vshll.u32 %v173, 16
      %v539 = vrot.slane %v537, 5
      %v540 = vor.u32 %v536, %v539
      %v541 = vrot.slane %v540, 4
      %v543 = vshll.u32 %v174, 16
      %v545 = vrot.slane %v543, 5
      %v546 = vsel %vm196, %v541, %v545
      %v547 = vshrl.u32 %v174, 16
      %v549 = vrot.slane %v547, 4
      %v550 = vor.u32 %v549, %v545
      %v551 = vrot.slane %v550, 4
      %v553 = vshll.u32 %v192, 16
      %v555 = vrot.slane %v553, 5
      %v556 = vsel %vm196, %v551, %v555
      %v558 = vshrl.u32 %v175, 16
      %v560 = vrot.slane %v558, 4
      %v561 = vshll.u32 %v175, 16
      %v563 = vrot.slane %v561, 5
      %v564 = vor.u32 %v560, %v563
      %v565 = vrot.slane %v564, 4
      %v567 = vshll.u32 %v176, 16
      %v569 = vrot.slane %v567, 5
      %v570 = vsel %vm196, %v565, %v569
      %v571 = vshrl.u32 %v176, 16
      %v573 = vrot.slane %v571, 4
      %v574 = vor.u32 %v573, %v569
      %v575 = vrot.slane %v574, 4
      %v577 = vshll.u32 %v193, 16
      %v579 = vrot.slane %v577, 5
      %v580 = vsel %vm196, %v575, %v579
      %s581 = scalar_lea.vmem %s1, 2
      %v582 = vld [vmem:[%s581] sm:$0x3]
      %v583 = vunpack.c.l.b16 %v210
      %v584 = vunpack.c.l.b16 %v220
      %v585 = vunpack.c.l.b16 %v234
      %v586 = vunpack.c.l.b16 %v244
      %v587 = vunpack.c.l.b16 %v258
      %v588 = vunpack.c.l.b16 %v268
      %v589 = vunpack.c.l.b16 %v282
      %v590 = vunpack.c.l.b16 %v292
      %v591 = vunpack.c.l.b16 %v306
      %v592 = vunpack.c.l.b16 %v316
      %v593 = vunpack.c.l.b16 %v330
      %v594 = vunpack.c.l.b16 %v340
      %v595 = vunpack.c.l.b16 %v354
      %v596 = vunpack.c.l.b16 %v364
      %v597 = vunpack.c.l.b16 %v378
      %v598 = vunpack.c.l.b16 %v388
      %v599 = vunpack.c.l.b16 %v402
      %v600 = vunpack.c.l.b16 %v412
      %v601 = vunpack.c.l.b16 %v426
      %v602 = vunpack.c.l.b16 %v436
      %v603 = vunpack.c.l.b16 %v450
      %v604 = vunpack.c.l.b16 %v460
      %v605 = vunpack.c.l.b16 %v474
      %v606 = vunpack.c.l.b16 %v484
      %v607 = vunpack.c.l.b16 %v498
      %v608 = vunpack.c.l.b16 %v508
      %v609 = vunpack.c.l.b16 %v522
      %v610 = vunpack.c.l.b16 %v532
      %v611 = vunpack.c.l.b16 %v546
      %v612 = vunpack.c.l.b16 %v556
      %v613 = vunpack.c.l.b16 %v570
      %v614 = vunpack.c.l.b16 %v580
      %v615 = vpack.c.b16 %v584, %v583
      %v616 = vpack.c.b16 %v586, %v585
      %v617 = vpack.c.b16 %v588, %v587
      %v618 = vpack.c.b16 %v590, %v589
      %v619 = vpack.c.b16 %v592, %v591
      %v620 = vpack.c.b16 %v594, %v593
      %v621 = vpack.c.b16 %v596, %v595
      %v622 = vpack.c.b16 %v598, %v597
      %v623 = vpack.c.b16 %v600, %v599
      %v624 = vpack.c.b16 %v602, %v601
      %v625 = vpack.c.b16 %v604, %v603
      %v626 = vpack.c.b16 %v606, %v605
      %v627 = vpack.c.b16 %v608, %v607
      %v628 = vpack.c.b16 %v610, %v609
      %v629 = vpack.c.b16 %v612, %v611
      %v630 = vpack.c.b16 %v614, %v613
      %vm631 = vcmask 31744
      %v633 = vsel %vm631, %v615, 0
      %v636 = vsel %vm631, %v616, 0
      %v639 = vsel %vm631, %v617, 0
      %v642 = vsel %vm631, %v618, 0
      %v645 = vsel %vm631, %v619, 0
      %v648 = vsel %vm631, %v620, 0
      %v651 = vsel %vm631, %v621, 0
      %v654 = vsel %vm631, %v622, 0
      %v657 = vsel %vm631, %v623, 0
      %v660 = vsel %vm631, %v624, 0
      %v663 = vsel %vm631, %v625, 0
      %v666 = vsel %vm631, %v626, 0
      %v669 = vsel %vm631, %v627, 0
      %v672 = vsel %vm631, %v628, 0
      %v675 = vsel %vm631, %v629, 0
      %v678 = vsel %vm631, %v630, 0
      %vm680 = vcmask 1041408
      %v682 = vsel %vm680, %v582, 0
      %684 = vmatprep.subr.bf16.mxu0 0
      %685 = vmatpush1.bf16.msra.mxu0 %v682
      %686 = vmatprep.subr.bf16.mxu0 0
      %687 = vmatpush1.bf16.msra.mxu0 0
      %688 = vmatprep.subr.bf16.mxu0 0
      %689 = vmatpush1.bf16.msra.mxu0 0
      %690 = vmatprep.subr.bf16.mxu0 0
      %691 = vmatpush1.bf16.msra.mxu0 0
      %692 = vmatprep.subr.bf16.mxu0 0
      %693 = vmatpush1.bf16.msra.mxu0 0
      %694 = vmatprep.subr.bf16.mxu0 0
      %695 = vmatpush1.bf16.msra.mxu0 0
      %696 = vmatprep.subr.bf16.mxu0 0
      %697 = vmatpush1.bf16.msra.mxu0 0
      %698 = vmatprep.subr.bf16.mxu0 0
      %699 = vmatpush1.bf16.msra.mxu0 0
      %700 = vmatprep.subr.bf16.mxu0 0
      %701 = vmatpush1.bf16.msra.mxu0 0
      %702 = vmatprep.subr.bf16.mxu0 0
      %703 = vmatpush1.bf16.msra.mxu0 0
      %704 = vmatprep.subr.bf16.mxu0 0
      %705 = vmatpush1.bf16.msra.mxu0 0
      %706 = vmatprep.subr.bf16.mxu0 0
      %707 = vmatpush1.bf16.msra.mxu0 0
      %708 = vmatprep.subr.bf16.mxu0 0
      %709 = vmatpush1.bf16.msra.mxu0 0
      %710 = vmatprep.subr.bf16.mxu0 0
      %711 = vmatpush1.bf16.msra.mxu0 0
      %712 = vmatprep.subr.bf16.mxu0 0
      %713 = vmatpush1.bf16.msra.mxu0 0
      %714 = vmatprep.subr.bf16.mxu0 0
      %715 = vmatpush1.bf16.msra.mxu0 0
      %716 = vmatprep.mubr.bf16.mxu0 0
      %717 = vmatmul.mubr.bf16.gmra.mrb[0].mxu0 %v633
      %v718 = vpop.f32.mrb[0].mxu0
      %v719 = vadd.f32 0.0, %v718
      %v720 = vpop.f32.mrb[0].mxu0
      %v721 = vpop.f32.mrb[0].mxu0
      %v722 = vadd.f32 0.0, %v721
      %v723 = vpop.f32.mrb[0].mxu0
      %724 = vmatprep.mubr.bf16.mxu0 0
      %725 = vmatmul.mubr.bf16.gmra.mrb[0].mxu0 %v636
      %v726 = vpop.f32.mrb[0].mxu0
      %v727 = vadd.f32 0.0, %v726
      %v728 = vpop.f32.mrb[0].mxu0
      %v729 = vpop.f32.mrb[0].mxu0
      %v730 = vadd.f32 0.0, %v729
      %v731 = vpop.f32.mrb[0].mxu0
      %732 = vmatprep.mubr.bf16.mxu0 0
      %733 = vmatmul.mubr.bf16.gmra.mrb[0].mxu0 %v639
      %v734 = vpop.f32.mrb[0].mxu0
      %v735 = vadd.f32 0.0, %v734
      %v736 = vpop.f32.mrb[0].mxu0
      %v737 = vpop.f32.mrb[0].mxu0
      %v738 = vadd.f32 0.0, %v737
      %v739 = vpop.f32.mrb[0].mxu0
      %740 = vmatprep.mubr.bf16.mxu0 0
      %741 = vmatmul.mubr.bf16.gmra.mrb[0].mxu0 %v642
      %v742 = vpop.f32.mrb[0].mxu0
      %v743 = vadd.f32 0.0, %v742
      %v744 = vpop.f32.mrb[0].mxu0
      %v745 = vpop.f32.mrb[0].mxu0
      %v746 = vadd.f32 0.0, %v745
      %v747 = vpop.f32.mrb[0].mxu0
      %748 = vmatprep.mubr.bf16.mxu0 0
      %749 = vmatmul.mubr.bf16.gmra.mrb[0].mxu0 %v645
      %v750 = vpop.f32.mrb[0].mxu0
      %v751 = vadd.f32 0.0, %v750
      %v752 = vpop.f32.mrb[0].mxu0
      %v753 = vpop.f32.mrb[0].mxu0
      %v754 = vadd.f32 0.0, %v753
      %v755 = vpop.f32.mrb[0].mxu0
      %756 = vmatprep.mubr.bf16.mxu0 0
      %757 = vmatmul.mubr.bf16.gmra.mrb[0].mxu0 %v648
      %v758 = vpop.f32.mrb[0].mxu0
      %v759 = vadd.f32 0.0, %v758
      %v760 = vpop.f32.mrb[0].mxu0
      %v761 = vpop.f32.mrb[0].mxu0
      %v762 = vadd.f32 0.0, %v761
      %v763 = vpop.f32.mrb[0].mxu0
      %764 = vmatprep.mubr.bf16.mxu0 0
      %765 = vmatmul.mubr.bf16.gmra.mrb[0].mxu0 %v651
      %v766 = vpop.f32.mrb[0].mxu0
      %v767 = vadd.f32 0.0, %v766
      %v768 = vpop.f32.mrb[0].mxu0
      %v769 = vpop.f32.mrb[0].mxu0
      %v770 = vadd.f32 0.0, %v769
      %v771 = vpop.f32.mrb[0].mxu0
      %772 = vmatprep.mubr.bf16.mxu0 0
      %773 = vmatmul.mubr.bf16.gmra.mrb[0].mxu0 %v654
      %v774 = vpop.f32.mrb[0].mxu0
      %v775 = vadd.f32 0.0, %v774
      %v776 = vpop.f32.mrb[0].mxu0
      %v777 = vpop.f32.mrb[0].mxu0
      %v778 = vadd.f32 0.0, %v777
      %v779 = vpop.f32.mrb[0].mxu0
      %780 = vmatprep.mubr.bf16.mxu0 0
      %781 = vmatmul.mubr.bf16.gmra.mrb[0].mxu0 %v657
      %v782 = vpop.f32.mrb[0].mxu0
      %v783 = vadd.f32 0.0, %v782
      %v784 = vpop.f32.mrb[0].mxu0
      %v785 = vpop.f32.mrb[0].mxu0
      %v786 = vadd.f32 0.0, %v785
      %v787 = vpop.f32.mrb[0].mxu0
      %788 = vmatprep.mubr.bf16.mxu0 0
      %789 = vmatmul.mubr.bf16.gmra.mrb[0].mxu0 %v660
      %v790 = vpop.f32.mrb[0].mxu0
      %v791 = vadd.f32 0.0, %v790
      %v792 = vpop.f32.mrb[0].mxu0
      %v793 = vpop.f32.mrb[0].mxu0
      %v794 = vadd.f32 0.0, %v793
      %v795 = vpop.f32.mrb[0].mxu0
      %796 = vmatprep.mubr.bf16.mxu0 0
      %797 = vmatmul.mubr.bf16.gmra.mrb[0].mxu0 %v663
      %v798 = vpop.f32.mrb[0].mxu0
      %v799 = vadd.f32 0.0, %v798
      %v800 = vpop.f32.mrb[0].mxu0
      %v801 = vpop.f32.mrb[0].mxu0
      %v802 = vadd.f32 0.0, %v801
      %v803 = vpop.f32.mrb[0].mxu0
      %804 = vmatprep.mubr.bf16.mxu0 0
      %805 = vmatmul.mubr.bf16.gmra.mrb[0].mxu0 %v666
      %v806 = vpop.f32.mrb[0].mxu0
      %v807 = vadd.f32 0.0, %v806
      %v808 = vpop.f32.mrb[0].mxu0
      %v809 = vpop.f32.mrb[0].mxu0
      %v810 = vadd.f32 0.0, %v809
      %v811 = vpop.f32.mrb[0].mxu0
      %812 = vmatprep.mubr.bf16.mxu0 0
      %813 = vmatmul.mubr.bf16.gmra.mrb[0].mxu0 %v669
      %v814 = vpop.f32.mrb[0].mxu0
      %v815 = vadd.f32 0.0, %v814
      %v816 = vpop.f32.mrb[0].mxu0
      %v817 = vpop.f32.mrb[0].mxu0
      %v818 = vadd.f32 0.0, %v817
      %v819 = vpop.f32.mrb[0].mxu0
      %820 = vmatprep.mubr.bf16.mxu0 0
      %821 = vmatmul.mubr.bf16.gmra.mrb[0].mxu0 %v672
      %v822 = vpop.f32.mrb[0].mxu0
      %v823 = vadd.f32 0.0, %v822
      %v824 = vpop.f32.mrb[0].mxu0
      %v825 = vpop.f32.mrb[0].mxu0
      %v826 = vadd.f32 0.0, %v825
      %v827 = vpop.f32.mrb[0].mxu0
      %828 = vmatprep.mubr.bf16.mxu0 0
      %829 = vmatmul.mubr.bf16.gmra.mrb[0].mxu0 %v675
      %v830 = vpop.f32.mrb[0].mxu0
      %v831 = vadd.f32 0.0, %v830
      %v832 = vpop.f32.mrb[0].mxu0
      %v833 = vpop.f32.mrb[0].mxu0
      %v834 = vadd.f32 0.0, %v833
      %v835 = vpop.f32.mrb[0].mxu0
      %836 = vmatprep.mubr.bf16.mxu0 0
      %837 = vmatmul.mubr.bf16.gmra.mrb[0].mxu0 %v678
      %v838 = vpop.f32.mrb[0].mxu0
      %v839 = vadd.f32 0.0, %v838
      %v840 = vpop.f32.mrb[0].mxu0
      %v841 = vpop.f32.mrb[0].mxu0
      %v842 = vadd.f32 0.0, %v841
      %v843 = vpop.f32.mrb[0].mxu0
      %844 = vdwg.mxu0
      %v877 = vunpack.c.l.b16 %v145
      %v878 = vunpack.c.l.b16 %v146
      %v879 = vunpack.c.l.b16 %v147
      %v880 = vunpack.c.l.b16 %v148
      %v881 = vunpack.c.l.b16 %v149
      %v882 = vunpack.c.l.b16 %v150
      %v883 = vunpack.c.l.b16 %v151
      %v884 = vunpack.c.l.b16 %v152
      %v885 = vunpack.c.l.b16 %v153
      %v886 = vunpack.c.l.b16 %v154
      %v887 = vunpack.c.l.b16 %v155
      %v888 = vunpack.c.l.b16 %v156
      %v889 = vunpack.c.l.b16 %v157
      %v890 = vunpack.c.l.b16 %v158
      %v891 = vunpack.c.l.b16 %v159
      %v892 = vunpack.c.l.b16 %v160
      %v893 = vunpack.c.l.b16 %v161
      %v894 = vunpack.c.l.b16 %v162
      %v895 = vunpack.c.l.b16 %v163
      %v896 = vunpack.c.l.b16 %v164
      %v897 = vunpack.c.l.b16 %v165
      %v898 = vunpack.c.l.b16 %v166
      %v899 = vunpack.c.l.b16 %v167
      %v900 = vunpack.c.l.b16 %v168
      %v901 = vunpack.c.l.b16 %v169
      %v902 = vunpack.c.l.b16 %v170
      %v903 = vunpack.c.l.b16 %v171
      %v904 = vunpack.c.l.b16 %v172
      %v905 = vunpack.c.l.b16 %v173
      %v906 = vunpack.c.l.b16 %v174
      %v907 = vunpack.c.l.b16 %v175
      %v908 = vunpack.c.l.b16 %v176
      %v909 = vpack.c.b16 %v878, %v877
      %v910 = vpack.c.b16 %v880, %v879
      %v911 = vpack.c.b16 %v882, %v881
      %v912 = vpack.c.b16 %v884, %v883
      %v913 = vpack.c.b16 %v886, %v885
      %v914 = vpack.c.b16 %v888, %v887
      %v915 = vpack.c.b16 %v890, %v889
      %v916 = vpack.c.b16 %v892, %v891
      %v917 = vpack.c.b16 %v894, %v893
      %v918 = vpack.c.b16 %v896, %v895
      %v919 = vpack.c.b16 %v898, %v897
      %v920 = vpack.c.b16 %v900, %v899
      %v921 = vpack.c.b16 %v902, %v901
      %v922 = vpack.c.b16 %v904, %v903
      %v923 = vpack.c.b16 %v906, %v905
      %v924 = vpack.c.b16 %v908, %v907
      %v926 = vsel %vm631, %v909, 0
      %v929 = vsel %vm631, %v910, 0
      %v932 = vsel %vm631, %v911, 0
      %v935 = vsel %vm631, %v912, 0
      %v938 = vsel %vm631, %v913, 0
      %v941 = vsel %vm631, %v914, 0
      %v944 = vsel %vm631, %v915, 0
      %v947 = vsel %vm631, %v916, 0
      %v950 = vsel %vm631, %v917, 0
      %v953 = vsel %vm631, %v918, 0
      %v956 = vsel %vm631, %v919, 0
      %v959 = vsel %vm631, %v920, 0
      %v962 = vsel %vm631, %v921, 0
      %v965 = vsel %vm631, %v922, 0
      %v968 = vsel %vm631, %v923, 0
      %v971 = vsel %vm631, %v924, 0
      %v974 = vsel %vm680, %v177, 0
      %976 = vmatprep.subr.bf16.mxu0 0
      %977 = vmatpush1.bf16.msra.mxu0 %v974
      %978 = vmatprep.subr.bf16.mxu0 0
      %979 = vmatpush1.bf16.msra.mxu0 0
      %980 = vmatprep.subr.bf16.mxu0 0
      %981 = vmatpush1.bf16.msra.mxu0 0
      %982 = vmatprep.subr.bf16.mxu0 0
      %983 = vmatpush1.bf16.msra.mxu0 0
      %984 = vmatprep.subr.bf16.mxu0 0
      %985 = vmatpush1.bf16.msra.mxu0 0
      %986 = vmatprep.subr.bf16.mxu0 0
      %987 = vmatpush1.bf16.msra.mxu0 0
      %988 = vmatprep.subr.bf16.mxu0 0
      %989 = vmatpush1.bf16.msra.mxu0 0
      %990 = vmatprep.subr.bf16.mxu0 0
      %991 = vmatpush1.bf16.msra.mxu0 0
      %992 = vmatprep.subr.bf16.mxu0 0
      %993 = vmatpush1.bf16.msra.mxu0 0
      %994 = vmatprep.subr.bf16.mxu0 0
      %995 = vmatpush1.bf16.msra.mxu0 0
      %996 = vmatprep.subr.bf16.mxu0 0
      %997 = vmatpush1.bf16.msra.mxu0 0
      %998 = vmatprep.subr.bf16.mxu0 0
      %999 = vmatpush1.bf16.msra.mxu0 0
      %1000 = vmatprep.subr.bf16.mxu0 0
      %1001 = vmatpush1.bf16.msra.mxu0 0
      %1002 = vmatprep.subr.bf16.mxu0 0
      %1003 = vmatpush1.bf16.msra.mxu0 0
      %1004 = vmatprep.subr.bf16.mxu0 0
      %1005 = vmatpush1.bf16.msra.mxu0 0
      %1006 = vmatprep.subr.bf16.mxu0 0
      %1007 = vmatpush1.bf16.msra.mxu0 0
      %1008 = vmatprep.mubr.bf16.mxu0 0
      %1009 = vmatmul.mubr.bf16.gmra.mrb[0].mxu0 %v926
      %v1010 = vpop.f32.mrb[0].mxu0
      %v1011 = vadd.f32 %v719, %v1010
      %v1012 = vpop.f32.mrb[0].mxu0
      %v1013 = vpop.f32.mrb[0].mxu0
      %v1014 = vadd.f32 %v722, %v1013
      %v1015 = vpop.f32.mrb[0].mxu0
      %1016 = vmatprep.mubr.bf16.mxu0 0
      %1017 = vmatmul.mubr.bf16.gmra.mrb[0].mxu0 %v929
      %v1018 = vpop.f32.mrb[0].mxu0
      %v1019 = vadd.f32 %v727, %v1018
      %v1020 = vpop.f32.mrb[0].mxu0
      %v1021 = vpop.f32.mrb[0].mxu0
      %v1022 = vadd.f32 %v730, %v1021
      %v1023 = vpop.f32.mrb[0].mxu0
      %1024 = vmatprep.mubr.bf16.mxu0 0
      %1025 = vmatmul.mubr.bf16.gmra.mrb[0].mxu0 %v932
      %v1026 = vpop.f32.mrb[0].mxu0
      %v1027 = vadd.f32 %v735, %v1026
      %v1028 = vpop.f32.mrb[0].mxu0
      %v1029 = vpop.f32.mrb[0].mxu0
      %v1030 = vadd.f32 %v738, %v1029
      %v1031 = vpop.f32.mrb[0].mxu0
      %1032 = vmatprep.mubr.bf16.mxu0 0
      %1033 = vmatmul.mubr.bf16.gmra.mrb[0].mxu0 %v935
      %v1034 = vpop.f32.mrb[0].mxu0
      %v1035 = vadd.f32 %v743, %v1034
      %v1036 = vpop.f32.mrb[0].mxu0
      %v1037 = vpop.f32.mrb[0].mxu0
      %v1038 = vadd.f32 %v746, %v1037
      %v1039 = vpop.f32.mrb[0].mxu0
      %1040 = vmatprep.mubr.bf16.mxu0 0
      %1041 = vmatmul.mubr.bf16.gmra.mrb[0].mxu0 %v938
      %v1042 = vpop.f32.mrb[0].mxu0
      %v1043 = vadd.f32 %v751, %v1042
      %v1044 = vpop.f32.mrb[0].mxu0
      %v1045 = vpop.f32.mrb[0].mxu0
      %v1046 = vadd.f32 %v754, %v1045
      %v1047 = vpop.f32.mrb[0].mxu0
      %1048 = vmatprep.mubr.bf16.mxu0 0
      %1049 = vmatmul.mubr.bf16.gmra.mrb[0].mxu0 %v941
      %v1050 = vpop.f32.mrb[0].mxu0
      %v1051 = vadd.f32 %v759, %v1050
      %v1052 = vpop.f32.mrb[0].mxu0
      %v1053 = vpop.f32.mrb[0].mxu0
      %v1054 = vadd.f32 %v762, %v1053
      %v1055 = vpop.f32.mrb[0].mxu0
      %1056 = vmatprep.mubr.bf16.mxu0 0
      %1057 = vmatmul.mubr.bf16.gmra.mrb[0].mxu0 %v944
      %v1058 = vpop.f32.mrb[0].mxu0
      %v1059 = vadd.f32 %v767, %v1058
      %v1060 = vpop.f32.mrb[0].mxu0
      %v1061 = vpop.f32.mrb[0].mxu0
      %v1062 = vadd.f32 %v770, %v1061
      %v1063 = vpop.f32.mrb[0].mxu0
      %1064 = vmatprep.mubr.bf16.mxu0 0
      %1065 = vmatmul.mubr.bf16.gmra.mrb[0].mxu0 %v947
      %v1066 = vpop.f32.mrb[0].mxu0
      %v1067 = vadd.f32 %v775, %v1066
      %v1068 = vpop.f32.mrb[0].mxu0
      %v1069 = vpop.f32.mrb[0].mxu0
      %v1070 = vadd.f32 %v778, %v1069
      %v1071 = vpop.f32.mrb[0].mxu0
      %1072 = vmatprep.mubr.bf16.mxu0 0
      %1073 = vmatmul.mubr.bf16.gmra.mrb[0].mxu0 %v950
      %v1074 = vpop.f32.mrb[0].mxu0
      %v1075 = vadd.f32 %v783, %v1074
      %v1076 = vpop.f32.mrb[0].mxu0
      %v1077 = vpop.f32.mrb[0].mxu0
      %v1078 = vadd.f32 %v786, %v1077
      %v1079 = vpop.f32.mrb[0].mxu0
      %1080 = vmatprep.mubr.bf16.mxu0 0
      %1081 = vmatmul.mubr.bf16.gmra.mrb[0].mxu0 %v953
      %v1082 = vpop.f32.mrb[0].mxu0
      %v1083 = vadd.f32 %v791, %v1082
      %v1084 = vpop.f32.mrb[0].mxu0
      %v1085 = vpop.f32.mrb[0].mxu0
      %v1086 = vadd.f32 %v794, %v1085
      %v1087 = vpop.f32.mrb[0].mxu0
      %1088 = vmatprep.mubr.bf16.mxu0 0
      %1089 = vmatmul.mubr.bf16.gmra.mrb[0].mxu0 %v956
      %v1090 = vpop.f32.mrb[0].mxu0
      %v1091 = vadd.f32 %v799, %v1090
      %v1092 = vpop.f32.mrb[0].mxu0
      %v1093 = vpop.f32.mrb[0].mxu0
      %v1094 = vadd.f32 %v802, %v1093
      %v1095 = vpop.f32.mrb[0].mxu0
      %1096 = vmatprep.mubr.bf16.mxu0 0
      %1097 = vmatmul.mubr.bf16.gmra.mrb[0].mxu0 %v959
      %v1098 = vpop.f32.mrb[0].mxu0
      %v1099 = vadd.f32 %v807, %v1098
      %v1100 = vpop.f32.mrb[0].mxu0
      %v1101 = vpop.f32.mrb[0].mxu0
      %v1102 = vadd.f32 %v810, %v1101
      %v1103 = vpop.f32.mrb[0].mxu0
      %1104 = vmatprep.mubr.bf16.mxu0 0
      %1105 = vmatmul.mubr.bf16.gmra.mrb[0].mxu0 %v962
      %v1106 = vpop.f32.mrb[0].mxu0
      %v1107 = vadd.f32 %v815, %v1106
      %v1108 = vpop.f32.mrb[0].mxu0
      %v1109 = vpop.f32.mrb[0].mxu0
      %v1110 = vadd.f32 %v818, %v1109
      %v1111 = vpop.f32.mrb[0].mxu0
      %1112 = vmatprep.mubr.bf16.mxu0 0
      %1113 = vmatmul.mubr.bf16.gmra.mrb[0].mxu0 %v965
      %v1114 = vpop.f32.mrb[0].mxu0
      %v1115 = vadd.f32 %v823, %v1114
      %v1116 = vpop.f32.mrb[0].mxu0
      %v1117 = vpop.f32.mrb[0].mxu0
      %v1118 = vadd.f32 %v826, %v1117
      %v1119 = vpop.f32.mrb[0].mxu0
      %1120 = vmatprep.mubr.bf16.mxu0 0
      %1121 = vmatmul.mubr.bf16.gmra.mrb[0].mxu0 %v968
      %v1122 = vpop.f32.mrb[0].mxu0
      %v1123 = vadd.f32 %v831, %v1122
      %v1124 = vpop.f32.mrb[0].mxu0
      %v1125 = vpop.f32.mrb[0].mxu0
      %v1126 = vadd.f32 %v834, %v1125
      %v1127 = vpop.f32.mrb[0].mxu0
      %1128 = vmatprep.mubr.bf16.mxu0 0
      %1129 = vmatmul.mubr.bf16.gmra.mrb[0].mxu0 %v971
      %v1130 = vpop.f32.mrb[0].mxu0
      %v1131 = vadd.f32 %v839, %v1130
      %v1132 = vpop.f32.mrb[0].mxu0
      %v1133 = vpop.f32.mrb[0].mxu0
      %v1134 = vadd.f32 %v842, %v1133
      %v1135 = vpop.f32.mrb[0].mxu0
      %1136 = vdwg.mxu0
      %v1137 = vld [vmem:[%s138] sm:$0xe]
      %v1138 = vld [vmem:[%s138 + $0xc] sm:$0xe]
      %v1139 = vld [vmem:[%s138 + $0x18] sm:$0xe]
      %v1140 = vld [vmem:[%s138 + $0x24] sm:$0xe]
      %v1141 = vld [vmem:[%s138 + $0x30] sm:$0xe]
      %v1142 = vld [vmem:[%s138 + $0x3c] sm:$0xe]
      %v1143 = vld [vmem:[%s138 + $0x48] sm:$0xe]
      %v1144 = vld [vmem:[%s138 + $0x54] sm:$0xe]
      %v1145 = vld [vmem:[%s138 + $0x60] sm:$0xe]
      %v1146 = vld [vmem:[%s138 + $0x6c] sm:$0xe]
      %v1147 = vld [vmem:[%s138 + $0x78] sm:$0xe]
      %v1148 = vld [vmem:[%s138 + $0x84] sm:$0xe]
      %v1149 = vld [vmem:[%s138 + $0x90] sm:$0xe]
      %v1150 = vld [vmem:[%s138 + $0x9c] sm:$0xe]
      %v1151 = vld [vmem:[%s138 + $0xa8] sm:$0xe]
      %v1152 = vld [vmem:[%s138 + $0xb4] sm:$0xe]
      %vm1185 = vcmask 1042432
      %vm1186 = vcmask 1046532
      %vm1187 = vmor %vm1185, %vm1186
      %v1188 = vrot.slane %v1137, 5
      %v1189 = vrot.slane %v1188, 4
      %v1190 = vrot.slane %v146, 5
      %v1191 = vsel %vm1187, %v1189, %v1190
      %v1192 = vrot.slane %v1190, 4
      %v1193 = vrot.slane %v178, 5
      %v1194 = vsel %vm1187, %v1192, %v1193
      %v1195 = vrot.slane %v1138, 5
      %v1196 = vrot.slane %v1195, 4
      %v1197 = vrot.slane %v148, 5
      %v1198 = vsel %vm1187, %v1196, %v1197
      %v1199 = vrot.slane %v1197, 4
      %v1200 = vrot.slane %v179, 5
      %v1201 = vsel %vm1187, %v1199, %v1200
      %v1202 = vrot.slane %v1139, 5
      %v1203 = vrot.slane %v1202, 4
      %v1204 = vrot.slane %v150, 5
      %v1205 = vsel %vm1187, %v1203, %v1204
      %v1206 = vrot.slane %v1204, 4
      %v1207 = vrot.slane %v180, 5
      %v1208 = vsel %vm1187, %v1206, %v1207
      %v1209 = vrot.slane %v1140, 5
      %v1210 = vrot.slane %v1209, 4
      %v1211 = vrot.slane %v152, 5
      %v1212 = vsel %vm1187, %v1210, %v1211
      %v1213 = vrot.slane %v1211, 4
      %v1214 = vrot.slane %v181, 5
      %v1215 = vsel %vm1187, %v1213, %v1214
      %v1216 = vrot.slane %v1141, 5
      %v1217 = vrot.slane %v1216, 4
      %v1218 = vrot.slane %v154, 5
      %v1219 = vsel %vm1187, %v1217, %v1218
      %v1220 = vrot.slane %v1218, 4
      %v1221 = vrot.slane %v182, 5
      %v1222 = vsel %vm1187, %v1220, %v1221
      %v1223 = vrot.slane %v1142, 5
      %v1224 = vrot.slane %v1223, 4
      %v1225 = vrot.slane %v156, 5
      %v1226 = vsel %vm1187, %v1224, %v1225
      %v1227 = vrot.slane %v1225, 4
      %v1228 = vrot.slane %v183, 5
      %v1229 = vsel %vm1187, %v1227, %v1228
      %v1230 = vrot.slane %v1143, 5
      %v1231 = vrot.slane %v1230, 4
      %v1232 = vrot.slane %v158, 5
      %v1233 = vsel %vm1187, %v1231, %v1232
      %v1234 = vrot.slane %v1232, 4
      %v1235 = vrot.slane %v184, 5
      %v1236 = vsel %vm1187, %v1234, %v1235
      %v1237 = vrot.slane %v1144, 5
      %v1238 = vrot.slane %v1237, 4
      %v1239 = vrot.slane %v160, 5
      %v1240 = vsel %vm1187, %v1238, %v1239
      %v1241 = vrot.slane %v1239, 4
      %v1242 = vrot.slane %v185, 5
      %v1243 = vsel %vm1187, %v1241, %v1242
      %v1244 = vrot.slane %v1145, 5
      %v1245 = vrot.slane %v1244, 4
      %v1246 = vrot.slane %v162, 5
      %v1247 = vsel %vm1187, %v1245, %v1246
      %v1248 = vrot.slane %v1246, 4
      %v1249 = vrot.slane %v186, 5
      %v1250 = vsel %vm1187, %v1248, %v1249
      %v1251 = vrot.slane %v1146, 5
      %v1252 = vrot.slane %v1251, 4
      %v1253 = vrot.slane %v164, 5
      %v1254 = vsel %vm1187, %v1252, %v1253
      %v1255 = vrot.slane %v1253, 4
      %v1256 = vrot.slane %v187, 5
      %v1257 = vsel %vm1187, %v1255, %v1256
      %v1258 = vrot.slane %v1147, 5
      %v1259 = vrot.slane %v1258, 4
      %v1260 = vrot.slane %v166, 5
      %v1261 = vsel %vm1187, %v1259, %v1260
      %v1262 = vrot.slane %v1260, 4
      %v1263 = vrot.slane %v188, 5
      %v1264 = vsel %vm1187, %v1262, %v1263
      %v1265 = vrot.slane %v1148, 5
      %v1266 = vrot.slane %v1265, 4
      %v1267 = vrot.slane %v168, 5
      %v1268 = vsel %vm1187, %v1266, %v1267
      %v1269 = vrot.slane %v1267, 4
      %v1270 = vrot.slane %v189, 5
      %v1271 = vsel %vm1187, %v1269, %v1270
      %v1272 = vrot.slane %v1149, 5
      %v1273 = vrot.slane %v1272, 4
      %v1274 = vrot.slane %v170, 5
      %v1275 = vsel %vm1187, %v1273, %v1274
      %v1276 = vrot.slane %v1274, 4
      %v1277 = vrot.slane %v190, 5
      %v1278 = vsel %vm1187, %v1276, %v1277
      %v1279 = vrot.slane %v1150, 5
      %v1280 = vrot.slane %v1279, 4
      %v1281 = vrot.slane %v172, 5
      %v1282 = vsel %vm1187, %v1280, %v1281
      %v1283 = vrot.slane %v1281, 4
      %v1284 = vrot.slane %v191, 5
      %v1285 = vsel %vm1187, %v1283, %v1284
      %v1286 = vrot.slane %v1151, 5
      %v1287 = vrot.slane %v1286, 4
      %v1288 = vrot.slane %v174, 5
      %v1289 = vsel %vm1187, %v1287, %v1288
      %v1290 = vrot.slane %v1288, 4
      %v1291 = vrot.slane %v192, 5
      %v1292 = vsel %vm1187, %v1290, %v1291
      %v1293 = vrot.slane %v1152, 5
      %v1294 = vrot.slane %v1293, 4
      %v1295 = vrot.slane %v176, 5
      %v1296 = vsel %vm1187, %v1294, %v1295
      %v1297 = vrot.slane %v1295, 4
      %v1298 = vrot.slane %v193, 5
      %v1299 = vsel %vm1187, %v1297, %v1298
      %s1300 = scalar_lea.vmem %s1, 4
      %v1301 = vld [vmem:[%s1300] sm:$0x3]
      %v1302 = vunpack.c.l.b16 %v1191
      %v1303 = vunpack.c.l.b16 %v1194
      %v1304 = vunpack.c.l.b16 %v1198
      %v1305 = vunpack.c.l.b16 %v1201
      %v1306 = vunpack.c.l.b16 %v1205
      %v1307 = vunpack.c.l.b16 %v1208
      %v1308 = vunpack.c.l.b16 %v1212
      %v1309 = vunpack.c.l.b16 %v1215
      %v1310 = vunpack.c.l.b16 %v1219
      %v1311 = vunpack.c.l.b16 %v1222
      %v1312 = vunpack.c.l.b16 %v1226
      %v1313 = vunpack.c.l.b16 %v1229
      %v1314 = vunpack.c.l.b16 %v1233
      %v1315 = vunpack.c.l.b16 %v1236
      %v1316 = vunpack.c.l.b16 %v1240
      %v1317 = vunpack.c.l.b16 %v1243
      %v1318 = vunpack.c.l.b16 %v1247
      %v1319 = vunpack.c.l.b16 %v1250
      %v1320 = vunpack.c.l.b16 %v1254
      %v1321 = vunpack.c.l.b16 %v1257
      %v1322 = vunpack.c.l.b16 %v1261
      %v1323 = vunpack.c.l.b16 %v1264
      %v1324 = vunpack.c.l.b16 %v1268
      %v1325 = vunpack.c.l.b16 %v1271
      %v1326 = vunpack.c.l.b16 %v1275
      %v1327 = vunpack.c.l.b16 %v1278
      %v1328 = vunpack.c.l.b16 %v1282
      %v1329 = vunpack.c.l.b16 %v1285
      %v1330 = vunpack.c.l.b16 %v1289
      %v1331 = vunpack.c.l.b16 %v1292
      %v1332 = vunpack.c.l.b16 %v1296
      %v1333 = vunpack.c.l.b16 %v1299
      %v1334 = vpack.c.b16 %v1303, %v1302
      %v1335 = vpack.c.b16 %v1305, %v1304
      %v1336 = vpack.c.b16 %v1307, %v1306
      %v1337 = vpack.c.b16 %v1309, %v1308
      %v1338 = vpack.c.b16 %v1311, %v1310
      %v1339 = vpack.c.b16 %v1313, %v1312
      %v1340 = vpack.c.b16 %v1315, %v1314
      %v1341 = vpack.c.b16 %v1317, %v1316
      %v1342 = vpack.c.b16 %v1319, %v1318
      %v1343 = vpack.c.b16 %v1321, %v1320
      %v1344 = vpack.c.b16 %v1323, %v1322
      %v1345 = vpack.c.b16 %v1325, %v1324
      %v1346 = vpack.c.b16 %v1327, %v1326
      %v1347 = vpack.c.b16 %v1329, %v1328
      %v1348 = vpack.c.b16 %v1331, %v1330
      %v1349 = vpack.c.b16 %v1333, %v1332
      %v1351 = vsel %vm631, %v1334, 0
      %v1354 = vsel %vm631, %v1335, 0
      %v1357 = vsel %vm631, %v1336, 0
      %v1360 = vsel %vm631, %v1337, 0
      %v1363 = vsel %vm631, %v1338, 0
      %v1366 = vsel %vm631, %v1339, 0
      %v1369 = vsel %vm631, %v1340, 0
      %v1372 = vsel %vm631, %v1341, 0
      %v1375 = vsel %vm631, %v1342, 0
      %v1378 = vsel %vm631, %v1343, 0
      %v1381 = vsel %vm631, %v1344, 0
      %v1384 = vsel %vm631, %v1345, 0
      %v1387 = vsel %vm631, %v1346, 0
      %v1390 = vsel %vm631, %v1347, 0
      %v1393 = vsel %vm631, %v1348, 0
      %v1396 = vsel %vm631, %v1349, 0
      %v1399 = vsel %vm680, %v1301, 0
      %1401 = vmatprep.subr.bf16.mxu0 0
      %1402 = vmatpush1.bf16.msra.mxu0 %v1399
      %1403 = vmatprep.subr.bf16.mxu0 0
      %1404 = vmatpush1.bf16.msra.mxu0 0
      %1405 = vmatprep.subr.bf16.mxu0 0
      %1406 = vmatpush1.bf16.msra.mxu0 0
      %1407 = vmatprep.subr.bf16.mxu0 0
      %1408 = vmatpush1.bf16.msra.mxu0 0
      %1409 = vmatprep.subr.bf16.mxu0 0
      %1410 = vmatpush1.bf16.msra.mxu0 0
      %1411 = vmatprep.subr.bf16.mxu0 0
      %1412 = vmatpush1.bf16.msra.mxu0 0
      %1413 = vmatprep.subr.bf16.mxu0 0
      %1414 = vmatpush1.bf16.msra.mxu0 0
      %1415 = vmatprep.subr.bf16.mxu0 0
      %1416 = vmatpush1.bf16.msra.mxu0 0
      %1417 = vmatprep.subr.bf16.mxu0 0
      %1418 = vmatpush1.bf16.msra.mxu0 0
      %1419 = vmatprep.subr.bf16.mxu0 0
      %1420 = vmatpush1.bf16.msra.mxu0 0
      %1421 = vmatprep.subr.bf16.mxu0 0
      %1422 = vmatpush1.bf16.msra.mxu0 0
      %1423 = vmatprep.subr.bf16.mxu0 0
      %1424 = vmatpush1.bf16.msra.mxu0 0
      %1425 = vmatprep.subr.bf16.mxu0 0
      %1426 = vmatpush1.bf16.msra.mxu0 0
      %1427 = vmatprep.subr.bf16.mxu0 0
      %1428 = vmatpush1.bf16.msra.mxu0 0
      %1429 = vmatprep.subr.bf16.mxu0 0
      %1430 = vmatpush1.bf16.msra.mxu0 0
      %1431 = vmatprep.subr.bf16.mxu0 0
      %1432 = vmatpush1.bf16.msra.mxu0 0
      %1433 = vmatprep.mubr.bf16.mxu0 0
      %1434 = vmatmul.mubr.bf16.gmra.mrb[0].mxu0 %v1351
      %v1435 = vpop.f32.mrb[0].mxu0
      %v1436 = vadd.f32 0.0, %v1435
      %v1437 = vpop.f32.mrb[0].mxu0
      %v1438 = vpop.f32.mrb[0].mxu0
      %v1439 = vadd.f32 0.0, %v1438
      %v1440 = vpop.f32.mrb[0].mxu0
      %1441 = vmatprep.mubr.bf16.mxu0 0
      %1442 = vmatmul.mubr.bf16.gmra.mrb[0].mxu0 %v1354
      %v1443 = vpop.f32.mrb[0].mxu0
      %v1444 = vadd.f32 0.0, %v1443
      %v1445 = vpop.f32.mrb[0].mxu0
      %v1446 = vpop.f32.mrb[0].mxu0
      %v1447 = vadd.f32 0.0, %v1446
      %v1448 = vpop.f32.mrb[0].mxu0
      %1449 = vmatprep.mubr.bf16.mxu0 0
      %1450 = vmatmul.mubr.bf16.gmra.mrb[0].mxu0 %v1357
      %v1451 = vpop.f32.mrb[0].mxu0
      %v1452 = vadd.f32 0.0, %v1451
      %v1453 = vpop.f32.mrb[0].mxu0
      %v1454 = vpop.f32.mrb[0].mxu0
      %v1455 = vadd.f32 0.0, %v1454
      %v1456 = vpop.f32.mrb[0].mxu0
      %1457 = vmatprep.mubr.bf16.mxu0 0
      %1458 = vmatmul.mubr.bf16.gmra.mrb[0].mxu0 %v1360
      %v1459 = vpop.f32.mrb[0].mxu0
      %v1460 = vadd.f32 0.0, %v1459
      %v1461 = vpop.f32.mrb[0].mxu0
      %v1462 = vpop.f32.mrb[0].mxu0
      %v1463 = vadd.f32 0.0, %v1462
      %v1464 = vpop.f32.mrb[0].mxu0
      %1465 = vmatprep.mubr.bf16.mxu0 0
      %1466 = vmatmul.mubr.bf16.gmra.mrb[0].mxu0 %v1363
      %v1467 = vpop.f32.mrb[0].mxu0
      %v1468 = vadd.f32 0.0, %v1467
      %v1469 = vpop.f32.mrb[0].mxu0
      %v1470 = vpop.f32.mrb[0].mxu0
      %v1471 = vadd.f32 0.0, %v1470
      %v1472 = vpop.f32.mrb[0].mxu0
      %1473 = vmatprep.mubr.bf16.mxu0 0
      %1474 = vmatmul.mubr.bf16.gmra.mrb[0].mxu0 %v1366
      %v1475 = vpop.f32.mrb[0].mxu0
      %v1476 = vadd.f32 0.0, %v1475
      %v1477 = vpop.f32.mrb[0].mxu0
      %v1478 = vpop.f32.mrb[0].mxu0
      %v1479 = vadd.f32 0.0, %v1478
      %v1480 = vpop.f32.mrb[0].mxu0
      %1481 = vmatprep.mubr.bf16.mxu0 0
      %1482 = vmatmul.mubr.bf16.gmra.mrb[0].mxu0 %v1369
      %v1483 = vpop.f32.mrb[0].mxu0
      %v1484 = vadd.f32 0.0, %v1483
      %v1485 = vpop.f32.mrb[0].mxu0
      %v1486 = vpop.f32.mrb[0].mxu0
      %v1487 = vadd.f32 0.0, %v1486
      %v1488 = vpop.f32.mrb[0].mxu0
      %1489 = vmatprep.mubr.bf16.mxu0 0
      %1490 = vmatmul.mubr.bf16.gmra.mrb[0].mxu0 %v1372
      %v1491 = vpop.f32.mrb[0].mxu0
      %v1492 = vadd.f32 0.0, %v1491
      %v1493 = vpop.f32.mrb[0].mxu0
      %v1494 = vpop.f32.mrb[0].mxu0
      %v1495 = vadd.f32 0.0, %v1494
      %v1496 = vpop.f32.mrb[0].mxu0
      %1497 = vmatprep.mubr.bf16.mxu0 0
      %1498 = vmatmul.mubr.bf16.gmra.mrb[0].mxu0 %v1375
      %v1499 = vpop.f32.mrb[0].mxu0
      %v1500 = vadd.f32 0.0, %v1499
      %v1501 = vpop.f32.mrb[0].mxu0
      %v1502 = vpop.f32.mrb[0].mxu0
      %v1503 = vadd.f32 0.0, %v1502
      %v1504 = vpop.f32.mrb[0].mxu0
      %1505 = vmatprep.mubr.bf16.mxu0 0
      %1506 = vmatmul.mubr.bf16.gmra.mrb[0].mxu0 %v1378
      %v1507 = vpop.f32.mrb[0].mxu0
      %v1508 = vadd.f32 0.0, %v1507
      %v1509 = vpop.f32.mrb[0].mxu0
      %v1510 = vpop.f32.mrb[0].mxu0
      %v1511 = vadd.f32 0.0, %v1510
      %v1512 = vpop.f32.mrb[0].mxu0
      %1513 = vmatprep.mubr.bf16.mxu0 0
      %1514 = vmatmul.mubr.bf16.gmra.mrb[0].mxu0 %v1381
      %v1515 = vpop.f32.mrb[0].mxu0
      %v1516 = vadd.f32 0.0, %v1515
      %v1517 = vpop.f32.mrb[0].mxu0
      %v1518 = vpop.f32.mrb[0].mxu0
      %v1519 = vadd.f32 0.0, %v1518
      %v1520 = vpop.f32.mrb[0].mxu0
      %1521 = vmatprep.mubr.bf16.mxu0 0
      %1522 = vmatmul.mubr.bf16.gmra.mrb[0].mxu0 %v1384
      %v1523 = vpop.f32.mrb[0].mxu0
      %v1524 = vadd.f32 0.0, %v1523
      %v1525 = vpop.f32.mrb[0].mxu0
      %v1526 = vpop.f32.mrb[0].mxu0
      %v1527 = vadd.f32 0.0, %v1526
      %v1528 = vpop.f32.mrb[0].mxu0
      %1529 = vmatprep.mubr.bf16.mxu0 0
      %1530 = vmatmul.mubr.bf16.gmra.mrb[0].mxu0 %v1387
      %v1531 = vpop.f32.mrb[0].mxu0
      %v1532 = vadd.f32 0.0, %v1531
      %v1533 = vpop.f32.mrb[0].mxu0
      %v1534 = vpop.f32.mrb[0].mxu0
      %v1535 = vadd.f32 0.0, %v1534
      %v1536 = vpop.f32.mrb[0].mxu0
      %1537 = vmatprep.mubr.bf16.mxu0 0
      %1538 = vmatmul.mubr.bf16.gmra.mrb[0].mxu0 %v1390
      %v1539 = vpop.f32.mrb[0].mxu0
      %v1540 = vadd.f32 0.0, %v1539
      %v1541 = vpop.f32.mrb[0].mxu0
      %v1542 = vpop.f32.mrb[0].mxu0
      %v1543 = vadd.f32 0.0, %v1542
      %v1544 = vpop.f32.mrb[0].mxu0
      %1545 = vmatprep.mubr.bf16.mxu0 0
      %1546 = vmatmul.mubr.bf16.gmra.mrb[0].mxu0 %v1393
      %v1547 = vpop.f32.mrb[0].mxu0
      %v1548 = vadd.f32 0.0, %v1547
      %v1549 = vpop.f32.mrb[0].mxu0
      %v1550 = vpop.f32.mrb[0].mxu0
      %v1551 = vadd.f32 0.0, %v1550
      %v1552 = vpop.f32.mrb[0].mxu0
      %1553 = vmatprep.mubr.bf16.mxu0 0
      %1554 = vmatmul.mubr.bf16.gmra.mrb[0].mxu0 %v1396
      %v1555 = vpop.f32.mrb[0].mxu0
      %v1556 = vadd.f32 0.0, %v1555
      %v1557 = vpop.f32.mrb[0].mxu0
      %v1558 = vpop.f32.mrb[0].mxu0
      %v1559 = vadd.f32 0.0, %v1558
      %v1560 = vpop.f32.mrb[0].mxu0
      %1561 = vdwg.mxu0
      %v1562 = vadd.f32 %v1011, %v1436
      %v1563 = vadd.f32 %v1014, %v1439
      %v1564 = vadd.f32 %v1019, %v1444
      %v1565 = vadd.f32 %v1022, %v1447
      %v1566 = vadd.f32 %v1027, %v1452
      %v1567 = vadd.f32 %v1030, %v1455
      %v1568 = vadd.f32 %v1035, %v1460
      %v1569 = vadd.f32 %v1038, %v1463
      %v1570 = vadd.f32 %v1043, %v1468
      %v1571 = vadd.f32 %v1046, %v1471
      %v1572 = vadd.f32 %v1051, %v1476
      %v1573 = vadd.f32 %v1054, %v1479
      %v1574 = vadd.f32 %v1059, %v1484
      %v1575 = vadd.f32 %v1062, %v1487
      %v1576 = vadd.f32 %v1067, %v1492
      %v1577 = vadd.f32 %v1070, %v1495
      %v1578 = vadd.f32 %v1075, %v1500
      %v1579 = vadd.f32 %v1078, %v1503
      %v1580 = vadd.f32 %v1083, %v1508
      %v1581 = vadd.f32 %v1086, %v1511
      %v1582 = vadd.f32 %v1091, %v1516
      %v1583 = vadd.f32 %v1094, %v1519
      %v1584 = vadd.f32 %v1099, %v1524
      %v1585 = vadd.f32 %v1102, %v1527
      %v1586 = vadd.f32 %v1107, %v1532
      %v1587 = vadd.f32 %v1110, %v1535
      %v1588 = vadd.f32 %v1115, %v1540
      %v1589 = vadd.f32 %v1118, %v1543
      %v1590 = vadd.f32 %v1123, %v1548
      %v1591 = vadd.f32 %v1126, %v1551
      %v1592 = vadd.f32 %v1131, %v1556
      %v1593 = vadd.f32 %v1134, %v1559
      %s1594 = scalar_lea.vmem %s138, 12
      %v1595 = vld [vmem:[%s1594] sm:$0xf]
      %v1596 = vld [vmem:[%s1594 + $0x4] sm:$0xf]
      %v1597 = vld [vmem:[%s1594 + $0xc] sm:$0xf]
      %v1598 = vld [vmem:[%s1594 + $0x10] sm:$0xf]
      %v1599 = vld [vmem:[%s1594 + $0x18] sm:$0xf]
      %v1600 = vld [vmem:[%s1594 + $0x1c] sm:$0xf]
      %v1601 = vld [vmem:[%s1594 + $0x24] sm:$0xf]
      %v1602 = vld [vmem:[%s1594 + $0x28] sm:$0xf]
      %v1603 = vld [vmem:[%s1594 + $0x30] sm:$0xf]
      %v1604 = vld [vmem:[%s1594 + $0x34] sm:$0xf]
      %v1605 = vld [vmem:[%s1594 + $0x3c] sm:$0xf]
      %v1606 = vld [vmem:[%s1594 + $0x40] sm:$0xf]
      %v1607 = vld [vmem:[%s1594 + $0x48] sm:$0xf]
      %v1608 = vld [vmem:[%s1594 + $0x4c] sm:$0xf]
      %v1609 = vld [vmem:[%s1594 + $0x54] sm:$0xf]
      %v1610 = vld [vmem:[%s1594 + $0x58] sm:$0xf]
      %v1611 = vld [vmem:[%s1594 + $0x60] sm:$0xf]
      %v1612 = vld [vmem:[%s1594 + $0x64] sm:$0xf]
      %v1613 = vld [vmem:[%s1594 + $0x6c] sm:$0xf]
      %v1614 = vld [vmem:[%s1594 + $0x70] sm:$0xf]
      %v1615 = vld [vmem:[%s1594 + $0x78] sm:$0xf]
      %v1616 = vld [vmem:[%s1594 + $0x7c] sm:$0xf]
      %v1617 = vld [vmem:[%s1594 + $0x84] sm:$0xf]
      %v1618 = vld [vmem:[%s1594 + $0x88] sm:$0xf]
      %v1619 = vld [vmem:[%s1594 + $0x90] sm:$0xf]
      %v1620 = vld [vmem:[%s1594 + $0x94] sm:$0xf]
      %v1621 = vld [vmem:[%s1594 + $0x9c] sm:$0xf]
      %v1622 = vld [vmem:[%s1594 + $0xa0] sm:$0xf]
      %v1623 = vld [vmem:[%s1594 + $0xa8] sm:$0xf]
      %v1624 = vld [vmem:[%s1594 + $0xac] sm:$0xf]
      %v1625 = vld [vmem:[%s1594 + $0xb4] sm:$0xf]
      %v1626 = vld [vmem:[%s1594 + $0xb8] sm:$0xf]
      %s1627 = scalar_lea.vmem %s1, 6
      %v1628 = vld [vmem:[%s1627] sm:$0x3]
      %v1661 = vunpack.c.l.b16 %v1595
      %v1662 = vunpack.c.l.b16 %v1596
      %v1663 = vunpack.c.l.b16 %v1597
      %v1664 = vunpack.c.l.b16 %v1598
      %v1665 = vunpack.c.l.b16 %v1599
      %v1666 = vunpack.c.l.b16 %v1600
      %v1667 = vunpack.c.l.b16 %v1601
      %v1668 = vunpack.c.l.b16 %v1602
      %v1669 = vunpack.c.l.b16 %v1603
      %v1670 = vunpack.c.l.b16 %v1604
      %v1671 = vunpack.c.l.b16 %v1605
      %v1672 = vunpack.c.l.b16 %v1606
      %v1673 = vunpack.c.l.b16 %v1607
      %v1674 = vunpack.c.l.b16 %v1608
      %v1675 = vunpack.c.l.b16 %v1609
      %v1676 = vunpack.c.l.b16 %v1610
      %v1677 = vunpack.c.l.b16 %v1611
      %v1678 = vunpack.c.l.b16 %v1612
      %v1679 = vunpack.c.l.b16 %v1613
      %v1680 = vunpack.c.l.b16 %v1614
      %v1681 = vunpack.c.l.b16 %v1615
      %v1682 = vunpack.c.l.b16 %v1616
      %v1683 = vunpack.c.l.b16 %v1617
      %v1684 = vunpack.c.l.b16 %v1618
      %v1685 = vunpack.c.l.b16 %v1619
      %v1686 = vunpack.c.l.b16 %v1620
      %v1687 = vunpack.c.l.b16 %v1621
      %v1688 = vunpack.c.l.b16 %v1622
      %v1689 = vunpack.c.l.b16 %v1623
      %v1690 = vunpack.c.l.b16 %v1624
      %v1691 = vunpack.c.l.b16 %v1625
      %v1692 = vunpack.c.l.b16 %v1626
      %v1693 = vpack.c.b16 %v1662, %v1661
      %v1694 = vpack.c.b16 %v1664, %v1663
      %v1695 = vpack.c.b16 %v1666, %v1665
      %v1696 = vpack.c.b16 %v1668, %v1667
      %v1697 = vpack.c.b16 %v1670, %v1669
      %v1698 = vpack.c.b16 %v1672, %v1671
      %v1699 = vpack.c.b16 %v1674, %v1673
      %v1700 = vpack.c.b16 %v1676, %v1675
      %v1701 = vpack.c.b16 %v1678, %v1677
      %v1702 = vpack.c.b16 %v1680, %v1679
      %v1703 = vpack.c.b16 %v1682, %v1681
      %v1704 = vpack.c.b16 %v1684, %v1683
      %v1705 = vpack.c.b16 %v1686, %v1685
      %v1706 = vpack.c.b16 %v1688, %v1687
      %v1707 = vpack.c.b16 %v1690, %v1689
      %v1708 = vpack.c.b16 %v1692, %v1691
      %v1710 = vsel %vm631, %v1693, 0
      %v1713 = vsel %vm631, %v1694, 0
      %v1716 = vsel %vm631, %v1695, 0
      %v1719 = vsel %vm631, %v1696, 0
      %v1722 = vsel %vm631, %v1697, 0
      %v1725 = vsel %vm631, %v1698, 0
      %v1728 = vsel %vm631, %v1699, 0
      %v1731 = vsel %vm631, %v1700, 0
      %v1734 = vsel %vm631, %v1701, 0
      %v1737 = vsel %vm631, %v1702, 0
      %v1740 = vsel %vm631, %v1703, 0
      %v1743 = vsel %vm631, %v1704, 0
      %v1746 = vsel %vm631, %v1705, 0
      %v1749 = vsel %vm631, %v1706, 0
      %v1752 = vsel %vm631, %v1707, 0
      %v1755 = vsel %vm631, %v1708, 0
      %v1758 = vsel %vm680, %v1628, 0
      %1760 = vmatprep.subr.bf16.mxu0 0
      %1761 = vmatpush1.bf16.msra.mxu0 %v1758
      %1762 = vmatprep.subr.bf16.mxu0 0
      %1763 = vmatpush1.bf16.msra.mxu0 0
      %1764 = vmatprep.subr.bf16.mxu0 0
      %1765 = vmatpush1.bf16.msra.mxu0 0
      %1766 = vmatprep.subr.bf16.mxu0 0
      %1767 = vmatpush1.bf16.msra.mxu0 0
      %1768 = vmatprep.subr.bf16.mxu0 0
      %1769 = vmatpush1.bf16.msra.mxu0 0
      %1770 = vmatprep.subr.bf16.mxu0 0
      %1771 = vmatpush1.bf16.msra.mxu0 0
      %1772 = vmatprep.subr.bf16.mxu0 0
      %1773 = vmatpush1.bf16.msra.mxu0 0
      %1774 = vmatprep.subr.bf16.mxu0 0
      %1775 = vmatpush1.bf16.msra.mxu0 0
      %1776 = vmatprep.subr.bf16.mxu0 0
      %1777 = vmatpush1.bf16.msra.mxu0 0
      %1778 = vmatprep.subr.bf16.mxu0 0
      %1779 = vmatpush1.bf16.msra.mxu0 0
      %1780 = vmatprep.subr.bf16.mxu0 0
      %1781 = vmatpush1.bf16.msra.mxu0 0
      %1782 = vmatprep.subr.bf16.mxu0 0
      %1783 = vmatpush1.bf16.msra.mxu0 0
      %1784 = vmatprep.subr.bf16.mxu0 0
      %1785 = vmatpush1.bf16.msra.mxu0 0
      %1786 = vmatprep.subr.bf16.mxu0 0
      %1787 = vmatpush1.bf16.msra.mxu0 0
      %1788 = vmatprep.subr.bf16.mxu0 0
      %1789 = vmatpush1.bf16.msra.mxu0 0
      %1790 = vmatprep.subr.bf16.mxu0 0
      %1791 = vmatpush1.bf16.msra.mxu0 0
      %1792 = vmatprep.mubr.bf16.mxu0 0
      %1793 = vmatmul.mubr.bf16.gmra.mrb[0].mxu0 %v1710
      %v1794 = vpop.f32.mrb[0].mxu0
      %v1795 = vadd.f32 0.0, %v1794
      %v1796 = vpop.f32.mrb[0].mxu0
      %v1797 = vpop.f32.mrb[0].mxu0
      %v1798 = vadd.f32 0.0, %v1797
      %v1799 = vpop.f32.mrb[0].mxu0
      %1800 = vmatprep.mubr.bf16.mxu0 0
      %1801 = vmatmul.mubr.bf16.gmra.mrb[0].mxu0 %v1713
      %v1802 = vpop.f32.mrb[0].mxu0
      %v1803 = vadd.f32 0.0, %v1802
      %v1804 = vpop.f32.mrb[0].mxu0
      %v1805 = vpop.f32.mrb[0].mxu0
      %v1806 = vadd.f32 0.0, %v1805
      %v1807 = vpop.f32.mrb[0].mxu0
      %1808 = vmatprep.mubr.bf16.mxu0 0
      %1809 = vmatmul.mubr.bf16.gmra.mrb[0].mxu0 %v1716
      %v1810 = vpop.f32.mrb[0].mxu0
      %v1811 = vadd.f32 0.0, %v1810
      %v1812 = vpop.f32.mrb[0].mxu0
      %v1813 = vpop.f32.mrb[0].mxu0
      %v1814 = vadd.f32 0.0, %v1813
      %v1815 = vpop.f32.mrb[0].mxu0
      %1816 = vmatprep.mubr.bf16.mxu0 0
      %1817 = vmatmul.mubr.bf16.gmra.mrb[0].mxu0 %v1719
      %v1818 = vpop.f32.mrb[0].mxu0
      %v1819 = vadd.f32 0.0, %v1818
      %v1820 = vpop.f32.mrb[0].mxu0
      %v1821 = vpop.f32.mrb[0].mxu0
      %v1822 = vadd.f32 0.0, %v1821
      %v1823 = vpop.f32.mrb[0].mxu0
      %1824 = vmatprep.mubr.bf16.mxu0 0
      %1825 = vmatmul.mubr.bf16.gmra.mrb[0].mxu0 %v1722
      %v1826 = vpop.f32.mrb[0].mxu0
      %v1827 = vadd.f32 0.0, %v1826
      %v1828 = vpop.f32.mrb[0].mxu0
      %v1829 = vpop.f32.mrb[0].mxu0
      %v1830 = vadd.f32 0.0, %v1829
      %v1831 = vpop.f32.mrb[0].mxu0
      %1832 = vmatprep.mubr.bf16.mxu0 0
      %1833 = vmatmul.mubr.bf16.gmra.mrb[0].mxu0 %v1725
      %v1834 = vpop.f32.mrb[0].mxu0
      %v1835 = vadd.f32 0.0, %v1834
      %v1836 = vpop.f32.mrb[0].mxu0
      %v1837 = vpop.f32.mrb[0].mxu0
      %v1838 = vadd.f32 0.0, %v1837
      %v1839 = vpop.f32.mrb[0].mxu0
      %1840 = vmatprep.mubr.bf16.mxu0 0
      %1841 = vmatmul.mubr.bf16.gmra.mrb[0].mxu0 %v1728
      %v1842 = vpop.f32.mrb[0].mxu0
      %v1843 = vadd.f32 0.0, %v1842
      %v1844 = vpop.f32.mrb[0].mxu0
      %v1845 = vpop.f32.mrb[0].mxu0
      %v1846 = vadd.f32 0.0, %v1845
      %v1847 = vpop.f32.mrb[0].mxu0
      %1848 = vmatprep.mubr.bf16.mxu0 0
      %1849 = vmatmul.mubr.bf16.gmra.mrb[0].mxu0 %v1731
      %v1850 = vpop.f32.mrb[0].mxu0
      %v1851 = vadd.f32 0.0, %v1850
      %v1852 = vpop.f32.mrb[0].mxu0
      %v1853 = vpop.f32.mrb[0].mxu0
      %v1854 = vadd.f32 0.0, %v1853
      %v1855 = vpop.f32.mrb[0].mxu0
      %1856 = vmatprep.mubr.bf16.mxu0 0
      %1857 = vmatmul.mubr.bf16.gmra.mrb[0].mxu0 %v1734
      %v1858 = vpop.f32.mrb[0].mxu0
      %v1859 = vadd.f32 0.0, %v1858
      %v1860 = vpop.f32.mrb[0].mxu0
      %v1861 = vpop.f32.mrb[0].mxu0
      %v1862 = vadd.f32 0.0, %v1861
      %v1863 = vpop.f32.mrb[0].mxu0
      %1864 = vmatprep.mubr.bf16.mxu0 0
      %1865 = vmatmul.mubr.bf16.gmra.mrb[0].mxu0 %v1737
      %v1866 = vpop.f32.mrb[0].mxu0
      %v1867 = vadd.f32 0.0, %v1866
      %v1868 = vpop.f32.mrb[0].mxu0
      %v1869 = vpop.f32.mrb[0].mxu0
      %v1870 = vadd.f32 0.0, %v1869
      %v1871 = vpop.f32.mrb[0].mxu0
      %1872 = vmatprep.mubr.bf16.mxu0 0
      %1873 = vmatmul.mubr.bf16.gmra.mrb[0].mxu0 %v1740
      %v1874 = vpop.f32.mrb[0].mxu0
      %v1875 = vadd.f32 0.0, %v1874
      %v1876 = vpop.f32.mrb[0].mxu0
      %v1877 = vpop.f32.mrb[0].mxu0
      %v1878 = vadd.f32 0.0, %v1877
      %v1879 = vpop.f32.mrb[0].mxu0
      %1880 = vmatprep.mubr.bf16.mxu0 0
      %1881 = vmatmul.mubr.bf16.gmra.mrb[0].mxu0 %v1743
      %v1882 = vpop.f32.mrb[0].mxu0
      %v1883 = vadd.f32 0.0, %v1882
      %v1884 = vpop.f32.mrb[0].mxu0
      %v1885 = vpop.f32.mrb[0].mxu0
      %v1886 = vadd.f32 0.0, %v1885
      %v1887 = vpop.f32.mrb[0].mxu0
      %1888 = vmatprep.mubr.bf16.mxu0 0
      %1889 = vmatmul.mubr.bf16.gmra.mrb[0].mxu0 %v1746
      %v1890 = vpop.f32.mrb[0].mxu0
      %v1891 = vadd.f32 0.0, %v1890
      %v1892 = vpop.f32.mrb[0].mxu0
      %v1893 = vpop.f32.mrb[0].mxu0
      %v1894 = vadd.f32 0.0, %v1893
      %v1895 = vpop.f32.mrb[0].mxu0
      %1896 = vmatprep.mubr.bf16.mxu0 0
      %1897 = vmatmul.mubr.bf16.gmra.mrb[0].mxu0 %v1749
      %v1898 = vpop.f32.mrb[0].mxu0
      %v1899 = vadd.f32 0.0, %v1898
      %v1900 = vpop.f32.mrb[0].mxu0
      %v1901 = vpop.f32.mrb[0].mxu0
      %v1902 = vadd.f32 0.0, %v1901
      %v1903 = vpop.f32.mrb[0].mxu0
      %1904 = vmatprep.mubr.bf16.mxu0 0
      %1905 = vmatmul.mubr.bf16.gmra.mrb[0].mxu0 %v1752
      %v1906 = vpop.f32.mrb[0].mxu0
      %v1907 = vadd.f32 0.0, %v1906
      %v1908 = vpop.f32.mrb[0].mxu0
      %v1909 = vpop.f32.mrb[0].mxu0
      %v1910 = vadd.f32 0.0, %v1909
      %v1911 = vpop.f32.mrb[0].mxu0
      %1912 = vmatprep.mubr.bf16.mxu0 0
      %1913 = vmatmul.mubr.bf16.gmra.mrb[0].mxu0 %v1755
      %v1914 = vpop.f32.mrb[0].mxu0
      %v1915 = vadd.f32 0.0, %v1914
      %v1916 = vpop.f32.mrb[0].mxu0
      %v1917 = vpop.f32.mrb[0].mxu0
      %v1918 = vadd.f32 0.0, %v1917
      %v1919 = vpop.f32.mrb[0].mxu0
      %1920 = vdwg.mxu0
      %v1921 = vadd.f32 %v1562, %v1795
      %v1922 = vadd.f32 %v1563, %v1798
      %v1923 = vadd.f32 %v1564, %v1803
      %v1924 = vadd.f32 %v1565, %v1806
      %v1925 = vadd.f32 %v1566, %v1811
      %v1926 = vadd.f32 %v1567, %v1814
      %v1927 = vadd.f32 %v1568, %v1819
      %v1928 = vadd.f32 %v1569, %v1822
      %v1929 = vadd.f32 %v1570, %v1827
      %v1930 = vadd.f32 %v1571, %v1830
      %v1931 = vadd.f32 %v1572, %v1835
      %v1932 = vadd.f32 %v1573, %v1838
      %v1933 = vadd.f32 %v1574, %v1843
      %v1934 = vadd.f32 %v1575, %v1846
      %v1935 = vadd.f32 %v1576, %v1851
      %v1936 = vadd.f32 %v1577, %v1854
      %v1937 = vadd.f32 %v1578, %v1859
      %v1938 = vadd.f32 %v1579, %v1862
      %v1939 = vadd.f32 %v1580, %v1867
      %v1940 = vadd.f32 %v1581, %v1870
      %v1941 = vadd.f32 %v1582, %v1875
      %v1942 = vadd.f32 %v1583, %v1878
      %v1943 = vadd.f32 %v1584, %v1883
      %v1944 = vadd.f32 %v1585, %v1886
      %v1945 = vadd.f32 %v1586, %v1891
      %v1946 = vadd.f32 %v1587, %v1894
      %v1947 = vadd.f32 %v1588, %v1899
      %v1948 = vadd.f32 %v1589, %v1902
      %v1949 = vadd.f32 %v1590, %v1907
      %v1950 = vadd.f32 %v1591, %v1910
      %v1951 = vadd.f32 %v1592, %v1915
      %v1952 = vadd.f32 %v1593, %v1918
      %v1953 = vld [vmem:[%s1594] sm:$0xf]
      %v1954 = vld [vmem:[%s1594 + $0x4] sm:$0xf]
      %v1955 = vld [vmem:[%s1594 + $0x8] sm:$0x1]
      %v1956 = vld [vmem:[%s1594 + $0xc] sm:$0xf]
      %v1957 = vld [vmem:[%s1594 + $0x10] sm:$0xf]
      %v1958 = vld [vmem:[%s1594 + $0x14] sm:$0x1]
      %v1959 = vld [vmem:[%s1594 + $0x18] sm:$0xf]
      %v1960 = vld [vmem:[%s1594 + $0x1c] sm:$0xf]
      %v1961 = vld [vmem:[%s1594 + $0x20] sm:$0x1]
      %v1962 = vld [vmem:[%s1594 + $0x24] sm:$0xf]
      %v1963 = vld [vmem:[%s1594 + $0x28] sm:$0xf]
      %v1964 = vld [vmem:[%s1594 + $0x2c] sm:$0x1]
      %v1965 = vld [vmem:[%s1594 + $0x30] sm:$0xf]
      %v1966 = vld [vmem:[%s1594 + $0x34] sm:$0xf]
      %v1967 = vld [vmem:[%s1594 + $0x38] sm:$0x1]
      %v1968 = vld [vmem:[%s1594 + $0x3c] sm:$0xf]
      %v1969 = vld [vmem:[%s1594 + $0x40] sm:$0xf]
      %v1970 = vld [vmem:[%s1594 + $0x44] sm:$0x1]
      %v1971 = vld [vmem:[%s1594 + $0x48] sm:$0xf]
      %v1972 = vld [vmem:[%s1594 + $0x4c] sm:$0xf]
      %v1973 = vld [vmem:[%s1594 + $0x50] sm:$0x1]
      %v1974 = vld [vmem:[%s1594 + $0x54] sm:$0xf]
      %v1975 = vld [vmem:[%s1594 + $0x58] sm:$0xf]
      %v1976 = vld [vmem:[%s1594 + $0x5c] sm:$0x1]
      %v1977 = vld [vmem:[%s1594 + $0x60] sm:$0xf]
      %v1978 = vld [vmem:[%s1594 + $0x64] sm:$0xf]
      %v1979 = vld [vmem:[%s1594 + $0x68] sm:$0x1]
      %v1980 = vld [vmem:[%s1594 + $0x6c] sm:$0xf]
      %v1981 = vld [vmem:[%s1594 + $0x70] sm:$0xf]
      %v1982 = vld [vmem:[%s1594 + $0x74] sm:$0x1]
      %v1983 = vld [vmem:[%s1594 + $0x78] sm:$0xf]
      %v1984 = vld [vmem:[%s1594 + $0x7c] sm:$0xf]
      %v1985 = vld [vmem:[%s1594 + $0x80] sm:$0x1]
      %v1986 = vld [vmem:[%s1594 + $0x84] sm:$0xf]
      %v1987 = vld [vmem:[%s1594 + $0x88] sm:$0xf]
      %v1988 = vld [vmem:[%s1594 + $0x8c] sm:$0x1]
      %v1989 = vld [vmem:[%s1594 + $0x90] sm:$0xf]
      %v1990 = vld [vmem:[%s1594 + $0x94] sm:$0xf]
      %v1991 = vld [vmem:[%s1594 + $0x98] sm:$0x1]
      %v1992 = vld [vmem:[%s1594 + $0x9c] sm:$0xf]
      %v1993 = vld [vmem:[%s1594 + $0xa0] sm:$0xf]
      %v1994 = vld [vmem:[%s1594 + $0xa4] sm:$0x1]
      %v1995 = vld [vmem:[%s1594 + $0xa8] sm:$0xf]
      %v1996 = vld [vmem:[%s1594 + $0xac] sm:$0xf]
      %v1997 = vld [vmem:[%s1594 + $0xb0] sm:$0x1]
      %v1998 = vld [vmem:[%s1594 + $0xb4] sm:$0xf]
      %v1999 = vld [vmem:[%s1594 + $0xb8] sm:$0xf]
      %v2000 = vld [vmem:[%s1594 + $0xbc] sm:$0x1]
      %v2002 = vshrl.u32 %v1953, 16
      %v2004 = vrot.slane %v2002, 4
      %v2005 = vshll.u32 %v1953, 16
      %v2007 = vrot.slane %v2005, 5
      %v2008 = vor.u32 %v2004, %v2007
      %v2009 = vrot.slane %v2008, 4
      %v2011 = vshll.u32 %v1954, 16
      %v2013 = vrot.slane %v2011, 5
      %v2014 = vsel %vm196, %v2009, %v2013
      %v2015 = vshrl.u32 %v1954, 16
      %v2017 = vrot.slane %v2015, 4
      %v2018 = vor.u32 %v2017, %v2013
      %v2019 = vrot.slane %v2018, 4
      %v2021 = vshll.u32 %v1955, 16
      %v2023 = vrot.slane %v2021, 5
      %v2024 = vsel %vm196, %v2019, %v2023
      %v2026 = vshrl.u32 %v1956, 16
      %v2028 = vrot.slane %v2026, 4
      %v2029 = vshll.u32 %v1956, 16
      %v2031 = vrot.slane %v2029, 5
      %v2032 = vor.u32 %v2028, %v2031
      %v2033 = vrot.slane %v2032, 4
      %v2035 = vshll.u32 %v1957, 16
      %v2037 = vrot.slane %v2035, 5
      %v2038 = vsel %vm196, %v2033, %v2037
      %v2039 = vshrl.u32 %v1957, 16
      %v2041 = vrot.slane %v2039, 4
      %v2042 = vor.u32 %v2041, %v2037
      %v2043 = vrot.slane %v2042, 4
      %v2045 = vshll.u32 %v1958, 16
      %v2047 = vrot.slane %v2045, 5
      %v2048 = vsel %vm196, %v2043, %v2047
      %v2050 = vshrl.u32 %v1959, 16
      %v2052 = vrot.slane %v2050, 4
      %v2053 = vshll.u32 %v1959, 16
      %v2055 = vrot.slane %v2053, 5
      %v2056 = vor.u32 %v2052, %v2055
      %v2057 = vrot.slane %v2056, 4
      %v2059 = vshll.u32 %v1960, 16
      %v2061 = vrot.slane %v2059, 5
      %v2062 = vsel %vm196, %v2057, %v2061
      %v2063 = vshrl.u32 %v1960, 16
      %v2065 = vrot.slane %v2063, 4
      %v2066 = vor.u32 %v2065, %v2061
      %v2067 = vrot.slane %v2066, 4
      %v2069 = vshll.u32 %v1961, 16
      %v2071 = vrot.slane %v2069, 5
      %v2072 = vsel %vm196, %v2067, %v2071
      %v2074 = vshrl.u32 %v1962, 16
      %v2076 = vrot.slane %v2074, 4
      %v2077 = vshll.u32 %v1962, 16
      %v2079 = vrot.slane %v2077, 5
      %v2080 = vor.u32 %v2076, %v2079
      %v2081 = vrot.slane %v2080, 4
      %v2083 = vshll.u32 %v1963, 16
      %v2085 = vrot.slane %v2083, 5
      %v2086 = vsel %vm196, %v2081, %v2085
      %v2087 = vshrl.u32 %v1963, 16
      %v2089 = vrot.slane %v2087, 4
      %v2090 = vor.u32 %v2089, %v2085
      %v2091 = vrot.slane %v2090, 4
      %v2093 = vshll.u32 %v1964, 16
      %v2095 = vrot.slane %v2093, 5
      %v2096 = vsel %vm196, %v2091, %v2095
      %v2098 = vshrl.u32 %v1965, 16
      %v2100 = vrot.slane %v2098, 4
      %v2101 = vshll.u32 %v1965, 16
      %v2103 = vrot.slane %v2101, 5
      %v2104 = vor.u32 %v2100, %v2103
      %v2105 = vrot.slane %v2104, 4
      %v2107 = vshll.u32 %v1966, 16
      %v2109 = vrot.slane %v2107, 5
      %v2110 = vsel %vm196, %v2105, %v2109
      %v2111 = vshrl.u32 %v1966, 16
      %v2113 = vrot.slane %v2111, 4
      %v2114 = vor.u32 %v2113, %v2109
      %v2115 = vrot.slane %v2114, 4
      %v2117 = vshll.u32 %v1967, 16
      %v2119 = vrot.slane %v2117, 5
      %v2120 = vsel %vm196, %v2115, %v2119
      %v2122 = vshrl.u32 %v1968, 16
      %v2124 = vrot.slane %v2122, 4
      %v2125 = vshll.u32 %v1968, 16
      %v2127 = vrot.slane %v2125, 5
      %v2128 = vor.u32 %v2124, %v2127
      %v2129 = vrot.slane %v2128, 4
      %v2131 = vshll.u32 %v1969, 16
      %v2133 = vrot.slane %v2131, 5
      %v2134 = vsel %vm196, %v2129, %v2133
      %v2135 = vshrl.u32 %v1969, 16
      %v2137 = vrot.slane %v2135, 4
      %v2138 = vor.u32 %v2137, %v2133
      %v2139 = vrot.slane %v2138, 4
      %v2141 = vshll.u32 %v1970, 16
      %v2143 = vrot.slane %v2141, 5
      %v2144 = vsel %vm196, %v2139, %v2143
      %v2146 = vshrl.u32 %v1971, 16
      %v2148 = vrot.slane %v2146, 4
      %v2149 = vshll.u32 %v1971, 16
      %v2151 = vrot.slane %v2149, 5
      %v2152 = vor.u32 %v2148, %v2151
      %v2153 = vrot.slane %v2152, 4
      %v2155 = vshll.u32 %v1972, 16
      %v2157 = vrot.slane %v2155, 5
      %v2158 = vsel %vm196, %v2153, %v2157
      %v2159 = vshrl.u32 %v1972, 16
      %v2161 = vrot.slane %v2159, 4
      %v2162 = vor.u32 %v2161, %v2157
      %v2163 = vrot.slane %v2162, 4
      %v2165 = vshll.u32 %v1973, 16
      %v2167 = vrot.slane %v2165, 5
      %v2168 = vsel %vm196, %v2163, %v2167
      %v2170 = vshrl.u32 %v1974, 16
      %v2172 = vrot.slane %v2170, 4
      %v2173 = vshll.u32 %v1974, 16
      %v2175 = vrot.slane %v2173, 5
      %v2176 = vor.u32 %v2172, %v2175
      %v2177 = vrot.slane %v2176, 4
      %v2179 = vshll.u32 %v1975, 16
      %v2181 = vrot.slane %v2179, 5
      %v2182 = vsel %vm196, %v2177, %v2181
      %v2183 = vshrl.u32 %v1975, 16
      %v2185 = vrot.slane %v2183, 4
      %v2186 = vor.u32 %v2185, %v2181
      %v2187 = vrot.slane %v2186, 4
      %v2189 = vshll.u32 %v1976, 16
      %v2191 = vrot.slane %v2189, 5
      %v2192 = vsel %vm196, %v2187, %v2191
      %v2194 = vshrl.u32 %v1977, 16
      %v2196 = vrot.slane %v2194, 4
      %v2197 = vshll.u32 %v1977, 16
      %v2199 = vrot.slane %v2197, 5
      %v2200 = vor.u32 %v2196, %v2199
      %v2201 = vrot.slane %v2200, 4
      %v2203 = vshll.u32 %v1978, 16
      %v2205 = vrot.slane %v2203, 5
      %v2206 = vsel %vm196, %v2201, %v2205
      %v2207 = vshrl.u32 %v1978, 16
      %v2209 = vrot.slane %v2207, 4
      %v2210 = vor.u32 %v2209, %v2205
      %v2211 = vrot.slane %v2210, 4
      %v2213 = vshll.u32 %v1979, 16
      %v2215 = vrot.slane %v2213, 5
      %v2216 = vsel %vm196, %v2211, %v2215
      %v2218 = vshrl.u32 %v1980, 16
      %v2220 = vrot.slane %v2218, 4
      %v2221 = vshll.u32 %v1980, 16
      %v2223 = vrot.slane %v2221, 5
      %v2224 = vor.u32 %v2220, %v2223
      %v2225 = vrot.slane %v2224, 4
      %v2227 = vshll.u32 %v1981, 16
      %v2229 = vrot.slane %v2227, 5
      %v2230 = vsel %vm196, %v2225, %v2229
      %v2231 = vshrl.u32 %v1981, 16
      %v2233 = vrot.slane %v2231, 4
      %v2234 = vor.u32 %v2233, %v2229
      %v2235 = vrot.slane %v2234, 4
      %v2237 = vshll.u32 %v1982, 16
      %v2239 = vrot.slane %v2237, 5
      %v2240 = vsel %vm196, %v2235, %v2239
      %v2242 = vshrl.u32 %v1983, 16
      %v2244 = vrot.slane %v2242, 4
      %v2245 = vshll.u32 %v1983, 16
      %v2247 = vrot.slane %v2245, 5
      %v2248 = vor.u32 %v2244, %v2247
      %v2249 = vrot.slane %v2248, 4
      %v2251 = vshll.u32 %v1984, 16
      %v2253 = vrot.slane %v2251, 5
      %v2254 = vsel %vm196, %v2249, %v2253
      %v2255 = vshrl.u32 %v1984, 16
      %v2257 = vrot.slane %v2255, 4
      %v2258 = vor.u32 %v2257, %v2253
      %v2259 = vrot.slane %v2258, 4
      %v2261 = vshll.u32 %v1985, 16
      %v2263 = vrot.slane %v2261, 5
      %v2264 = vsel %vm196, %v2259, %v2263
      %v2266 = vshrl.u32 %v1986, 16
      %v2268 = vrot.slane %v2266, 4
      %v2269 = vshll.u32 %v1986, 16
      %v2271 = vrot.slane %v2269, 5
      %v2272 = vor.u32 %v2268, %v2271
      %v2273 = vrot.slane %v2272, 4
      %v2275 = vshll.u32 %v1987, 16
      %v2277 = vrot.slane %v2275, 5
      %v2278 = vsel %vm196, %v2273, %v2277
      %v2279 = vshrl.u32 %v1987, 16
      %v2281 = vrot.slane %v2279, 4
      %v2282 = vor.u32 %v2281, %v2277
      %v2283 = vrot.slane %v2282, 4
      %v2285 = vshll.u32 %v1988, 16
      %v2287 = vrot.slane %v2285, 5
      %v2288 = vsel %vm196, %v2283, %v2287
      %v2290 = vshrl.u32 %v1989, 16
      %v2292 = vrot.slane %v2290, 4
      %v2293 = vshll.u32 %v1989, 16
      %v2295 = vrot.slane %v2293, 5
      %v2296 = vor.u32 %v2292, %v2295
      %v2297 = vrot.slane %v2296, 4
      %v2299 = vshll.u32 %v1990, 16
      %v2301 = vrot.slane %v2299, 5
      %v2302 = vsel %vm196, %v2297, %v2301
      %v2303 = vshrl.u32 %v1990, 16
      %v2305 = vrot.slane %v2303, 4
      %v2306 = vor.u32 %v2305, %v2301
      %v2307 = vrot.slane %v2306, 4
      %v2309 = vshll.u32 %v1991, 16
      %v2311 = vrot.slane %v2309, 5
      %v2312 = vsel %vm196, %v2307, %v2311
      %v2314 = vshrl.u32 %v1992, 16
      %v2316 = vrot.slane %v2314, 4
      %v2317 = vshll.u32 %v1992, 16
      %v2319 = vrot.slane %v2317, 5
      %v2320 = vor.u32 %v2316, %v2319
      %v2321 = vrot.slane %v2320, 4
      %v2323 = vshll.u32 %v1993, 16
      %v2325 = vrot.slane %v2323, 5
      %v2326 = vsel %vm196, %v2321, %v2325
      %v2327 = vshrl.u32 %v1993, 16
      %v2329 = vrot.slane %v2327, 4
      %v2330 = vor.u32 %v2329, %v2325
      %v2331 = vrot.slane %v2330, 4
      %v2333 = vshll.u32 %v1994, 16
      %v2335 = vrot.slane %v2333, 5
      %v2336 = vsel %vm196, %v2331, %v2335
      %v2338 = vshrl.u32 %v1995, 16
      %v2340 = vrot.slane %v2338, 4
      %v2341 = vshll.u32 %v1995, 16
      %v2343 = vrot.slane %v2341, 5
      %v2344 = vor.u32 %v2340, %v2343
      %v2345 = vrot.slane %v2344, 4
      %v2347 = vshll.u32 %v1996, 16
      %v2349 = vrot.slane %v2347, 5
      %v2350 = vsel %vm196, %v2345, %v2349
      %v2351 = vshrl.u32 %v1996, 16
      %v2353 = vrot.slane %v2351, 4
      %v2354 = vor.u32 %v2353, %v2349
      %v2355 = vrot.slane %v2354, 4
      %v2357 = vshll.u32 %v1997, 16
      %v2359 = vrot.slane %v2357, 5
      %v2360 = vsel %vm196, %v2355, %v2359
      %v2362 = vshrl.u32 %v1998, 16
      %v2364 = vrot.slane %v2362, 4
      %v2365 = vshll.u32 %v1998, 16
      %v2367 = vrot.slane %v2365, 5
      %v2368 = vor.u32 %v2364, %v2367
      %v2369 = vrot.slane %v2368, 4
      %v2371 = vshll.u32 %v1999, 16
      %v2373 = vrot.slane %v2371, 5
      %v2374 = vsel %vm196, %v2369, %v2373
      %v2375 = vshrl.u32 %v1999, 16
      %v2377 = vrot.slane %v2375, 4
      %v2378 = vor.u32 %v2377, %v2373
      %v2379 = vrot.slane %v2378, 4
      %v2381 = vshll.u32 %v2000, 16
      %v2383 = vrot.slane %v2381, 5
      %v2384 = vsel %vm196, %v2379, %v2383
      %s2385 = scalar_lea.vmem %s1, 8
      %v2386 = vld [vmem:[%s2385] sm:$0x3]
      %v2387 = vunpack.c.l.b16 %v2014
      %v2388 = vunpack.c.l.b16 %v2024
      %v2389 = vunpack.c.l.b16 %v2038
      %v2390 = vunpack.c.l.b16 %v2048
      %v2391 = vunpack.c.l.b16 %v2062
      %v2392 = vunpack.c.l.b16 %v2072
      %v2393 = vunpack.c.l.b16 %v2086
      %v2394 = vunpack.c.l.b16 %v2096
      %v2395 = vunpack.c.l.b16 %v2110
      %v2396 = vunpack.c.l.b16 %v2120
      %v2397 = vunpack.c.l.b16 %v2134
      %v2398 = vunpack.c.l.b16 %v2144
      %v2399 = vunpack.c.l.b16 %v2158
      %v2400 = vunpack.c.l.b16 %v2168
      %v2401 = vunpack.c.l.b16 %v2182
      %v2402 = vunpack.c.l.b16 %v2192
      %v2403 = vunpack.c.l.b16 %v2206
      %v2404 = vunpack.c.l.b16 %v2216
      %v2405 = vunpack.c.l.b16 %v2230
      %v2406 = vunpack.c.l.b16 %v2240
      %v2407 = vunpack.c.l.b16 %v2254
      %v2408 = vunpack.c.l.b16 %v2264
      %v2409 = vunpack.c.l.b16 %v2278
      %v2410 = vunpack.c.l.b16 %v2288
      %v2411 = vunpack.c.l.b16 %v2302
      %v2412 = vunpack.c.l.b16 %v2312
      %v2413 = vunpack.c.l.b16 %v2326
      %v2414 = vunpack.c.l.b16 %v2336
      %v2415 = vunpack.c.l.b16 %v2350
      %v2416 = vunpack.c.l.b16 %v2360
      %v2417 = vunpack.c.l.b16 %v2374
      %v2418 = vunpack.c.l.b16 %v2384
      %v2419 = vpack.c.b16 %v2388, %v2387
      %v2420 = vpack.c.b16 %v2390, %v2389
      %v2421 = vpack.c.b16 %v2392, %v2391
      %v2422 = vpack.c.b16 %v2394, %v2393
      %v2423 = vpack.c.b16 %v2396, %v2395
      %v2424 = vpack.c.b16 %v2398, %v2397
      %v2425 = vpack.c.b16 %v2400, %v2399
      %v2426 = vpack.c.b16 %v2402, %v2401
      %v2427 = vpack.c.b16 %v2404, %v2403
      %v2428 = vpack.c.b16 %v2406, %v2405
      %v2429 = vpack.c.b16 %v2408, %v2407
      %v2430 = vpack.c.b16 %v2410, %v2409
      %v2431 = vpack.c.b16 %v2412, %v2411
      %v2432 = vpack.c.b16 %v2414, %v2413
      %v2433 = vpack.c.b16 %v2416, %v2415
      %v2434 = vpack.c.b16 %v2418, %v2417
      %v2436 = vsel %vm631, %v2419, 0
      %v2439 = vsel %vm631, %v2420, 0
      %v2442 = vsel %vm631, %v2421, 0
      %v2445 = vsel %vm631, %v2422, 0
      %v2448 = vsel %vm631, %v2423, 0
      %v2451 = vsel %vm631, %v2424, 0
      %v2454 = vsel %vm631, %v2425, 0
      %v2457 = vsel %vm631, %v2426, 0
      %v2460 = vsel %vm631, %v2427, 0
      %v2463 = vsel %vm631, %v2428, 0
      %v2466 = vsel %vm631, %v2429, 0
      %v2469 = vsel %vm631, %v2430, 0
      %v2472 = vsel %vm631, %v2431, 0
      %v2475 = vsel %vm631, %v2432, 0
      %v2478 = vsel %vm631, %v2433, 0
      %v2481 = vsel %vm631, %v2434, 0
      %v2484 = vsel %vm680, %v2386, 0
      %2486 = vmatprep.subr.bf16.mxu0 0
      %2487 = vmatpush1.bf16.msra.mxu0 %v2484
      %2488 = vmatprep.subr.bf16.mxu0 0
      %2489 = vmatpush1.bf16.msra.mxu0 0
      %2490 = vmatprep.subr.bf16.mxu0 0
      %2491 = vmatpush1.bf16.msra.mxu0 0
      %2492 = vmatprep.subr.bf16.mxu0 0
      %2493 = vmatpush1.bf16.msra.mxu0 0
      %2494 = vmatprep.subr.bf16.mxu0 0
      %2495 = vmatpush1.bf16.msra.mxu0 0
      %2496 = vmatprep.subr.bf16.mxu0 0
      %2497 = vmatpush1.bf16.msra.mxu0 0
      %2498 = vmatprep.subr.bf16.mxu0 0
      %2499 = vmatpush1.bf16.msra.mxu0 0
      %2500 = vmatprep.subr.bf16.mxu0 0
      %2501 = vmatpush1.bf16.msra.mxu0 0
      %2502 = vmatprep.subr.bf16.mxu0 0
      %2503 = vmatpush1.bf16.msra.mxu0 0
      %2504 = vmatprep.subr.bf16.mxu0 0
      %2505 = vmatpush1.bf16.msra.mxu0 0
      %2506 = vmatprep.subr.bf16.mxu0 0
      %2507 = vmatpush1.bf16.msra.mxu0 0
      %2508 = vmatprep.subr.bf16.mxu0 0
      %2509 = vmatpush1.bf16.msra.mxu0 0
      %2510 = vmatprep.subr.bf16.mxu0 0
      %2511 = vmatpush1.bf16.msra.mxu0 0
      %2512 = vmatprep.subr.bf16.mxu0 0
      %2513 = vmatpush1.bf16.msra.mxu0 0
      %2514 = vmatprep.subr.bf16.mxu0 0
      %2515 = vmatpush1.bf16.msra.mxu0 0
      %2516 = vmatprep.subr.bf16.mxu0 0
      %2517 = vmatpush1.bf16.msra.mxu0 0
      %2518 = vmatprep.mubr.bf16.mxu0 0
      %2519 = vmatmul.mubr.bf16.gmra.mrb[0].mxu0 %v2436
      %v2520 = vpop.f32.mrb[0].mxu0
      %v2521 = vadd.f32 0.0, %v2520
      %v2522 = vpop.f32.mrb[0].mxu0
      %v2523 = vpop.f32.mrb[0].mxu0
      %v2524 = vadd.f32 0.0, %v2523
      %v2525 = vpop.f32.mrb[0].mxu0
      %2526 = vmatprep.mubr.bf16.mxu0 0
      %2527 = vmatmul.mubr.bf16.gmra.mrb[0].mxu0 %v2439
      %v2528 = vpop.f32.mrb[0].mxu0
      %v2529 = vadd.f32 0.0, %v2528
      %v2530 = vpop.f32.mrb[0].mxu0
      %v2531 = vpop.f32.mrb[0].mxu0
      %v2532 = vadd.f32 0.0, %v2531
      %v2533 = vpop.f32.mrb[0].mxu0
      %2534 = vmatprep.mubr.bf16.mxu0 0
      %2535 = vmatmul.mubr.bf16.gmra.mrb[0].mxu0 %v2442
      %v2536 = vpop.f32.mrb[0].mxu0
      %v2537 = vadd.f32 0.0, %v2536
      %v2538 = vpop.f32.mrb[0].mxu0
      %v2539 = vpop.f32.mrb[0].mxu0
      %v2540 = vadd.f32 0.0, %v2539
      %v2541 = vpop.f32.mrb[0].mxu0
      %2542 = vmatprep.mubr.bf16.mxu0 0
      %2543 = vmatmul.mubr.bf16.gmra.mrb[0].mxu0 %v2445
      %v2544 = vpop.f32.mrb[0].mxu0
      %v2545 = vadd.f32 0.0, %v2544
      %v2546 = vpop.f32.mrb[0].mxu0
      %v2547 = vpop.f32.mrb[0].mxu0
      %v2548 = vadd.f32 0.0, %v2547
      %v2549 = vpop.f32.mrb[0].mxu0
      %2550 = vmatprep.mubr.bf16.mxu0 0
      %2551 = vmatmul.mubr.bf16.gmra.mrb[0].mxu0 %v2448
      %v2552 = vpop.f32.mrb[0].mxu0
      %v2553 = vadd.f32 0.0, %v2552
      %v2554 = vpop.f32.mrb[0].mxu0
      %v2555 = vpop.f32.mrb[0].mxu0
      %v2556 = vadd.f32 0.0, %v2555
      %v2557 = vpop.f32.mrb[0].mxu0
      %2558 = vmatprep.mubr.bf16.mxu0 0
      %2559 = vmatmul.mubr.bf16.gmra.mrb[0].mxu0 %v2451
      %v2560 = vpop.f32.mrb[0].mxu0
      %v2561 = vadd.f32 0.0, %v2560
      %v2562 = vpop.f32.mrb[0].mxu0
      %v2563 = vpop.f32.mrb[0].mxu0
      %v2564 = vadd.f32 0.0, %v2563
      %v2565 = vpop.f32.mrb[0].mxu0
      %2566 = vmatprep.mubr.bf16.mxu0 0
      %2567 = vmatmul.mubr.bf16.gmra.mrb[0].mxu0 %v2454
      %v2568 = vpop.f32.mrb[0].mxu0
      %v2569 = vadd.f32 0.0, %v2568
      %v2570 = vpop.f32.mrb[0].mxu0
      %v2571 = vpop.f32.mrb[0].mxu0
      %v2572 = vadd.f32 0.0, %v2571
      %v2573 = vpop.f32.mrb[0].mxu0
      %2574 = vmatprep.mubr.bf16.mxu0 0
      %2575 = vmatmul.mubr.bf16.gmra.mrb[0].mxu0 %v2457
      %v2576 = vpop.f32.mrb[0].mxu0
      %v2577 = vadd.f32 0.0, %v2576
      %v2578 = vpop.f32.mrb[0].mxu0
      %v2579 = vpop.f32.mrb[0].mxu0
      %v2580 = vadd.f32 0.0, %v2579
      %v2581 = vpop.f32.mrb[0].mxu0
      %2582 = vmatprep.mubr.bf16.mxu0 0
      %2583 = vmatmul.mubr.bf16.gmra.mrb[0].mxu0 %v2460
      %v2584 = vpop.f32.mrb[0].mxu0
      %v2585 = vadd.f32 0.0, %v2584
      %v2586 = vpop.f32.mrb[0].mxu0
      %v2587 = vpop.f32.mrb[0].mxu0
      %v2588 = vadd.f32 0.0, %v2587
      %v2589 = vpop.f32.mrb[0].mxu0
      %2590 = vmatprep.mubr.bf16.mxu0 0
      %2591 = vmatmul.mubr.bf16.gmra.mrb[0].mxu0 %v2463
      %v2592 = vpop.f32.mrb[0].mxu0
      %v2593 = vadd.f32 0.0, %v2592
      %v2594 = vpop.f32.mrb[0].mxu0
      %v2595 = vpop.f32.mrb[0].mxu0
      %v2596 = vadd.f32 0.0, %v2595
      %v2597 = vpop.f32.mrb[0].mxu0
      %2598 = vmatprep.mubr.bf16.mxu0 0
      %2599 = vmatmul.mubr.bf16.gmra.mrb[0].mxu0 %v2466
      %v2600 = vpop.f32.mrb[0].mxu0
      %v2601 = vadd.f32 0.0, %v2600
      %v2602 = vpop.f32.mrb[0].mxu0
      %v2603 = vpop.f32.mrb[0].mxu0
      %v2604 = vadd.f32 0.0, %v2603
      %v2605 = vpop.f32.mrb[0].mxu0
      %2606 = vmatprep.mubr.bf16.mxu0 0
      %2607 = vmatmul.mubr.bf16.gmra.mrb[0].mxu0 %v2469
      %v2608 = vpop.f32.mrb[0].mxu0
      %v2609 = vadd.f32 0.0, %v2608
      %v2610 = vpop.f32.mrb[0].mxu0
      %v2611 = vpop.f32.mrb[0].mxu0
      %v2612 = vadd.f32 0.0, %v2611
      %v2613 = vpop.f32.mrb[0].mxu0
      %2614 = vmatprep.mubr.bf16.mxu0 0
      %2615 = vmatmul.mubr.bf16.gmra.mrb[0].mxu0 %v2472
      %v2616 = vpop.f32.mrb[0].mxu0
      %v2617 = vadd.f32 0.0, %v2616
      %v2618 = vpop.f32.mrb[0].mxu0
      %v2619 = vpop.f32.mrb[0].mxu0
      %v2620 = vadd.f32 0.0, %v2619
      %v2621 = vpop.f32.mrb[0].mxu0
      %2622 = vmatprep.mubr.bf16.mxu0 0
      %2623 = vmatmul.mubr.bf16.gmra.mrb[0].mxu0 %v2475
      %v2624 = vpop.f32.mrb[0].mxu0
      %v2625 = vadd.f32 0.0, %v2624
      %v2626 = vpop.f32.mrb[0].mxu0
      %v2627 = vpop.f32.mrb[0].mxu0
      %v2628 = vadd.f32 0.0, %v2627
      %v2629 = vpop.f32.mrb[0].mxu0
      %2630 = vmatprep.mubr.bf16.mxu0 0
      %2631 = vmatmul.mubr.bf16.gmra.mrb[0].mxu0 %v2478
      %v2632 = vpop.f32.mrb[0].mxu0
      %v2633 = vadd.f32 0.0, %v2632
      %v2634 = vpop.f32.mrb[0].mxu0
      %v2635 = vpop.f32.mrb[0].mxu0
      %v2636 = vadd.f32 0.0, %v2635
      %v2637 = vpop.f32.mrb[0].mxu0
      %2638 = vmatprep.mubr.bf16.mxu0 0
      %2639 = vmatmul.mubr.bf16.gmra.mrb[0].mxu0 %v2481
      %v2640 = vpop.f32.mrb[0].mxu0
      %v2641 = vadd.f32 0.0, %v2640
      %v2642 = vpop.f32.mrb[0].mxu0
      %v2643 = vpop.f32.mrb[0].mxu0
      %v2644 = vadd.f32 0.0, %v2643
      %v2645 = vpop.f32.mrb[0].mxu0
      %2646 = vdwg.mxu0
      %v2647 = vadd.f32 %v1921, %v2521
      %v2648 = vadd.f32 %v1922, %v2524
      %v2649 = vadd.f32 %v1923, %v2529
      %v2650 = vadd.f32 %v1924, %v2532
      %v2651 = vadd.f32 %v1925, %v2537
      %v2652 = vadd.f32 %v1926, %v2540
      %v2653 = vadd.f32 %v1927, %v2545
      %v2654 = vadd.f32 %v1928, %v2548
      %v2655 = vadd.f32 %v1929, %v2553
      %v2656 = vadd.f32 %v1930, %v2556
      %v2657 = vadd.f32 %v1931, %v2561
      %v2658 = vadd.f32 %v1932, %v2564
      %v2659 = vadd.f32 %v1933, %v2569
      %v2660 = vadd.f32 %v1934, %v2572
      %v2661 = vadd.f32 %v1935, %v2577
      %v2662 = vadd.f32 %v1936, %v2580
      %v2663 = vadd.f32 %v1937, %v2585
      %v2664 = vadd.f32 %v1938, %v2588
      %v2665 = vadd.f32 %v1939, %v2593
      %v2666 = vadd.f32 %v1940, %v2596
      %v2667 = vadd.f32 %v1941, %v2601
      %v2668 = vadd.f32 %v1942, %v2604
      %v2669 = vadd.f32 %v1943, %v2609
      %v2670 = vadd.f32 %v1944, %v2612
      %v2671 = vadd.f32 %v1945, %v2617
      %v2672 = vadd.f32 %v1946, %v2620
      %v2673 = vadd.f32 %v1947, %v2625
      %v2674 = vadd.f32 %v1948, %v2628
      %v2675 = vadd.f32 %v1949, %v2633
      %v2676 = vadd.f32 %v1950, %v2636
      %v2677 = vadd.f32 %v1951, %v2641
      %v2678 = vadd.f32 %v1952, %v2644
      %v2679 = vld [vmem:[%s1594] sm:$0xe]
      %v2680 = vld [vmem:[%s1594 + $0xc] sm:$0xe]
      %v2681 = vld [vmem:[%s1594 + $0x18] sm:$0xe]
      %v2682 = vld [vmem:[%s1594 + $0x24] sm:$0xe]
      %v2683 = vld [vmem:[%s1594 + $0x30] sm:$0xe]
      %v2684 = vld [vmem:[%s1594 + $0x3c] sm:$0xe]
      %v2685 = vld [vmem:[%s1594 + $0x48] sm:$0xe]
      %v2686 = vld [vmem:[%s1594 + $0x54] sm:$0xe]
      %v2687 = vld [vmem:[%s1594 + $0x60] sm:$0xe]
      %v2688 = vld [vmem:[%s1594 + $0x6c] sm:$0xe]
      %v2689 = vld [vmem:[%s1594 + $0x78] sm:$0xe]
      %v2690 = vld [vmem:[%s1594 + $0x84] sm:$0xe]
      %v2691 = vld [vmem:[%s1594 + $0x90] sm:$0xe]
      %v2692 = vld [vmem:[%s1594 + $0x9c] sm:$0xe]
      %v2693 = vld [vmem:[%s1594 + $0xa8] sm:$0xe]
      %v2694 = vld [vmem:[%s1594 + $0xb4] sm:$0xe]
      %v2743 = vrot.slane %v2679, 5
      %v2744 = vrot.slane %v2743, 4
      %v2745 = vrot.slane %v1954, 5
      %v2746 = vsel %vm1187, %v2744, %v2745
      %v2747 = vrot.slane %v2745, 4
      %v2748 = vrot.slane %v1955, 5
      %v2749 = vsel %vm1187, %v2747, %v2748
      %v2750 = vrot.slane %v2680, 5
      %v2751 = vrot.slane %v2750, 4
      %v2752 = vrot.slane %v1957, 5
      %v2753 = vsel %vm1187, %v2751, %v2752
      %v2754 = vrot.slane %v2752, 4
      %v2755 = vrot.slane %v1958, 5
      %v2756 = vsel %vm1187, %v2754, %v2755
      %v2757 = vrot.slane %v2681, 5
      %v2758 = vrot.slane %v2757, 4
      %v2759 = vrot.slane %v1960, 5
      %v2760 = vsel %vm1187, %v2758, %v2759
      %v2761 = vrot.slane %v2759, 4
      %v2762 = vrot.slane %v1961, 5
      %v2763 = vsel %vm1187, %v2761, %v2762
      %v2764 = vrot.slane %v2682, 5
      %v2765 = vrot.slane %v2764, 4
      %v2766 = vrot.slane %v1963, 5
      %v2767 = vsel %vm1187, %v2765, %v2766
      %v2768 = vrot.slane %v2766, 4
      %v2769 = vrot.slane %v1964, 5
      %v2770 = vsel %vm1187, %v2768, %v2769
      %v2771 = vrot.slane %v2683, 5
      %v2772 = vrot.slane %v2771, 4
      %v2773 = vrot.slane %v1966, 5
      %v2774 = vsel %vm1187, %v2772, %v2773
      %v2775 = vrot.slane %v2773, 4
      %v2776 = vrot.slane %v1967, 5
      %v2777 = vsel %vm1187, %v2775, %v2776
      %v2778 = vrot.slane %v2684, 5
      %v2779 = vrot.slane %v2778, 4
      %v2780 = vrot.slane %v1969, 5
      %v2781 = vsel %vm1187, %v2779, %v2780
      %v2782 = vrot.slane %v2780, 4
      %v2783 = vrot.slane %v1970, 5
      %v2784 = vsel %vm1187, %v2782, %v2783
      %v2785 = vrot.slane %v2685, 5
      %v2786 = vrot.slane %v2785, 4
      %v2787 = vrot.slane %v1972, 5
      %v2788 = vsel %vm1187, %v2786, %v2787
      %v2789 = vrot.slane %v2787, 4
      %v2790 = vrot.slane %v1973, 5
      %v2791 = vsel %vm1187, %v2789, %v2790
      %v2792 = vrot.slane %v2686, 5
      %v2793 = vrot.slane %v2792, 4
      %v2794 = vrot.slane %v1975, 5
      %v2795 = vsel %vm1187, %v2793, %v2794
      %v2796 = vrot.slane %v2794, 4
      %v2797 = vrot.slane %v1976, 5
      %v2798 = vsel %vm1187, %v2796, %v2797
      %v2799 = vrot.slane %v2687, 5
      %v2800 = vrot.slane %v2799, 4
      %v2801 = vrot.slane %v1978, 5
      %v2802 = vsel %vm1187, %v2800, %v2801
      %v2803 = vrot.slane %v2801, 4
      %v2804 = vrot.slane %v1979, 5
      %v2805 = vsel %vm1187, %v2803, %v2804
      %v2806 = vrot.slane %v2688, 5
      %v2807 = vrot.slane %v2806, 4
      %v2808 = vrot.slane %v1981, 5
      %v2809 = vsel %vm1187, %v2807, %v2808
      %v2810 = vrot.slane %v2808, 4
      %v2811 = vrot.slane %v1982, 5
      %v2812 = vsel %vm1187, %v2810, %v2811
      %v2813 = vrot.slane %v2689, 5
      %v2814 = vrot.slane %v2813, 4
      %v2815 = vrot.slane %v1984, 5
      %v2816 = vsel %vm1187, %v2814, %v2815
      %v2817 = vrot.slane %v2815, 4
      %v2818 = vrot.slane %v1985, 5
      %v2819 = vsel %vm1187, %v2817, %v2818
      %v2820 = vrot.slane %v2690, 5
      %v2821 = vrot.slane %v2820, 4
      %v2822 = vrot.slane %v1987, 5
      %v2823 = vsel %vm1187, %v2821, %v2822
      %v2824 = vrot.slane %v2822, 4
      %v2825 = vrot.slane %v1988, 5
      %v2826 = vsel %vm1187, %v2824, %v2825
      %v2827 = vrot.slane %v2691, 5
      %v2828 = vrot.slane %v2827, 4
      %v2829 = vrot.slane %v1990, 5
      %v2830 = vsel %vm1187, %v2828, %v2829
      %v2831 = vrot.slane %v2829, 4
      %v2832 = vrot.slane %v1991, 5
      %v2833 = vsel %vm1187, %v2831, %v2832
      %v2834 = vrot.slane %v2692, 5
      %v2835 = vrot.slane %v2834, 4
      %v2836 = vrot.slane %v1993, 5
      %v2837 = vsel %vm1187, %v2835, %v2836
      %v2838 = vrot.slane %v2836, 4
      %v2839 = vrot.slane %v1994, 5
      %v2840 = vsel %vm1187, %v2838, %v2839
      %v2841 = vrot.slane %v2693, 5
      %v2842 = vrot.slane %v2841, 4
      %v2843 = vrot.slane %v1996, 5
      %v2844 = vsel %vm1187, %v2842, %v2843
      %v2845 = vrot.slane %v2843, 4
      %v2846 = vrot.slane %v1997, 5
      %v2847 = vsel %vm1187, %v2845, %v2846
      %v2848 = vrot.slane %v2694, 5
      %v2849 = vrot.slane %v2848, 4
      %v2850 = vrot.slane %v1999, 5
      %v2851 = vsel %vm1187, %v2849, %v2850
      %v2852 = vrot.slane %v2850, 4
      %v2853 = vrot.slane %v2000, 5
      %v2854 = vsel %vm1187, %v2852, %v2853
      %s2855 = scalar_lea.vmem %s1, 10
      %v2856 = vld [vmem:[%s2855] sm:$0x3]
      %v2857 = vunpack.c.l.b16 %v2746
      %v2858 = vunpack.c.l.b16 %v2749
      %v2859 = vunpack.c.l.b16 %v2753
      %v2860 = vunpack.c.l.b16 %v2756
      %v2861 = vunpack.c.l.b16 %v2760
      %v2862 = vunpack.c.l.b16 %v2763
      %v2863 = vunpack.c.l.b16 %v2767
      %v2864 = vunpack.c.l.b16 %v2770
      %v2865 = vunpack.c.l.b16 %v2774
      %v2866 = vunpack.c.l.b16 %v2777
      %v2867 = vunpack.c.l.b16 %v2781
      %v2868 = vunpack.c.l.b16 %v2784
      %v2869 = vunpack.c.l.b16 %v2788
      %v2870 = vunpack.c.l.b16 %v2791
      %v2871 = vunpack.c.l.b16 %v2795
      %v2872 = vunpack.c.l.b16 %v2798
      %v2873 = vunpack.c.l.b16 %v2802
      %v2874 = vunpack.c.l.b16 %v2805
      %v2875 = vunpack.c.l.b16 %v2809
      %v2876 = vunpack.c.l.b16 %v2812
      %v2877 = vunpack.c.l.b16 %v2816
      %v2878 = vunpack.c.l.b16 %v2819
      %v2879 = vunpack.c.l.b16 %v2823
      %v2880 = vunpack.c.l.b16 %v2826
      %v2881 = vunpack.c.l.b16 %v2830
      %v2882 = vunpack.c.l.b16 %v2833
      %v2883 = vunpack.c.l.b16 %v2837
      %v2884 = vunpack.c.l.b16 %v2840
      %v2885 = vunpack.c.l.b16 %v2844
      %v2886 = vunpack.c.l.b16 %v2847
      %v2887 = vunpack.c.l.b16 %v2851
      %v2888 = vunpack.c.l.b16 %v2854
      %v2889 = vpack.c.b16 %v2858, %v2857
      %v2890 = vpack.c.b16 %v2860, %v2859
      %v2891 = vpack.c.b16 %v2862, %v2861
      %v2892 = vpack.c.b16 %v2864, %v2863
      %v2893 = vpack.c.b16 %v2866, %v2865
      %v2894 = vpack.c.b16 %v2868, %v2867
      %v2895 = vpack.c.b16 %v2870, %v2869
      %v2896 = vpack.c.b16 %v2872, %v2871
      %v2897 = vpack.c.b16 %v2874, %v2873
      %v2898 = vpack.c.b16 %v2876, %v2875
      %v2899 = vpack.c.b16 %v2878, %v2877
      %v2900 = vpack.c.b16 %v2880, %v2879
      %v2901 = vpack.c.b16 %v2882, %v2881
      %v2902 = vpack.c.b16 %v2884, %v2883
      %v2903 = vpack.c.b16 %v2886, %v2885
      %v2904 = vpack.c.b16 %v2888, %v2887
      %v2906 = vsel %vm631, %v2889, 0
      %v2909 = vsel %vm631, %v2890, 0
      %v2912 = vsel %vm631, %v2891, 0
      %v2915 = vsel %vm631, %v2892, 0
      %v2918 = vsel %vm631, %v2893, 0
      %v2921 = vsel %vm631, %v2894, 0
      %v2924 = vsel %vm631, %v2895, 0
      %v2927 = vsel %vm631, %v2896, 0
      %v2930 = vsel %vm631, %v2897, 0
      %v2933 = vsel %vm631, %v2898, 0
      %v2936 = vsel %vm631, %v2899, 0
      %v2939 = vsel %vm631, %v2900, 0
      %v2942 = vsel %vm631, %v2901, 0
      %v2945 = vsel %vm631, %v2902, 0
      %v2948 = vsel %vm631, %v2903, 0
      %v2951 = vsel %vm631, %v2904, 0
      %v2954 = vsel %vm680, %v2856, 0
      %2956 = vmatprep.subr.bf16.mxu0 0
      %2957 = vmatpush1.bf16.msra.mxu0 %v2954
      %2958 = vmatprep.subr.bf16.mxu0 0
      %2959 = vmatpush1.bf16.msra.mxu0 0
      %2960 = vmatprep.subr.bf16.mxu0 0
      %2961 = vmatpush1.bf16.msra.mxu0 0
      %2962 = vmatprep.subr.bf16.mxu0 0
      %2963 = vmatpush1.bf16.msra.mxu0 0
      %2964 = vmatprep.subr.bf16.mxu0 0
      %2965 = vmatpush1.bf16.msra.mxu0 0
      %2966 = vmatprep.subr.bf16.mxu0 0
      %2967 = vmatpush1.bf16.msra.mxu0 0
      %2968 = vmatprep.subr.bf16.mxu0 0
      %2969 = vmatpush1.bf16.msra.mxu0 0
      %2970 = vmatprep.subr.bf16.mxu0 0
      %2971 = vmatpush1.bf16.msra.mxu0 0
      %2972 = vmatprep.subr.bf16.mxu0 0
      %2973 = vmatpush1.bf16.msra.mxu0 0
      %2974 = vmatprep.subr.bf16.mxu0 0
      %2975 = vmatpush1.bf16.msra.mxu0 0
      %2976 = vmatprep.subr.bf16.mxu0 0
      %2977 = vmatpush1.bf16.msra.mxu0 0
      %2978 = vmatprep.subr.bf16.mxu0 0
      %2979 = vmatpush1.bf16.msra.mxu0 0
      %2980 = vmatprep.subr.bf16.mxu0 0
      %2981 = vmatpush1.bf16.msra.mxu0 0
      %2982 = vmatprep.subr.bf16.mxu0 0
      %2983 = vmatpush1.bf16.msra.mxu0 0
      %2984 = vmatprep.subr.bf16.mxu0 0
      %2985 = vmatpush1.bf16.msra.mxu0 0
      %2986 = vmatprep.subr.bf16.mxu0 0
      %2987 = vmatpush1.bf16.msra.mxu0 0
      %2988 = vmatprep.mubr.bf16.mxu0 0
      %2989 = vmatmul.mubr.bf16.gmra.mrb[0].mxu0 %v2906
      %v2990 = vpop.f32.mrb[0].mxu0
      %v2991 = vadd.f32 0.0, %v2990
      %v2992 = vpop.f32.mrb[0].mxu0
      %v2993 = vpop.f32.mrb[0].mxu0
      %v2994 = vadd.f32 0.0, %v2993
      %v2995 = vpop.f32.mrb[0].mxu0
      %2996 = vmatprep.mubr.bf16.mxu0 0
      %2997 = vmatmul.mubr.bf16.gmra.mrb[0].mxu0 %v2909
      %v2998 = vpop.f32.mrb[0].mxu0
      %v2999 = vadd.f32 0.0, %v2998
      %v3000 = vpop.f32.mrb[0].mxu0
      %v3001 = vpop.f32.mrb[0].mxu0
      %v3002 = vadd.f32 0.0, %v3001
      %v3003 = vpop.f32.mrb[0].mxu0
      %3004 = vmatprep.mubr.bf16.mxu0 0
      %3005 = vmatmul.mubr.bf16.gmra.mrb[0].mxu0 %v2912
      %v3006 = vpop.f32.mrb[0].mxu0
      %v3007 = vadd.f32 0.0, %v3006
      %v3008 = vpop.f32.mrb[0].mxu0
      %v3009 = vpop.f32.mrb[0].mxu0
      %v3010 = vadd.f32 0.0, %v3009
      %v3011 = vpop.f32.mrb[0].mxu0
      %3012 = vmatprep.mubr.bf16.mxu0 0
      %3013 = vmatmul.mubr.bf16.gmra.mrb[0].mxu0 %v2915
      %v3014 = vpop.f32.mrb[0].mxu0
      %v3015 = vadd.f32 0.0, %v3014
      %v3016 = vpop.f32.mrb[0].mxu0
      %v3017 = vpop.f32.mrb[0].mxu0
      %v3018 = vadd.f32 0.0, %v3017
      %v3019 = vpop.f32.mrb[0].mxu0
      %3020 = vmatprep.mubr.bf16.mxu0 0
      %3021 = vmatmul.mubr.bf16.gmra.mrb[0].mxu0 %v2918
      %v3022 = vpop.f32.mrb[0].mxu0
      %v3023 = vadd.f32 0.0, %v3022
      %v3024 = vpop.f32.mrb[0].mxu0
      %v3025 = vpop.f32.mrb[0].mxu0
      %v3026 = vadd.f32 0.0, %v3025
      %v3027 = vpop.f32.mrb[0].mxu0
      %3028 = vmatprep.mubr.bf16.mxu0 0
      %3029 = vmatmul.mubr.bf16.gmra.mrb[0].mxu0 %v2921
      %v3030 = vpop.f32.mrb[0].mxu0
      %v3031 = vadd.f32 0.0, %v3030
      %v3032 = vpop.f32.mrb[0].mxu0
      %v3033 = vpop.f32.mrb[0].mxu0
      %v3034 = vadd.f32 0.0, %v3033
      %v3035 = vpop.f32.mrb[0].mxu0
      %3036 = vmatprep.mubr.bf16.mxu0 0
      %3037 = vmatmul.mubr.bf16.gmra.mrb[0].mxu0 %v2924
      %v3038 = vpop.f32.mrb[0].mxu0
      %v3039 = vadd.f32 0.0, %v3038
      %v3040 = vpop.f32.mrb[0].mxu0
      %v3041 = vpop.f32.mrb[0].mxu0
      %v3042 = vadd.f32 0.0, %v3041
      %v3043 = vpop.f32.mrb[0].mxu0
      %3044 = vmatprep.mubr.bf16.mxu0 0
      %3045 = vmatmul.mubr.bf16.gmra.mrb[0].mxu0 %v2927
      %v3046 = vpop.f32.mrb[0].mxu0
      %v3047 = vadd.f32 0.0, %v3046
      %v3048 = vpop.f32.mrb[0].mxu0
      %v3049 = vpop.f32.mrb[0].mxu0
      %v3050 = vadd.f32 0.0, %v3049
      %v3051 = vpop.f32.mrb[0].mxu0
      %3052 = vmatprep.mubr.bf16.mxu0 0
      %3053 = vmatmul.mubr.bf16.gmra.mrb[0].mxu0 %v2930
      %v3054 = vpop.f32.mrb[0].mxu0
      %v3055 = vadd.f32 0.0, %v3054
      %v3056 = vpop.f32.mrb[0].mxu0
      %v3057 = vpop.f32.mrb[0].mxu0
      %v3058 = vadd.f32 0.0, %v3057
      %v3059 = vpop.f32.mrb[0].mxu0
      %3060 = vmatprep.mubr.bf16.mxu0 0
      %3061 = vmatmul.mubr.bf16.gmra.mrb[0].mxu0 %v2933
      %v3062 = vpop.f32.mrb[0].mxu0
      %v3063 = vadd.f32 0.0, %v3062
      %v3064 = vpop.f32.mrb[0].mxu0
      %v3065 = vpop.f32.mrb[0].mxu0
      %v3066 = vadd.f32 0.0, %v3065
      %v3067 = vpop.f32.mrb[0].mxu0
      %3068 = vmatprep.mubr.bf16.mxu0 0
      %3069 = vmatmul.mubr.bf16.gmra.mrb[0].mxu0 %v2936
      %v3070 = vpop.f32.mrb[0].mxu0
      %v3071 = vadd.f32 0.0, %v3070
      %v3072 = vpop.f32.mrb[0].mxu0
      %v3073 = vpop.f32.mrb[0].mxu0
      %v3074 = vadd.f32 0.0, %v3073
      %v3075 = vpop.f32.mrb[0].mxu0
      %3076 = vmatprep.mubr.bf16.mxu0 0
      %3077 = vmatmul.mubr.bf16.gmra.mrb[0].mxu0 %v2939
      %v3078 = vpop.f32.mrb[0].mxu0
      %v3079 = vadd.f32 0.0, %v3078
      %v3080 = vpop.f32.mrb[0].mxu0
      %v3081 = vpop.f32.mrb[0].mxu0
      %v3082 = vadd.f32 0.0, %v3081
      %v3083 = vpop.f32.mrb[0].mxu0
      %3084 = vmatprep.mubr.bf16.mxu0 0
      %3085 = vmatmul.mubr.bf16.gmra.mrb[0].mxu0 %v2942
      %v3086 = vpop.f32.mrb[0].mxu0
      %v3087 = vadd.f32 0.0, %v3086
      %v3088 = vpop.f32.mrb[0].mxu0
      %v3089 = vpop.f32.mrb[0].mxu0
      %v3090 = vadd.f32 0.0, %v3089
      %v3091 = vpop.f32.mrb[0].mxu0
      %3092 = vmatprep.mubr.bf16.mxu0 0
      %3093 = vmatmul.mubr.bf16.gmra.mrb[0].mxu0 %v2945
      %v3094 = vpop.f32.mrb[0].mxu0
      %v3095 = vadd.f32 0.0, %v3094
      %v3096 = vpop.f32.mrb[0].mxu0
      %v3097 = vpop.f32.mrb[0].mxu0
      %v3098 = vadd.f32 0.0, %v3097
      %v3099 = vpop.f32.mrb[0].mxu0
      %3100 = vmatprep.mubr.bf16.mxu0 0
      %3101 = vmatmul.mubr.bf16.gmra.mrb[0].mxu0 %v2948
      %v3102 = vpop.f32.mrb[0].mxu0
      %v3103 = vadd.f32 0.0, %v3102
      %v3104 = vpop.f32.mrb[0].mxu0
      %v3105 = vpop.f32.mrb[0].mxu0
      %v3106 = vadd.f32 0.0, %v3105
      %v3107 = vpop.f32.mrb[0].mxu0
      %3108 = vmatprep.mubr.bf16.mxu0 0
      %3109 = vmatmul.mubr.bf16.gmra.mrb[0].mxu0 %v2951
      %v3110 = vpop.f32.mrb[0].mxu0
      %v3111 = vadd.f32 0.0, %v3110
      %v3112 = vpop.f32.mrb[0].mxu0
      %v3113 = vpop.f32.mrb[0].mxu0
      %v3114 = vadd.f32 0.0, %v3113
      %v3115 = vpop.f32.mrb[0].mxu0
      %3116 = vdwg.mxu0
      %v3117 = vadd.f32 %v2647, %v2991
      %v3118 = vadd.f32 %v2648, %v2994
      %v3119 = vadd.f32 %v2649, %v2999
      %v3120 = vadd.f32 %v2650, %v3002
      %v3121 = vadd.f32 %v2651, %v3007
      %v3122 = vadd.f32 %v2652, %v3010
      %v3123 = vadd.f32 %v2653, %v3015
      %v3124 = vadd.f32 %v2654, %v3018
      %v3125 = vadd.f32 %v2655, %v3023
      %v3126 = vadd.f32 %v2656, %v3026
      %v3127 = vadd.f32 %v2657, %v3031
      %v3128 = vadd.f32 %v2658, %v3034
      %v3129 = vadd.f32 %v2659, %v3039
      %v3130 = vadd.f32 %v2660, %v3042
      %v3131 = vadd.f32 %v2661, %v3047
      %v3132 = vadd.f32 %v2662, %v3050
      %v3133 = vadd.f32 %v2663, %v3055
      %v3134 = vadd.f32 %v2664, %v3058
      %v3135 = vadd.f32 %v2665, %v3063
      %v3136 = vadd.f32 %v2666, %v3066
      %v3137 = vadd.f32 %v2667, %v3071
      %v3138 = vadd.f32 %v2668, %v3074
      %v3139 = vadd.f32 %v2669, %v3079
      %v3140 = vadd.f32 %v2670, %v3082
      %v3141 = vadd.f32 %v2671, %v3087
      %v3142 = vadd.f32 %v2672, %v3090
      %v3143 = vadd.f32 %v2673, %v3095
      %v3144 = vadd.f32 %v2674, %v3098
      %v3145 = vadd.f32 %v2675, %v3103
      %v3146 = vadd.f32 %v2676, %v3106
      %v3147 = vadd.f32 %v2677, %v3111
      %v3148 = vadd.f32 %v2678, %v3114
      %s3149 = scalar_lea.vmem %s138, 24
      %v3150 = vld [vmem:[%s3149] sm:$0xf]
      %v3151 = vld [vmem:[%s3149 + $0x4] sm:$0xf]
      %v3152 = vld [vmem:[%s3149 + $0xc] sm:$0xf]
      %v3153 = vld [vmem:[%s3149 + $0x10] sm:$0xf]
      %v3154 = vld [vmem:[%s3149 + $0x18] sm:$0xf]
      %v3155 = vld [vmem:[%s3149 + $0x1c] sm:$0xf]
      %v3156 = vld [vmem:[%s3149 + $0x24] sm:$0xf]
      %v3157 = vld [vmem:[%s3149 + $0x28] sm:$0xf]
      %v3158 = vld [vmem:[%s3149 + $0x30] sm:$0xf]
      %v3159 = vld [vmem:[%s3149 + $0x34] sm:$0xf]
      %v3160 = vld [vmem:[%s3149 + $0x3c] sm:$0xf]
      %v3161 = vld [vmem:[%s3149 + $0x40] sm:$0xf]
      %v3162 = vld [vmem:[%s3149 + $0x48] sm:$0xf]
      %v3163 = vld [vmem:[%s3149 + $0x4c] sm:$0xf]
      %v3164 = vld [vmem:[%s3149 + $0x54] sm:$0xf]
      %v3165 = vld [vmem:[%s3149 + $0x58] sm:$0xf]
      %v3166 = vld [vmem:[%s3149 + $0x60] sm:$0xf]
      %v3167 = vld [vmem:[%s3149 + $0x64] sm:$0xf]
      %v3168 = vld [vmem:[%s3149 + $0x6c] sm:$0xf]
      %v3169 = vld [vmem:[%s3149 + $0x70] sm:$0xf]
      %v3170 = vld [vmem:[%s3149 + $0x78] sm:$0xf]
      %v3171 = vld [vmem:[%s3149 + $0x7c] sm:$0xf]
      %v3172 = vld [vmem:[%s3149 + $0x84] sm:$0xf]
      %v3173 = vld [vmem:[%s3149 + $0x88] sm:$0xf]
      %v3174 = vld [vmem:[%s3149 + $0x90] sm:$0xf]
      %v3175 = vld [vmem:[%s3149 + $0x94] sm:$0xf]
      %v3176 = vld [vmem:[%s3149 + $0x9c] sm:$0xf]
      %v3177 = vld [vmem:[%s3149 + $0xa0] sm:$0xf]
      %v3178 = vld [vmem:[%s3149 + $0xa8] sm:$0xf]
      %v3179 = vld [vmem:[%s3149 + $0xac] sm:$0xf]
      %v3180 = vld [vmem:[%s3149 + $0xb4] sm:$0xf]
      %v3181 = vld [vmem:[%s3149 + $0xb8] sm:$0xf]
      %s3182 = scalar_lea.vmem %s1, 12
      %v3183 = vld [vmem:[%s3182] sm:$0x3]
      %v3216 = vunpack.c.l.b16 %v3150
      %v3217 = vunpack.c.l.b16 %v3151
      %v3218 = vunpack.c.l.b16 %v3152
      %v3219 = vunpack.c.l.b16 %v3153
      %v3220 = vunpack.c.l.b16 %v3154
      %v3221 = vunpack.c.l.b16 %v3155
      %v3222 = vunpack.c.l.b16 %v3156
      %v3223 = vunpack.c.l.b16 %v3157
      %v3224 = vunpack.c.l.b16 %v3158
      %v3225 = vunpack.c.l.b16 %v3159
      %v3226 = vunpack.c.l.b16 %v3160
      %v3227 = vunpack.c.l.b16 %v3161
      %v3228 = vunpack.c.l.b16 %v3162
      %v3229 = vunpack.c.l.b16 %v3163
      %v3230 = vunpack.c.l.b16 %v3164
      %v3231 = vunpack.c.l.b16 %v3165
      %v3232 = vunpack.c.l.b16 %v3166
      %v3233 = vunpack.c.l.b16 %v3167
      %v3234 = vunpack.c.l.b16 %v3168
      %v3235 = vunpack.c.l.b16 %v3169
      %v3236 = vunpack.c.l.b16 %v3170
      %v3237 = vunpack.c.l.b16 %v3171
      %v3238 = vunpack.c.l.b16 %v3172
      %v3239 = vunpack.c.l.b16 %v3173
      %v3240 = vunpack.c.l.b16 %v3174
      %v3241 = vunpack.c.l.b16 %v3175
      %v3242 = vunpack.c.l.b16 %v3176
      %v3243 = vunpack.c.l.b16 %v3177
      %v3244 = vunpack.c.l.b16 %v3178
      %v3245 = vunpack.c.l.b16 %v3179
      %v3246 = vunpack.c.l.b16 %v3180
      %v3247 = vunpack.c.l.b16 %v3181
      %v3248 = vpack.c.b16 %v3217, %v3216
      %v3249 = vpack.c.b16 %v3219, %v3218
      %v3250 = vpack.c.b16 %v3221, %v3220
      %v3251 = vpack.c.b16 %v3223, %v3222
      %v3252 = vpack.c.b16 %v3225, %v3224
      %v3253 = vpack.c.b16 %v3227, %v3226
      %v3254 = vpack.c.b16 %v3229, %v3228
      %v3255 = vpack.c.b16 %v3231, %v3230
      %v3256 = vpack.c.b16 %v3233, %v3232
      %v3257 = vpack.c.b16 %v3235, %v3234
      %v3258 = vpack.c.b16 %v3237, %v3236
      %v3259 = vpack.c.b16 %v3239, %v3238
      %v3260 = vpack.c.b16 %v3241, %v3240
      %v3261 = vpack.c.b16 %v3243, %v3242
      %v3262 = vpack.c.b16 %v3245, %v3244
      %v3263 = vpack.c.b16 %v3247, %v3246
      %v3265 = vsel %vm631, %v3248, 0
      %v3268 = vsel %vm631, %v3249, 0
      %v3271 = vsel %vm631, %v3250, 0
      %v3274 = vsel %vm631, %v3251, 0
      %v3277 = vsel %vm631, %v3252, 0
      %v3280 = vsel %vm631, %v3253, 0
      %v3283 = vsel %vm631, %v3254, 0
      %v3286 = vsel %vm631, %v3255, 0
      %v3289 = vsel %vm631, %v3256, 0
      %v3292 = vsel %vm631, %v3257, 0
      %v3295 = vsel %vm631, %v3258, 0
      %v3298 = vsel %vm631, %v3259, 0
      %v3301 = vsel %vm631, %v3260, 0
      %v3304 = vsel %vm631, %v3261, 0
      %v3307 = vsel %vm631, %v3262, 0
      %v3310 = vsel %vm631, %v3263, 0
      %v3313 = vsel %vm680, %v3183, 0
      %3315 = vmatprep.subr.bf16.mxu0 0
      %3316 = vmatpush1.bf16.msra.mxu0 %v3313
      %3317 = vmatprep.subr.bf16.mxu0 0
      %3318 = vmatpush1.bf16.msra.mxu0 0
      %3319 = vmatprep.subr.bf16.mxu0 0
      %3320 = vmatpush1.bf16.msra.mxu0 0
      %3321 = vmatprep.subr.bf16.mxu0 0
      %3322 = vmatpush1.bf16.msra.mxu0 0
      %3323 = vmatprep.subr.bf16.mxu0 0
      %3324 = vmatpush1.bf16.msra.mxu0 0
      %3325 = vmatprep.subr.bf16.mxu0 0
      %3326 = vmatpush1.bf16.msra.mxu0 0
      %3327 = vmatprep.subr.bf16.mxu0 0
      %3328 = vmatpush1.bf16.msra.mxu0 0
      %3329 = vmatprep.subr.bf16.mxu0 0
      %3330 = vmatpush1.bf16.msra.mxu0 0
      %3331 = vmatprep.subr.bf16.mxu0 0
      %3332 = vmatpush1.bf16.msra.mxu0 0
      %3333 = vmatprep.subr.bf16.mxu0 0
      %3334 = vmatpush1.bf16.msra.mxu0 0
      %3335 = vmatprep.subr.bf16.mxu0 0
      %3336 = vmatpush1.bf16.msra.mxu0 0
      %3337 = vmatprep.subr.bf16.mxu0 0
      %3338 = vmatpush1.bf16.msra.mxu0 0
      %3339 = vmatprep.subr.bf16.mxu0 0
      %3340 = vmatpush1.bf16.msra.mxu0 0
      %3341 = vmatprep.subr.bf16.mxu0 0
      %3342 = vmatpush1.bf16.msra.mxu0 0
      %3343 = vmatprep.subr.bf16.mxu0 0
      %3344 = vmatpush1.bf16.msra.mxu0 0
      %3345 = vmatprep.subr.bf16.mxu0 0
      %3346 = vmatpush1.bf16.msra.mxu0 0
      %3347 = vmatprep.mubr.bf16.mxu0 0
      %3348 = vmatmul.mubr.bf16.gmra.mrb[0].mxu0 %v3265
      %v3349 = vpop.f32.mrb[0].mxu0
      %v3350 = vadd.f32 0.0, %v3349
      %v3351 = vpop.f32.mrb[0].mxu0
      %v3352 = vpop.f32.mrb[0].mxu0
      %v3353 = vadd.f32 0.0, %v3352
      %v3354 = vpop.f32.mrb[0].mxu0
      %3355 = vmatprep.mubr.bf16.mxu0 0
      %3356 = vmatmul.mubr.bf16.gmra.mrb[0].mxu0 %v3268
      %v3357 = vpop.f32.mrb[0].mxu0
      %v3358 = vadd.f32 0.0, %v3357
      %v3359 = vpop.f32.mrb[0].mxu0
      %v3360 = vpop.f32.mrb[0].mxu0
      %v3361 = vadd.f32 0.0, %v3360
      %v3362 = vpop.f32.mrb[0].mxu0
      %3363 = vmatprep.mubr.bf16.mxu0 0
      %3364 = vmatmul.mubr.bf16.gmra.mrb[0].mxu0 %v3271
      %v3365 = vpop.f32.mrb[0].mxu0
      %v3366 = vadd.f32 0.0, %v3365
      %v3367 = vpop.f32.mrb[0].mxu0
      %v3368 = vpop.f32.mrb[0].mxu0
      %v3369 = vadd.f32 0.0, %v3368
      %v3370 = vpop.f32.mrb[0].mxu0
      %3371 = vmatprep.mubr.bf16.mxu0 0
      %3372 = vmatmul.mubr.bf16.gmra.mrb[0].mxu0 %v3274
      %v3373 = vpop.f32.mrb[0].mxu0
      %v3374 = vadd.f32 0.0, %v3373
      %v3375 = vpop.f32.mrb[0].mxu0
      %v3376 = vpop.f32.mrb[0].mxu0
      %v3377 = vadd.f32 0.0, %v3376
      %v3378 = vpop.f32.mrb[0].mxu0
      %3379 = vmatprep.mubr.bf16.mxu0 0
      %3380 = vmatmul.mubr.bf16.gmra.mrb[0].mxu0 %v3277
      %v3381 = vpop.f32.mrb[0].mxu0
      %v3382 = vadd.f32 0.0, %v3381
      %v3383 = vpop.f32.mrb[0].mxu0
      %v3384 = vpop.f32.mrb[0].mxu0
      %v3385 = vadd.f32 0.0, %v3384
      %v3386 = vpop.f32.mrb[0].mxu0
      %3387 = vmatprep.mubr.bf16.mxu0 0
      %3388 = vmatmul.mubr.bf16.gmra.mrb[0].mxu0 %v3280
      %v3389 = vpop.f32.mrb[0].mxu0
      %v3390 = vadd.f32 0.0, %v3389
      %v3391 = vpop.f32.mrb[0].mxu0
      %v3392 = vpop.f32.mrb[0].mxu0
      %v3393 = vadd.f32 0.0, %v3392
      %v3394 = vpop.f32.mrb[0].mxu0
      %3395 = vmatprep.mubr.bf16.mxu0 0
      %3396 = vmatmul.mubr.bf16.gmra.mrb[0].mxu0 %v3283
      %v3397 = vpop.f32.mrb[0].mxu0
      %v3398 = vadd.f32 0.0, %v3397
      %v3399 = vpop.f32.mrb[0].mxu0
      %v3400 = vpop.f32.mrb[0].mxu0
      %v3401 = vadd.f32 0.0, %v3400
      %v3402 = vpop.f32.mrb[0].mxu0
      %3403 = vmatprep.mubr.bf16.mxu0 0
      %3404 = vmatmul.mubr.bf16.gmra.mrb[0].mxu0 %v3286
      %v3405 = vpop.f32.mrb[0].mxu0
      %v3406 = vadd.f32 0.0, %v3405
      %v3407 = vpop.f32.mrb[0].mxu0
      %v3408 = vpop.f32.mrb[0].mxu0
      %v3409 = vadd.f32 0.0, %v3408
      %v3410 = vpop.f32.mrb[0].mxu0
      %3411 = vmatprep.mubr.bf16.mxu0 0
      %3412 = vmatmul.mubr.bf16.gmra.mrb[0].mxu0 %v3289
      %v3413 = vpop.f32.mrb[0].mxu0
      %v3414 = vadd.f32 0.0, %v3413
      %v3415 = vpop.f32.mrb[0].mxu0
      %v3416 = vpop.f32.mrb[0].mxu0
      %v3417 = vadd.f32 0.0, %v3416
      %v3418 = vpop.f32.mrb[0].mxu0
      %3419 = vmatprep.mubr.bf16.mxu0 0
      %3420 = vmatmul.mubr.bf16.gmra.mrb[0].mxu0 %v3292
      %v3421 = vpop.f32.mrb[0].mxu0
      %v3422 = vadd.f32 0.0, %v3421
      %v3423 = vpop.f32.mrb[0].mxu0
      %v3424 = vpop.f32.mrb[0].mxu0
      %v3425 = vadd.f32 0.0, %v3424
      %v3426 = vpop.f32.mrb[0].mxu0
      %3427 = vmatprep.mubr.bf16.mxu0 0
      %3428 = vmatmul.mubr.bf16.gmra.mrb[0].mxu0 %v3295
      %v3429 = vpop.f32.mrb[0].mxu0
      %v3430 = vadd.f32 0.0, %v3429
      %v3431 = vpop.f32.mrb[0].mxu0
      %v3432 = vpop.f32.mrb[0].mxu0
      %v3433 = vadd.f32 0.0, %v3432
      %v3434 = vpop.f32.mrb[0].mxu0
      %3435 = vmatprep.mubr.bf16.mxu0 0
      %3436 = vmatmul.mubr.bf16.gmra.mrb[0].mxu0 %v3298
      %v3437 = vpop.f32.mrb[0].mxu0
      %v3438 = vadd.f32 0.0, %v3437
      %v3439 = vpop.f32.mrb[0].mxu0
      %v3440 = vpop.f32.mrb[0].mxu0
      %v3441 = vadd.f32 0.0, %v3440
      %v3442 = vpop.f32.mrb[0].mxu0
      %3443 = vmatprep.mubr.bf16.mxu0 0
      %3444 = vmatmul.mubr.bf16.gmra.mrb[0].mxu0 %v3301
      %v3445 = vpop.f32.mrb[0].mxu0
      %v3446 = vadd.f32 0.0, %v3445
      %v3447 = vpop.f32.mrb[0].mxu0
      %v3448 = vpop.f32.mrb[0].mxu0
      %v3449 = vadd.f32 0.0, %v3448
      %v3450 = vpop.f32.mrb[0].mxu0
      %3451 = vmatprep.mubr.bf16.mxu0 0
      %3452 = vmatmul.mubr.bf16.gmra.mrb[0].mxu0 %v3304
      %v3453 = vpop.f32.mrb[0].mxu0
      %v3454 = vadd.f32 0.0, %v3453
      %v3455 = vpop.f32.mrb[0].mxu0
      %v3456 = vpop.f32.mrb[0].mxu0
      %v3457 = vadd.f32 0.0, %v3456
      %v3458 = vpop.f32.mrb[0].mxu0
      %3459 = vmatprep.mubr.bf16.mxu0 0
      %3460 = vmatmul.mubr.bf16.gmra.mrb[0].mxu0 %v3307
      %v3461 = vpop.f32.mrb[0].mxu0
      %v3462 = vadd.f32 0.0, %v3461
      %v3463 = vpop.f32.mrb[0].mxu0
      %v3464 = vpop.f32.mrb[0].mxu0
      %v3465 = vadd.f32 0.0, %v3464
      %v3466 = vpop.f32.mrb[0].mxu0
      %3467 = vmatprep.mubr.bf16.mxu0 0
      %3468 = vmatmul.mubr.bf16.gmra.mrb[0].mxu0 %v3310
      %v3469 = vpop.f32.mrb[0].mxu0
      %v3470 = vadd.f32 0.0, %v3469
      %v3471 = vpop.f32.mrb[0].mxu0
      %v3472 = vpop.f32.mrb[0].mxu0
      %v3473 = vadd.f32 0.0, %v3472
      %v3474 = vpop.f32.mrb[0].mxu0
      %3475 = vdwg.mxu0
      %v3476 = vadd.f32 %v3117, %v3350
      %v3477 = vadd.f32 %v3118, %v3353
      %v3478 = vadd.f32 %v3119, %v3358
      %v3479 = vadd.f32 %v3120, %v3361
      %v3480 = vadd.f32 %v3121, %v3366
      %v3481 = vadd.f32 %v3122, %v3369
      %v3482 = vadd.f32 %v3123, %v3374
      %v3483 = vadd.f32 %v3124, %v3377
      %v3484 = vadd.f32 %v3125, %v3382
      %v3485 = vadd.f32 %v3126, %v3385
      %v3486 = vadd.f32 %v3127, %v3390
      %v3487 = vadd.f32 %v3128, %v3393
      %v3488 = vadd.f32 %v3129, %v3398
      %v3489 = vadd.f32 %v3130, %v3401
      %v3490 = vadd.f32 %v3131, %v3406
      %v3491 = vadd.f32 %v3132, %v3409
      %v3492 = vadd.f32 %v3133, %v3414
      %v3493 = vadd.f32 %v3134, %v3417
      %v3494 = vadd.f32 %v3135, %v3422
      %v3495 = vadd.f32 %v3136, %v3425
      %v3496 = vadd.f32 %v3137, %v3430
      %v3497 = vadd.f32 %v3138, %v3433
      %v3498 = vadd.f32 %v3139, %v3438
      %v3499 = vadd.f32 %v3140, %v3441
      %v3500 = vadd.f32 %v3141, %v3446
      %v3501 = vadd.f32 %v3142, %v3449
      %v3502 = vadd.f32 %v3143, %v3454
      %v3503 = vadd.f32 %v3144, %v3457
      %v3504 = vadd.f32 %v3145, %v3462
      %v3505 = vadd.f32 %v3146, %v3465
      %v3506 = vadd.f32 %v3147, %v3470
      %v3507 = vadd.f32 %v3148, %v3473
      %v3508 = vld [vmem:[%s3149] sm:$0xf]
      %v3509 = vld [vmem:[%s3149 + $0x4] sm:$0xf]
      %v3510 = vld [vmem:[%s3149 + $0x8] sm:$0x1]
      %v3511 = vld [vmem:[%s3149 + $0xc] sm:$0xf]
      %v3512 = vld [vmem:[%s3149 + $0x10] sm:$0xf]
      %v3513 = vld [vmem:[%s3149 + $0x14] sm:$0x1]
      %v3514 = vld [vmem:[%s3149 + $0x18] sm:$0xf]
      %v3515 = vld [vmem:[%s3149 + $0x1c] sm:$0xf]
      %v3516 = vld [vmem:[%s3149 + $0x20] sm:$0x1]
      %v3517 = vld [vmem:[%s3149 + $0x24] sm:$0xf]
      %v3518 = vld [vmem:[%s3149 + $0x28] sm:$0xf]
      %v3519 = vld [vmem:[%s3149 + $0x2c] sm:$0x1]
      %v3520 = vld [vmem:[%s3149 + $0x30] sm:$0xf]
      %v3521 = vld [vmem:[%s3149 + $0x34] sm:$0xf]
      %v3522 = vld [vmem:[%s3149 + $0x38] sm:$0x1]
      %v3523 = vld [vmem:[%s3149 + $0x3c] sm:$0xf]
      %v3524 = vld [vmem:[%s3149 + $0x40] sm:$0xf]
      %v3525 = vld [vmem:[%s3149 + $0x44] sm:$0x1]
      %v3526 = vld [vmem:[%s3149 + $0x48] sm:$0xf]
      %v3527 = vld [vmem:[%s3149 + $0x4c] sm:$0xf]
      %v3528 = vld [vmem:[%s3149 + $0x50] sm:$0x1]
      %v3529 = vld [vmem:[%s3149 + $0x54] sm:$0xf]
      %v3530 = vld [vmem:[%s3149 + $0x58] sm:$0xf]
      %v3531 = vld [vmem:[%s3149 + $0x5c] sm:$0x1]
      %v3532 = vld [vmem:[%s3149 + $0x60] sm:$0xf]
      %v3533 = vld [vmem:[%s3149 + $0x64] sm:$0xf]
      %v3534 = vld [vmem:[%s3149 + $0x68] sm:$0x1]
      %v3535 = vld [vmem:[%s3149 + $0x6c] sm:$0xf]
      %v3536 = vld [vmem:[%s3149 + $0x70] sm:$0xf]
      %v3537 = vld [vmem:[%s3149 + $0x74] sm:$0x1]
      %v3538 = vld [vmem:[%s3149 + $0x78] sm:$0xf]
      %v3539 = vld [vmem:[%s3149 + $0x7c] sm:$0xf]
      %v3540 = vld [vmem:[%s3149 + $0x80] sm:$0x1]
      %v3541 = vld [vmem:[%s3149 + $0x84] sm:$0xf]
      %v3542 = vld [vmem:[%s3149 + $0x88] sm:$0xf]
      %v3543 = vld [vmem:[%s3149 + $0x8c] sm:$0x1]
      %v3544 = vld [vmem:[%s3149 + $0x90] sm:$0xf]
      %v3545 = vld [vmem:[%s3149 + $0x94] sm:$0xf]
      %v3546 = vld [vmem:[%s3149 + $0x98] sm:$0x1]
      %v3547 = vld [vmem:[%s3149 + $0x9c] sm:$0xf]
      %v3548 = vld [vmem:[%s3149 + $0xa0] sm:$0xf]
      %v3549 = vld [vmem:[%s3149 + $0xa4] sm:$0x1]
      %v3550 = vld [vmem:[%s3149 + $0xa8] sm:$0xf]
      %v3551 = vld [vmem:[%s3149 + $0xac] sm:$0xf]
      %v3552 = vld [vmem:[%s3149 + $0xb0] sm:$0x1]
      %v3553 = vld [vmem:[%s3149 + $0xb4] sm:$0xf]
      %v3554 = vld [vmem:[%s3149 + $0xb8] sm:$0xf]
      %v3555 = vld [vmem:[%s3149 + $0xbc] sm:$0x1]
      %v3557 = vshrl.u32 %v3508, 16
      %v3559 = vrot.slane %v3557, 4
      %v3560 = vshll.u32 %v3508, 16
      %v3562 = vrot.slane %v3560, 5
      %v3563 = vor.u32 %v3559, %v3562
      %v3564 = vrot.slane %v3563, 4
      %v3566 = vshll.u32 %v3509, 16
      %v3568 = vrot.slane %v3566, 5
      %v3569 = vsel %vm196, %v3564, %v3568
      %v3570 = vshrl.u32 %v3509, 16
      %v3572 = vrot.slane %v3570, 4
      %v3573 = vor.u32 %v3572, %v3568
      %v3574 = vrot.slane %v3573, 4
      %v3576 = vshll.u32 %v3510, 16
      %v3578 = vrot.slane %v3576, 5
      %v3579 = vsel %vm196, %v3574, %v3578
      %v3581 = vshrl.u32 %v3511, 16
      %v3583 = vrot.slane %v3581, 4
      %v3584 = vshll.u32 %v3511, 16
      %v3586 = vrot.slane %v3584, 5
      %v3587 = vor.u32 %v3583, %v3586
      %v3588 = vrot.slane %v3587, 4
      %v3590 = vshll.u32 %v3512, 16
      %v3592 = vrot.slane %v3590, 5
      %v3593 = vsel %vm196, %v3588, %v3592
      %v3594 = vshrl.u32 %v3512, 16
      %v3596 = vrot.slane %v3594, 4
      %v3597 = vor.u32 %v3596, %v3592
      %v3598 = vrot.slane %v3597, 4
      %v3600 = vshll.u32 %v3513, 16
      %v3602 = vrot.slane %v3600, 5
      %v3603 = vsel %vm196, %v3598, %v3602
      %v3605 = vshrl.u32 %v3514, 16
      %v3607 = vrot.slane %v3605, 4
      %v3608 = vshll.u32 %v3514, 16
      %v3610 = vrot.slane %v3608, 5
      %v3611 = vor.u32 %v3607, %v3610
      %v3612 = vrot.slane %v3611, 4
      %v3614 = vshll.u32 %v3515, 16
      %v3616 = vrot.slane %v3614, 5
      %v3617 = vsel %vm196, %v3612, %v3616
      %v3618 = vshrl.u32 %v3515, 16
      %v3620 = vrot.slane %v3618, 4
      %v3621 = vor.u32 %v3620, %v3616
      %v3622 = vrot.slane %v3621, 4
      %v3624 = vshll.u32 %v3516, 16
      %v3626 = vrot.slane %v3624, 5
      %v3627 = vsel %vm196, %v3622, %v3626
      %v3629 = vshrl.u32 %v3517, 16
      %v3631 = vrot.slane %v3629, 4
      %v3632 = vshll.u32 %v3517, 16
      %v3634 = vrot.slane %v3632, 5
      %v3635 = vor.u32 %v3631, %v3634
      %v3636 = vrot.slane %v3635, 4
      %v3638 = vshll.u32 %v3518, 16
      %v3640 = vrot.slane %v3638, 5
      %v3641 = vsel %vm196, %v3636, %v3640
      %v3642 = vshrl.u32 %v3518, 16
      %v3644 = vrot.slane %v3642, 4
      %v3645 = vor.u32 %v3644, %v3640
      %v3646 = vrot.slane %v3645, 4
      %v3648 = vshll.u32 %v3519, 16
      %v3650 = vrot.slane %v3648, 5
      %v3651 = vsel %vm196, %v3646, %v3650
      %v3653 = vshrl.u32 %v3520, 16
      %v3655 = vrot.slane %v3653, 4
      %v3656 = vshll.u32 %v3520, 16
      %v3658 = vrot.slane %v3656, 5
      %v3659 = vor.u32 %v3655, %v3658
      %v3660 = vrot.slane %v3659, 4
      %v3662 = vshll.u32 %v3521, 16
      %v3664 = vrot.slane %v3662, 5
      %v3665 = vsel %vm196, %v3660, %v3664
      %v3666 = vshrl.u32 %v3521, 16
      %v3668 = vrot.slane %v3666, 4
      %v3669 = vor.u32 %v3668, %v3664
      %v3670 = vrot.slane %v3669, 4
      %v3672 = vshll.u32 %v3522, 16
      %v3674 = vrot.slane %v3672, 5
      %v3675 = vsel %vm196, %v3670, %v3674
      %v3677 = vshrl.u32 %v3523, 16
      %v3679 = vrot.slane %v3677, 4
      %v3680 = vshll.u32 %v3523, 16
      %v3682 = vrot.slane %v3680, 5
      %v3683 = vor.u32 %v3679, %v3682
      %v3684 = vrot.slane %v3683, 4
      %v3686 = vshll.u32 %v3524, 16
      %v3688 = vrot.slane %v3686, 5
      %v3689 = vsel %vm196, %v3684, %v3688
      %v3690 = vshrl.u32 %v3524, 16
      %v3692 = vrot.slane %v3690, 4
      %v3693 = vor.u32 %v3692, %v3688
      %v3694 = vrot.slane %v3693, 4
      %v3696 = vshll.u32 %v3525, 16
      %v3698 = vrot.slane %v3696, 5
      %v3699 = vsel %vm196, %v3694, %v3698
      %v3701 = vshrl.u32 %v3526, 16
      %v3703 = vrot.slane %v3701, 4
      %v3704 = vshll.u32 %v3526, 16
      %v3706 = vrot.slane %v3704, 5
      %v3707 = vor.u32 %v3703, %v3706
      %v3708 = vrot.slane %v3707, 4
      %v3710 = vshll.u32 %v3527, 16
      %v3712 = vrot.slane %v3710, 5
      %v3713 = vsel %vm196, %v3708, %v3712
      %v3714 = vshrl.u32 %v3527, 16
      %v3716 = vrot.slane %v3714, 4
      %v3717 = vor.u32 %v3716, %v3712
      %v3718 = vrot.slane %v3717, 4
      %v3720 = vshll.u32 %v3528, 16
      %v3722 = vrot.slane %v3720, 5
      %v3723 = vsel %vm196, %v3718, %v3722
      %v3725 = vshrl.u32 %v3529, 16
      %v3727 = vrot.slane %v3725, 4
      %v3728 = vshll.u32 %v3529, 16
      %v3730 = vrot.slane %v3728, 5
      %v3731 = vor.u32 %v3727, %v3730
      %v3732 = vrot.slane %v3731, 4
      %v3734 = vshll.u32 %v3530, 16
      %v3736 = vrot.slane %v3734, 5
      %v3737 = vsel %vm196, %v3732, %v3736
      %v3738 = vshrl.u32 %v3530, 16
      %v3740 = vrot.slane %v3738, 4
      %v3741 = vor.u32 %v3740, %v3736
      %v3742 = vrot.slane %v3741, 4
      %v3744 = vshll.u32 %v3531, 16
      %v3746 = vrot.slane %v3744, 5
      %v3747 = vsel %vm196, %v3742, %v3746
      %v3749 = vshrl.u32 %v3532, 16
      %v3751 = vrot.slane %v3749, 4
      %v3752 = vshll.u32 %v3532, 16
      %v3754 = vrot.slane %v3752, 5
      %v3755 = vor.u32 %v3751, %v3754
      %v3756 = vrot.slane %v3755, 4
      %v3758 = vshll.u32 %v3533, 16
      %v3760 = vrot.slane %v3758, 5
      %v3761 = vsel %vm196, %v3756, %v3760
      %v3762 = vshrl.u32 %v3533, 16
      %v3764 = vrot.slane %v3762, 4
      %v3765 = vor.u32 %v3764, %v3760
      %v3766 = vrot.slane %v3765, 4
      %v3768 = vshll.u32 %v3534, 16
      %v3770 = vrot.slane %v3768, 5
      %v3771 = vsel %vm196, %v3766, %v3770
      %v3773 = vshrl.u32 %v3535, 16
      %v3775 = vrot.slane %v3773, 4
      %v3776 = vshll.u32 %v3535, 16
      %v3778 = vrot.slane %v3776, 5
      %v3779 = vor.u32 %v3775, %v3778
      %v3780 = vrot.slane %v3779, 4
      %v3782 = vshll.u32 %v3536, 16
      %v3784 = vrot.slane %v3782, 5
      %v3785 = vsel %vm196, %v3780, %v3784
      %v3786 = vshrl.u32 %v3536, 16
      %v3788 = vrot.slane %v3786, 4
      %v3789 = vor.u32 %v3788, %v3784
      %v3790 = vrot.slane %v3789, 4
      %v3792 = vshll.u32 %v3537, 16
      %v3794 = vrot.slane %v3792, 5
      %v3795 = vsel %vm196, %v3790, %v3794
      %v3797 = vshrl.u32 %v3538, 16
      %v3799 = vrot.slane %v3797, 4
      %v3800 = vshll.u32 %v3538, 16
      %v3802 = vrot.slane %v3800, 5
      %v3803 = vor.u32 %v3799, %v3802
      %v3804 = vrot.slane %v3803, 4
      %v3806 = vshll.u32 %v3539, 16
      %v3808 = vrot.slane %v3806, 5
      %v3809 = vsel %vm196, %v3804, %v3808
      %v3810 = vshrl.u32 %v3539, 16
      %v3812 = vrot.slane %v3810, 4
      %v3813 = vor.u32 %v3812, %v3808
      %v3814 = vrot.slane %v3813, 4
      %v3816 = vshll.u32 %v3540, 16
      %v3818 = vrot.slane %v3816, 5
      %v3819 = vsel %vm196, %v3814, %v3818
      %v3821 = vshrl.u32 %v3541, 16
      %v3823 = vrot.slane %v3821, 4
      %v3824 = vshll.u32 %v3541, 16
      %v3826 = vrot.slane %v3824, 5
      %v3827 = vor.u32 %v3823, %v3826
      %v3828 = vrot.slane %v3827, 4
      %v3830 = vshll.u32 %v3542, 16
      %v3832 = vrot.slane %v3830, 5
      %v3833 = vsel %vm196, %v3828, %v3832
      %v3834 = vshrl.u32 %v3542, 16
      %v3836 = vrot.slane %v3834, 4
      %v3837 = vor.u32 %v3836, %v3832
      %v3838 = vrot.slane %v3837, 4
      %v3840 = vshll.u32 %v3543, 16
      %v3842 = vrot.slane %v3840, 5
      %v3843 = vsel %vm196, %v3838, %v3842
      %v3845 = vshrl.u32 %v3544, 16
      %v3847 = vrot.slane %v3845, 4
      %v3848 = vshll.u32 %v3544, 16
      %v3850 = vrot.slane %v3848, 5
      %v3851 = vor.u32 %v3847, %v3850
      %v3852 = vrot.slane %v3851, 4
      %v3854 = vshll.u32 %v3545, 16
      %v3856 = vrot.slane %v3854, 5
      %v3857 = vsel %vm196, %v3852, %v3856
      %v3858 = vshrl.u32 %v3545, 16
      %v3860 = vrot.slane %v3858, 4
      %v3861 = vor.u32 %v3860, %v3856
      %v3862 = vrot.slane %v3861, 4
      %v3864 = vshll.u32 %v3546, 16
      %v3866 = vrot.slane %v3864, 5
      %v3867 = vsel %vm196, %v3862, %v3866
      %v3869 = vshrl.u32 %v3547, 16
      %v3871 = vrot.slane %v3869, 4
      %v3872 = vshll.u32 %v3547, 16
      %v3874 = vrot.slane %v3872, 5
      %v3875 = vor.u32 %v3871, %v3874
      %v3876 = vrot.slane %v3875, 4
      %v3878 = vshll.u32 %v3548, 16
      %v3880 = vrot.slane %v3878, 5
      %v3881 = vsel %vm196, %v3876, %v3880
      %v3882 = vshrl.u32 %v3548, 16
      %v3884 = vrot.slane %v3882, 4
      %v3885 = vor.u32 %v3884, %v3880
      %v3886 = vrot.slane %v3885, 4
      %v3888 = vshll.u32 %v3549, 16
      %v3890 = vrot.slane %v3888, 5
      %v3891 = vsel %vm196, %v3886, %v3890
      %v3893 = vshrl.u32 %v3550, 16
      %v3895 = vrot.slane %v3893, 4
      %v3896 = vshll.u32 %v3550, 16
      %v3898 = vrot.slane %v3896, 5
      %v3899 = vor.u32 %v3895, %v3898
      %v3900 = vrot.slane %v3899, 4
      %v3902 = vshll.u32 %v3551, 16
      %v3904 = vrot.slane %v3902, 5
      %v3905 = vsel %vm196, %v3900, %v3904
      %v3906 = vshrl.u32 %v3551, 16
      %v3908 = vrot.slane %v3906, 4
      %v3909 = vor.u32 %v3908, %v3904
      %v3910 = vrot.slane %v3909, 4
      %v3912 = vshll.u32 %v3552, 16
      %v3914 = vrot.slane %v3912, 5
      %v3915 = vsel %vm196, %v3910, %v3914
      %v3917 = vshrl.u32 %v3553, 16
      %v3919 = vrot.slane %v3917, 4
      %v3920 = vshll.u32 %v3553, 16
      %v3922 = vrot.slane %v3920, 5
      %v3923 = vor.u32 %v3919, %v3922
      %v3924 = vrot.slane %v3923, 4
      %v3926 = vshll.u32 %v3554, 16
      %v3928 = vrot.slane %v3926, 5
      %v3929 = vsel %vm196, %v3924, %v3928
      %v3930 = vshrl.u32 %v3554, 16
      %v3932 = vrot.slane %v3930, 4
      %v3933 = vor.u32 %v3932, %v3928
      %v3934 = vrot.slane %v3933, 4
      %v3936 = vshll.u32 %v3555, 16
      %v3938 = vrot.slane %v3936, 5
      %v3939 = vsel %vm196, %v3934, %v3938
      %s3940 = scalar_lea.vmem %s1, 14
      %v3941 = vld [vmem:[%s3940] sm:$0x3]
      %v3942 = vunpack.c.l.b16 %v3569
      %v3943 = vunpack.c.l.b16 %v3579
      %v3944 = vunpack.c.l.b16 %v3593
      %v3945 = vunpack.c.l.b16 %v3603
      %v3946 = vunpack.c.l.b16 %v3617
      %v3947 = vunpack.c.l.b16 %v3627
      %v3948 = vunpack.c.l.b16 %v3641
      %v3949 = vunpack.c.l.b16 %v3651
      %v3950 = vunpack.c.l.b16 %v3665
      %v3951 = vunpack.c.l.b16 %v3675
      %v3952 = vunpack.c.l.b16 %v3689
      %v3953 = vunpack.c.l.b16 %v3699
      %v3954 = vunpack.c.l.b16 %v3713
      %v3955 = vunpack.c.l.b16 %v3723
      %v3956 = vunpack.c.l.b16 %v3737
      %v3957 = vunpack.c.l.b16 %v3747
      %v3958 = vunpack.c.l.b16 %v3761
      %v3959 = vunpack.c.l.b16 %v3771
      %v3960 = vunpack.c.l.b16 %v3785
      %v3961 = vunpack.c.l.b16 %v3795
      %v3962 = vunpack.c.l.b16 %v3809
      %v3963 = vunpack.c.l.b16 %v3819
      %v3964 = vunpack.c.l.b16 %v3833
      %v3965 = vunpack.c.l.b16 %v3843
      %v3966 = vunpack.c.l.b16 %v3857
      %v3967 = vunpack.c.l.b16 %v3867
      %v3968 = vunpack.c.l.b16 %v3881
      %v3969 = vunpack.c.l.b16 %v3891
      %v3970 = vunpack.c.l.b16 %v3905
      %v3971 = vunpack.c.l.b16 %v3915
      %v3972 = vunpack.c.l.b16 %v3929
      %v3973 = vunpack.c.l.b16 %v3939
      %v3974 = vpack.c.b16 %v3943, %v3942
      %v3975 = vpack.c.b16 %v3945, %v3944
      %v3976 = vpack.c.b16 %v3947, %v3946
      %v3977 = vpack.c.b16 %v3949, %v3948
      %v3978 = vpack.c.b16 %v3951, %v3950
      %v3979 = vpack.c.b16 %v3953, %v3952
      %v3980 = vpack.c.b16 %v3955, %v3954
      %v3981 = vpack.c.b16 %v3957, %v3956
      %v3982 = vpack.c.b16 %v3959, %v3958
      %v3983 = vpack.c.b16 %v3961, %v3960
      %v3984 = vpack.c.b16 %v3963, %v3962
      %v3985 = vpack.c.b16 %v3965, %v3964
      %v3986 = vpack.c.b16 %v3967, %v3966
      %v3987 = vpack.c.b16 %v3969, %v3968
      %v3988 = vpack.c.b16 %v3971, %v3970
      %v3989 = vpack.c.b16 %v3973, %v3972
      %v3991 = vsel %vm631, %v3974, 0
      %v3994 = vsel %vm631, %v3975, 0
      %v3997 = vsel %vm631, %v3976, 0
      %v4000 = vsel %vm631, %v3977, 0
      %v4003 = vsel %vm631, %v3978, 0
      %v4006 = vsel %vm631, %v3979, 0
      %v4009 = vsel %vm631, %v3980, 0
      %v4012 = vsel %vm631, %v3981, 0
      %v4015 = vsel %vm631, %v3982, 0
      %v4018 = vsel %vm631, %v3983, 0
      %v4021 = vsel %vm631, %v3984, 0
      %v4024 = vsel %vm631, %v3985, 0
      %v4027 = vsel %vm631, %v3986, 0
      %v4030 = vsel %vm631, %v3987, 0
      %v4033 = vsel %vm631, %v3988, 0
      %v4036 = vsel %vm631, %v3989, 0
      %v4039 = vsel %vm680, %v3941, 0
      %4041 = vmatprep.subr.bf16.mxu0 0
      %4042 = vmatpush1.bf16.msra.mxu0 %v4039
      %4043 = vmatprep.subr.bf16.mxu0 0
      %4044 = vmatpush1.bf16.msra.mxu0 0
      %4045 = vmatprep.subr.bf16.mxu0 0
      %4046 = vmatpush1.bf16.msra.mxu0 0
      %4047 = vmatprep.subr.bf16.mxu0 0
      %4048 = vmatpush1.bf16.msra.mxu0 0
      %4049 = vmatprep.subr.bf16.mxu0 0
      %4050 = vmatpush1.bf16.msra.mxu0 0
      %4051 = vmatprep.subr.bf16.mxu0 0
      %4052 = vmatpush1.bf16.msra.mxu0 0
      %4053 = vmatprep.subr.bf16.mxu0 0
      %4054 = vmatpush1.bf16.msra.mxu0 0
      %4055 = vmatprep.subr.bf16.mxu0 0
      %4056 = vmatpush1.bf16.msra.mxu0 0
      %4057 = vmatprep.subr.bf16.mxu0 0
      %4058 = vmatpush1.bf16.msra.mxu0 0
      %4059 = vmatprep.subr.bf16.mxu0 0
      %4060 = vmatpush1.bf16.msra.mxu0 0
      %4061 = vmatprep.subr.bf16.mxu0 0
      %4062 = vmatpush1.bf16.msra.mxu0 0
      %4063 = vmatprep.subr.bf16.mxu0 0
      %4064 = vmatpush1.bf16.msra.mxu0 0
      %4065 = vmatprep.subr.bf16.mxu0 0
      %4066 = vmatpush1.bf16.msra.mxu0 0
      %4067 = vmatprep.subr.bf16.mxu0 0
      %4068 = vmatpush1.bf16.msra.mxu0 0
      %4069 = vmatprep.subr.bf16.mxu0 0
      %4070 = vmatpush1.bf16.msra.mxu0 0
      %4071 = vmatprep.subr.bf16.mxu0 0
      %4072 = vmatpush1.bf16.msra.mxu0 0
      %4073 = vmatprep.mubr.bf16.mxu0 0
      %4074 = vmatmul.mubr.bf16.gmra.mrb[0].mxu0 %v3991
      %v4075 = vpop.f32.mrb[0].mxu0
      %v4076 = vadd.f32 0.0, %v4075
      %v4077 = vpop.f32.mrb[0].mxu0
      %v4078 = vpop.f32.mrb[0].mxu0
      %v4079 = vadd.f32 0.0, %v4078
      %v4080 = vpop.f32.mrb[0].mxu0
      %4081 = vmatprep.mubr.bf16.mxu0 0
      %4082 = vmatmul.mubr.bf16.gmra.mrb[0].mxu0 %v3994
      %v4083 = vpop.f32.mrb[0].mxu0
      %v4084 = vadd.f32 0.0, %v4083
      %v4085 = vpop.f32.mrb[0].mxu0
      %v4086 = vpop.f32.mrb[0].mxu0
      %v4087 = vadd.f32 0.0, %v4086
      %v4088 = vpop.f32.mrb[0].mxu0
      %4089 = vmatprep.mubr.bf16.mxu0 0
      %4090 = vmatmul.mubr.bf16.gmra.mrb[0].mxu0 %v3997
      %v4091 = vpop.f32.mrb[0].mxu0
      %v4092 = vadd.f32 0.0, %v4091
      %v4093 = vpop.f32.mrb[0].mxu0
      %v4094 = vpop.f32.mrb[0].mxu0
      %v4095 = vadd.f32 0.0, %v4094
      %v4096 = vpop.f32.mrb[0].mxu0
      %4097 = vmatprep.mubr.bf16.mxu0 0
      %4098 = vmatmul.mubr.bf16.gmra.mrb[0].mxu0 %v4000
      %v4099 = vpop.f32.mrb[0].mxu0
      %v4100 = vadd.f32 0.0, %v4099
      %v4101 = vpop.f32.mrb[0].mxu0
      %v4102 = vpop.f32.mrb[0].mxu0
      %v4103 = vadd.f32 0.0, %v4102
      %v4104 = vpop.f32.mrb[0].mxu0
      %4105 = vmatprep.mubr.bf16.mxu0 0
      %4106 = vmatmul.mubr.bf16.gmra.mrb[0].mxu0 %v4003
      %v4107 = vpop.f32.mrb[0].mxu0
      %v4108 = vadd.f32 0.0, %v4107
      %v4109 = vpop.f32.mrb[0].mxu0
      %v4110 = vpop.f32.mrb[0].mxu0
      %v4111 = vadd.f32 0.0, %v4110
      %v4112 = vpop.f32.mrb[0].mxu0
      %4113 = vmatprep.mubr.bf16.mxu0 0
      %4114 = vmatmul.mubr.bf16.gmra.mrb[0].mxu0 %v4006
      %v4115 = vpop.f32.mrb[0].mxu0
      %v4116 = vadd.f32 0.0, %v4115
      %v4117 = vpop.f32.mrb[0].mxu0
      %v4118 = vpop.f32.mrb[0].mxu0
      %v4119 = vadd.f32 0.0, %v4118
      %v4120 = vpop.f32.mrb[0].mxu0
      %4121 = vmatprep.mubr.bf16.mxu0 0
      %4122 = vmatmul.mubr.bf16.gmra.mrb[0].mxu0 %v4009
      %v4123 = vpop.f32.mrb[0].mxu0
      %v4124 = vadd.f32 0.0, %v4123
      %v4125 = vpop.f32.mrb[0].mxu0
      %v4126 = vpop.f32.mrb[0].mxu0
      %v4127 = vadd.f32 0.0, %v4126
      %v4128 = vpop.f32.mrb[0].mxu0
      %4129 = vmatprep.mubr.bf16.mxu0 0
      %4130 = vmatmul.mubr.bf16.gmra.mrb[0].mxu0 %v4012
      %v4131 = vpop.f32.mrb[0].mxu0
      %v4132 = vadd.f32 0.0, %v4131
      %v4133 = vpop.f32.mrb[0].mxu0
      %v4134 = vpop.f32.mrb[0].mxu0
      %v4135 = vadd.f32 0.0, %v4134
      %v4136 = vpop.f32.mrb[0].mxu0
      %4137 = vmatprep.mubr.bf16.mxu0 0
      %4138 = vmatmul.mubr.bf16.gmra.mrb[0].mxu0 %v4015
      %v4139 = vpop.f32.mrb[0].mxu0
      %v4140 = vadd.f32 0.0, %v4139
      %v4141 = vpop.f32.mrb[0].mxu0
      %v4142 = vpop.f32.mrb[0].mxu0
      %v4143 = vadd.f32 0.0, %v4142
      %v4144 = vpop.f32.mrb[0].mxu0
      %4145 = vmatprep.mubr.bf16.mxu0 0
      %4146 = vmatmul.mubr.bf16.gmra.mrb[0].mxu0 %v4018
      %v4147 = vpop.f32.mrb[0].mxu0
      %v4148 = vadd.f32 0.0, %v4147
      %v4149 = vpop.f32.mrb[0].mxu0
      %v4150 = vpop.f32.mrb[0].mxu0
      %v4151 = vadd.f32 0.0, %v4150
      %v4152 = vpop.f32.mrb[0].mxu0
      %4153 = vmatprep.mubr.bf16.mxu0 0
      %4154 = vmatmul.mubr.bf16.gmra.mrb[0].mxu0 %v4021
      %v4155 = vpop.f32.mrb[0].mxu0
      %v4156 = vadd.f32 0.0, %v4155
      %v4157 = vpop.f32.mrb[0].mxu0
      %v4158 = vpop.f32.mrb[0].mxu0
      %v4159 = vadd.f32 0.0, %v4158
      %v4160 = vpop.f32.mrb[0].mxu0
      %4161 = vmatprep.mubr.bf16.mxu0 0
      %4162 = vmatmul.mubr.bf16.gmra.mrb[0].mxu0 %v4024
      %v4163 = vpop.f32.mrb[0].mxu0
      %v4164 = vadd.f32 0.0, %v4163
      %v4165 = vpop.f32.mrb[0].mxu0
      %v4166 = vpop.f32.mrb[0].mxu0
      %v4167 = vadd.f32 0.0, %v4166
      %v4168 = vpop.f32.mrb[0].mxu0
      %4169 = vmatprep.mubr.bf16.mxu0 0
      %4170 = vmatmul.mubr.bf16.gmra.mrb[0].mxu0 %v4027
      %v4171 = vpop.f32.mrb[0].mxu0
      %v4172 = vadd.f32 0.0, %v4171
      %v4173 = vpop.f32.mrb[0].mxu0
      %v4174 = vpop.f32.mrb[0].mxu0
      %v4175 = vadd.f32 0.0, %v4174
      %v4176 = vpop.f32.mrb[0].mxu0
      %4177 = vmatprep.mubr.bf16.mxu0 0
      %4178 = vmatmul.mubr.bf16.gmra.mrb[0].mxu0 %v4030
      %v4179 = vpop.f32.mrb[0].mxu0
      %v4180 = vadd.f32 0.0, %v4179
      %v4181 = vpop.f32.mrb[0].mxu0
      %v4182 = vpop.f32.mrb[0].mxu0
      %v4183 = vadd.f32 0.0, %v4182
      %v4184 = vpop.f32.mrb[0].mxu0
      %4185 = vmatprep.mubr.bf16.mxu0 0
      %4186 = vmatmul.mubr.bf16.gmra.mrb[0].mxu0 %v4033
      %v4187 = vpop.f32.mrb[0].mxu0
      %v4188 = vadd.f32 0.0, %v4187
      %v4189 = vpop.f32.mrb[0].mxu0
      %v4190 = vpop.f32.mrb[0].mxu0
      %v4191 = vadd.f32 0.0, %v4190
      %v4192 = vpop.f32.mrb[0].mxu0
      %4193 = vmatprep.mubr.bf16.mxu0 0
      %4194 = vmatmul.mubr.bf16.gmra.mrb[0].mxu0 %v4036
      %v4195 = vpop.f32.mrb[0].mxu0
      %v4196 = vadd.f32 0.0, %v4195
      %v4197 = vpop.f32.mrb[0].mxu0
      %v4198 = vpop.f32.mrb[0].mxu0
      %v4199 = vadd.f32 0.0, %v4198
      %v4200 = vpop.f32.mrb[0].mxu0
      %4201 = vdwg.mxu0
      %v4202 = vadd.f32 %v3476, %v4076
      %v4203 = vadd.f32 %v3477, %v4079
      %v4204 = vadd.f32 %v3478, %v4084
      %v4205 = vadd.f32 %v3479, %v4087
      %v4206 = vadd.f32 %v3480, %v4092
      %v4207 = vadd.f32 %v3481, %v4095
      %v4208 = vadd.f32 %v3482, %v4100
      %v4209 = vadd.f32 %v3483, %v4103
      %v4210 = vadd.f32 %v3484, %v4108
      %v4211 = vadd.f32 %v3485, %v4111
      %v4212 = vadd.f32 %v3486, %v4116
      %v4213 = vadd.f32 %v3487, %v4119
      %v4214 = vadd.f32 %v3488, %v4124
      %v4215 = vadd.f32 %v3489, %v4127
      %v4216 = vadd.f32 %v3490, %v4132
      %v4217 = vadd.f32 %v3491, %v4135
      %v4218 = vadd.f32 %v3492, %v4140
      %v4219 = vadd.f32 %v3493, %v4143
      %v4220 = vadd.f32 %v3494, %v4148
      %v4221 = vadd.f32 %v3495, %v4151
      %v4222 = vadd.f32 %v3496, %v4156
      %v4223 = vadd.f32 %v3497, %v4159
      %v4224 = vadd.f32 %v3498, %v4164
      %v4225 = vadd.f32 %v3499, %v4167
      %v4226 = vadd.f32 %v3500, %v4172
      %v4227 = vadd.f32 %v3501, %v4175
      %v4228 = vadd.f32 %v3502, %v4180
      %v4229 = vadd.f32 %v3503, %v4183
      %v4230 = vadd.f32 %v3504, %v4188
      %v4231 = vadd.f32 %v3505, %v4191
      %v4232 = vadd.f32 %v3506, %v4196
      %v4233 = vadd.f32 %v3507, %v4199
      %v4234 = vld [vmem:[%s3149] sm:$0xe]
      %v4235 = vld [vmem:[%s3149 + $0xc] sm:$0xe]
      %v4236 = vld [vmem:[%s3149 + $0x18] sm:$0xe]
      %v4237 = vld [vmem:[%s3149 + $0x24] sm:$0xe]
      %v4238 = vld [vmem:[%s3149 + $0x30] sm:$0xe]
      %v4239 = vld [vmem:[%s3149 + $0x3c] sm:$0xe]
      %v4240 = vld [vmem:[%s3149 + $0x48] sm:$0xe]
      %v4241 = vld [vmem:[%s3149 + $0x54] sm:$0xe]
      %v4242 = vld [vmem:[%s3149 + $0x60] sm:$0xe]
      %v4243 = vld [vmem:[%s3149 + $0x6c] sm:$0xe]
      %v4244 = vld [vmem:[%s3149 + $0x78] sm:$0xe]
      %v4245 = vld [vmem:[%s3149 + $0x84] sm:$0xe]
      %v4246 = vld [vmem:[%s3149 + $0x90] sm:$0xe]
      %v4247 = vld [vmem:[%s3149 + $0x9c] sm:$0xe]
      %v4248 = vld [vmem:[%s3149 + $0xa8] sm:$0xe]
      %v4249 = vld [vmem:[%s3149 + $0xb4] sm:$0xe]
      %v4298 = vrot.slane %v4234, 5
      %v4299 = vrot.slane %v4298, 4
      %v4300 = vrot.slane %v3509, 5
      %v4301 = vsel %vm1187, %v4299, %v4300
      %v4302 = vrot.slane %v4300, 4
      %v4303 = vrot.slane %v3510, 5
      %v4304 = vsel %vm1187, %v4302, %v4303
      %v4305 = vrot.slane %v4235, 5
      %v4306 = vrot.slane %v4305, 4
      %v4307 = vrot.slane %v3512, 5
      %v4308 = vsel %vm1187, %v4306, %v4307
      %v4309 = vrot.slane %v4307, 4
      %v4310 = vrot.slane %v3513, 5
      %v4311 = vsel %vm1187, %v4309, %v4310
      %v4312 = vrot.slane %v4236, 5
      %v4313 = vrot.slane %v4312, 4
      %v4314 = vrot.slane %v3515, 5
      %v4315 = vsel %vm1187, %v4313, %v4314
      %v4316 = vrot.slane %v4314, 4
      %v4317 = vrot.slane %v3516, 5
      %v4318 = vsel %vm1187, %v4316, %v4317
      %v4319 = vrot.slane %v4237, 5
      %v4320 = vrot.slane %v4319, 4
      %v4321 = vrot.slane %v3518, 5
      %v4322 = vsel %vm1187, %v4320, %v4321
      %v4323 = vrot.slane %v4321, 4
      %v4324 = vrot.slane %v3519, 5
      %v4325 = vsel %vm1187, %v4323, %v4324
      %v4326 = vrot.slane %v4238, 5
      %v4327 = vrot.slane %v4326, 4
      %v4328 = vrot.slane %v3521, 5
      %v4329 = vsel %vm1187, %v4327, %v4328
      %v4330 = vrot.slane %v4328, 4
      %v4331 = vrot.slane %v3522, 5
      %v4332 = vsel %vm1187, %v4330, %v4331
      %v4333 = vrot.slane %v4239, 5
      %v4334 = vrot.slane %v4333, 4
      %v4335 = vrot.slane %v3524, 5
      %v4336 = vsel %vm1187, %v4334, %v4335
      %v4337 = vrot.slane %v4335, 4
      %v4338 = vrot.slane %v3525, 5
      %v4339 = vsel %vm1187, %v4337, %v4338
      %v4340 = vrot.slane %v4240, 5
      %v4341 = vrot.slane %v4340, 4
      %v4342 = vrot.slane %v3527, 5
      %v4343 = vsel %vm1187, %v4341, %v4342
      %v4344 = vrot.slane %v4342, 4
      %v4345 = vrot.slane %v3528, 5
      %v4346 = vsel %vm1187, %v4344, %v4345
      %v4347 = vrot.slane %v4241, 5
      %v4348 = vrot.slane %v4347, 4
      %v4349 = vrot.slane %v3530, 5
      %v4350 = vsel %vm1187, %v4348, %v4349
      %v4351 = vrot.slane %v4349, 4
      %v4352 = vrot.slane %v3531, 5
      %v4353 = vsel %vm1187, %v4351, %v4352
      %v4354 = vrot.slane %v4242, 5
      %v4355 = vrot.slane %v4354, 4
      %v4356 = vrot.slane %v3533, 5
      %v4357 = vsel %vm1187, %v4355, %v4356
      %v4358 = vrot.slane %v4356, 4
      %v4359 = vrot.slane %v3534, 5
      %v4360 = vsel %vm1187, %v4358, %v4359
      %v4361 = vrot.slane %v4243, 5
      %v4362 = vrot.slane %v4361, 4
      %v4363 = vrot.slane %v3536, 5
      %v4364 = vsel %vm1187, %v4362, %v4363
      %v4365 = vrot.slane %v4363, 4
      %v4366 = vrot.slane %v3537, 5
      %v4367 = vsel %vm1187, %v4365, %v4366
      %v4368 = vrot.slane %v4244, 5
      %v4369 = vrot.slane %v4368, 4
      %v4370 = vrot.slane %v3539, 5
      %v4371 = vsel %vm1187, %v4369, %v4370
      %v4372 = vrot.slane %v4370, 4
      %v4373 = vrot.slane %v3540, 5
      %v4374 = vsel %vm1187, %v4372, %v4373
      %v4375 = vrot.slane %v4245, 5
      %v4376 = vrot.slane %v4375, 4
      %v4377 = vrot.slane %v3542, 5
      %v4378 = vsel %vm1187, %v4376, %v4377
      %v4379 = vrot.slane %v4377, 4
      %v4380 = vrot.slane %v3543, 5
      %v4381 = vsel %vm1187, %v4379, %v4380
      %v4382 = vrot.slane %v4246, 5
      %v4383 = vrot.slane %v4382, 4
      %v4384 = vrot.slane %v3545, 5
      %v4385 = vsel %vm1187, %v4383, %v4384
      %v4386 = vrot.slane %v4384, 4
      %v4387 = vrot.slane %v3546, 5
      %v4388 = vsel %vm1187, %v4386, %v4387
      %v4389 = vrot.slane %v4247, 5
      %v4390 = vrot.slane %v4389, 4
      %v4391 = vrot.slane %v3548, 5
      %v4392 = vsel %vm1187, %v4390, %v4391
      %v4393 = vrot.slane %v4391, 4
      %v4394 = vrot.slane %v3549, 5
      %v4395 = vsel %vm1187, %v4393, %v4394
      %v4396 = vrot.slane %v4248, 5
      %v4397 = vrot.slane %v4396, 4
      %v4398 = vrot.slane %v3551, 5
      %v4399 = vsel %vm1187, %v4397, %v4398
      %v4400 = vrot.slane %v4398, 4
      %v4401 = vrot.slane %v3552, 5
      %v4402 = vsel %vm1187, %v4400, %v4401
      %v4403 = vrot.slane %v4249, 5
      %v4404 = vrot.slane %v4403, 4
      %v4405 = vrot.slane %v3554, 5
      %v4406 = vsel %vm1187, %v4404, %v4405
      %v4407 = vrot.slane %v4405, 4
      %v4408 = vrot.slane %v3555, 5
      %v4409 = vsel %vm1187, %v4407, %v4408
      %s4410 = scalar_lea.vmem %s1, 16
      %v4411 = vld [vmem:[%s4410] sm:$0x3]
      %v4412 = vunpack.c.l.b16 %v4301
      %v4413 = vunpack.c.l.b16 %v4304
      %v4414 = vunpack.c.l.b16 %v4308
      %v4415 = vunpack.c.l.b16 %v4311
      %v4416 = vunpack.c.l.b16 %v4315
      %v4417 = vunpack.c.l.b16 %v4318
      %v4418 = vunpack.c.l.b16 %v4322
      %v4419 = vunpack.c.l.b16 %v4325
      %v4420 = vunpack.c.l.b16 %v4329
      %v4421 = vunpack.c.l.b16 %v4332
      %v4422 = vunpack.c.l.b16 %v4336
      %v4423 = vunpack.c.l.b16 %v4339
      %v4424 = vunpack.c.l.b16 %v4343
      %v4425 = vunpack.c.l.b16 %v4346
      %v4426 = vunpack.c.l.b16 %v4350
      %v4427 = vunpack.c.l.b16 %v4353
      %v4428 = vunpack.c.l.b16 %v4357
      %v4429 = vunpack.c.l.b16 %v4360
      %v4430 = vunpack.c.l.b16 %v4364
      %v4431 = vunpack.c.l.b16 %v4367
      %v4432 = vunpack.c.l.b16 %v4371
      %v4433 = vunpack.c.l.b16 %v4374
      %v4434 = vunpack.c.l.b16 %v4378
      %v4435 = vunpack.c.l.b16 %v4381
      %v4436 = vunpack.c.l.b16 %v4385
      %v4437 = vunpack.c.l.b16 %v4388
      %v4438 = vunpack.c.l.b16 %v4392
      %v4439 = vunpack.c.l.b16 %v4395
      %v4440 = vunpack.c.l.b16 %v4399
      %v4441 = vunpack.c.l.b16 %v4402
      %v4442 = vunpack.c.l.b16 %v4406
      %v4443 = vunpack.c.l.b16 %v4409
      %v4444 = vpack.c.b16 %v4413, %v4412
      %v4445 = vpack.c.b16 %v4415, %v4414
      %v4446 = vpack.c.b16 %v4417, %v4416
      %v4447 = vpack.c.b16 %v4419, %v4418
      %v4448 = vpack.c.b16 %v4421, %v4420
      %v4449 = vpack.c.b16 %v4423, %v4422
      %v4450 = vpack.c.b16 %v4425, %v4424
      %v4451 = vpack.c.b16 %v4427, %v4426
      %v4452 = vpack.c.b16 %v4429, %v4428
      %v4453 = vpack.c.b16 %v4431, %v4430
      %v4454 = vpack.c.b16 %v4433, %v4432
      %v4455 = vpack.c.b16 %v4435, %v4434
      %v4456 = vpack.c.b16 %v4437, %v4436
      %v4457 = vpack.c.b16 %v4439, %v4438
      %v4458 = vpack.c.b16 %v4441, %v4440
      %v4459 = vpack.c.b16 %v4443, %v4442
      %v4461 = vsel %vm631, %v4444, 0
      %v4464 = vsel %vm631, %v4445, 0
      %v4467 = vsel %vm631, %v4446, 0
      %v4470 = vsel %vm631, %v4447, 0
      %v4473 = vsel %vm631, %v4448, 0
      %v4476 = vsel %vm631, %v4449, 0
      %v4479 = vsel %vm631, %v4450, 0
      %v4482 = vsel %vm631, %v4451, 0
      %v4485 = vsel %vm631, %v4452, 0
      %v4488 = vsel %vm631, %v4453, 0
      %v4491 = vsel %vm631, %v4454, 0
      %v4494 = vsel %vm631, %v4455, 0
      %v4497 = vsel %vm631, %v4456, 0
      %v4500 = vsel %vm631, %v4457, 0
      %v4503 = vsel %vm631, %v4458, 0
      %v4506 = vsel %vm631, %v4459, 0
      %v4509 = vsel %vm680, %v4411, 0
      %4511 = vmatprep.subr.bf16.mxu0 0
      %4512 = vmatpush1.bf16.msra.mxu0 %v4509
      %4513 = vmatprep.subr.bf16.mxu0 0
      %4514 = vmatpush1.bf16.msra.mxu0 0
      %4515 = vmatprep.subr.bf16.mxu0 0
      %4516 = vmatpush1.bf16.msra.mxu0 0
      %4517 = vmatprep.subr.bf16.mxu0 0
      %4518 = vmatpush1.bf16.msra.mxu0 0
      %4519 = vmatprep.subr.bf16.mxu0 0
      %4520 = vmatpush1.bf16.msra.mxu0 0
      %4521 = vmatprep.subr.bf16.mxu0 0
      %4522 = vmatpush1.bf16.msra.mxu0 0
      %4523 = vmatprep.subr.bf16.mxu0 0
      %4524 = vmatpush1.bf16.msra.mxu0 0
      %4525 = vmatprep.subr.bf16.mxu0 0
      %4526 = vmatpush1.bf16.msra.mxu0 0
      %4527 = vmatprep.subr.bf16.mxu0 0
      %4528 = vmatpush1.bf16.msra.mxu0 0
      %4529 = vmatprep.subr.bf16.mxu0 0
      %4530 = vmatpush1.bf16.msra.mxu0 0
      %4531 = vmatprep.subr.bf16.mxu0 0
      %4532 = vmatpush1.bf16.msra.mxu0 0
      %4533 = vmatprep.subr.bf16.mxu0 0
      %4534 = vmatpush1.bf16.msra.mxu0 0
      %4535 = vmatprep.subr.bf16.mxu0 0
      %4536 = vmatpush1.bf16.msra.mxu0 0
      %4537 = vmatprep.subr.bf16.mxu0 0
      %4538 = vmatpush1.bf16.msra.mxu0 0
      %4539 = vmatprep.subr.bf16.mxu0 0
      %4540 = vmatpush1.bf16.msra.mxu0 0
      %4541 = vmatprep.subr.bf16.mxu0 0
      %4542 = vmatpush1.bf16.msra.mxu0 0
      %4543 = vmatprep.mubr.bf16.mxu0 0
      %4544 = vmatmul.mubr.bf16.gmra.mrb[0].mxu0 %v4461
      %v4545 = vpop.f32.mrb[0].mxu0
      %v4546 = vadd.f32 0.0, %v4545
      %v4547 = vpop.f32.mrb[0].mxu0
      %v4548 = vpop.f32.mrb[0].mxu0
      %v4549 = vadd.f32 0.0, %v4548
      %v4550 = vpop.f32.mrb[0].mxu0
      %4551 = vmatprep.mubr.bf16.mxu0 0
      %4552 = vmatmul.mubr.bf16.gmra.mrb[0].mxu0 %v4464
      %v4553 = vpop.f32.mrb[0].mxu0
      %v4554 = vadd.f32 0.0, %v4553
      %v4555 = vpop.f32.mrb[0].mxu0
      %v4556 = vpop.f32.mrb[0].mxu0
      %v4557 = vadd.f32 0.0, %v4556
      %v4558 = vpop.f32.mrb[0].mxu0
      %4559 = vmatprep.mubr.bf16.mxu0 0
      %4560 = vmatmul.mubr.bf16.gmra.mrb[0].mxu0 %v4467
      %v4561 = vpop.f32.mrb[0].mxu0
      %v4562 = vadd.f32 0.0, %v4561
      %v4563 = vpop.f32.mrb[0].mxu0
      %v4564 = vpop.f32.mrb[0].mxu0
      %v4565 = vadd.f32 0.0, %v4564
      %v4566 = vpop.f32.mrb[0].mxu0
      %4567 = vmatprep.mubr.bf16.mxu0 0
      %4568 = vmatmul.mubr.bf16.gmra.mrb[0].mxu0 %v4470
      %v4569 = vpop.f32.mrb[0].mxu0
      %v4570 = vadd.f32 0.0, %v4569
      %v4571 = vpop.f32.mrb[0].mxu0
      %v4572 = vpop.f32.mrb[0].mxu0
      %v4573 = vadd.f32 0.0, %v4572
      %v4574 = vpop.f32.mrb[0].mxu0
      %4575 = vmatprep.mubr.bf16.mxu0 0
      %4576 = vmatmul.mubr.bf16.gmra.mrb[0].mxu0 %v4473
      %v4577 = vpop.f32.mrb[0].mxu0
      %v4578 = vadd.f32 0.0, %v4577
      %v4579 = vpop.f32.mrb[0].mxu0
      %v4580 = vpop.f32.mrb[0].mxu0
      %v4581 = vadd.f32 0.0, %v4580
      %v4582 = vpop.f32.mrb[0].mxu0
      %4583 = vmatprep.mubr.bf16.mxu0 0
      %4584 = vmatmul.mubr.bf16.gmra.mrb[0].mxu0 %v4476
      %v4585 = vpop.f32.mrb[0].mxu0
      %v4586 = vadd.f32 0.0, %v4585
      %v4587 = vpop.f32.mrb[0].mxu0
      %v4588 = vpop.f32.mrb[0].mxu0
      %v4589 = vadd.f32 0.0, %v4588
      %v4590 = vpop.f32.mrb[0].mxu0
      %4591 = vmatprep.mubr.bf16.mxu0 0
      %4592 = vmatmul.mubr.bf16.gmra.mrb[0].mxu0 %v4479
      %v4593 = vpop.f32.mrb[0].mxu0
      %v4594 = vadd.f32 0.0, %v4593
      %v4595 = vpop.f32.mrb[0].mxu0
      %v4596 = vpop.f32.mrb[0].mxu0
      %v4597 = vadd.f32 0.0, %v4596
      %v4598 = vpop.f32.mrb[0].mxu0
      %4599 = vmatprep.mubr.bf16.mxu0 0
      %4600 = vmatmul.mubr.bf16.gmra.mrb[0].mxu0 %v4482
      %v4601 = vpop.f32.mrb[0].mxu0
      %v4602 = vadd.f32 0.0, %v4601
      %v4603 = vpop.f32.mrb[0].mxu0
      %v4604 = vpop.f32.mrb[0].mxu0
      %v4605 = vadd.f32 0.0, %v4604
      %v4606 = vpop.f32.mrb[0].mxu0
      %4607 = vmatprep.mubr.bf16.mxu0 0
      %4608 = vmatmul.mubr.bf16.gmra.mrb[0].mxu0 %v4485
      %v4609 = vpop.f32.mrb[0].mxu0
      %v4610 = vadd.f32 0.0, %v4609
      %v4611 = vpop.f32.mrb[0].mxu0
      %v4612 = vpop.f32.mrb[0].mxu0
      %v4613 = vadd.f32 0.0, %v4612
      %v4614 = vpop.f32.mrb[0].mxu0
      %4615 = vmatprep.mubr.bf16.mxu0 0
      %4616 = vmatmul.mubr.bf16.gmra.mrb[0].mxu0 %v4488
      %v4617 = vpop.f32.mrb[0].mxu0
      %v4618 = vadd.f32 0.0, %v4617
      %v4619 = vpop.f32.mrb[0].mxu0
      %v4620 = vpop.f32.mrb[0].mxu0
      %v4621 = vadd.f32 0.0, %v4620
      %v4622 = vpop.f32.mrb[0].mxu0
      %4623 = vmatprep.mubr.bf16.mxu0 0
      %4624 = vmatmul.mubr.bf16.gmra.mrb[0].mxu0 %v4491
      %v4625 = vpop.f32.mrb[0].mxu0
      %v4626 = vadd.f32 0.0, %v4625
      %v4627 = vpop.f32.mrb[0].mxu0
      %v4628 = vpop.f32.mrb[0].mxu0
      %v4629 = vadd.f32 0.0, %v4628
      %v4630 = vpop.f32.mrb[0].mxu0
      %4631 = vmatprep.mubr.bf16.mxu0 0
      %4632 = vmatmul.mubr.bf16.gmra.mrb[0].mxu0 %v4494
      %v4633 = vpop.f32.mrb[0].mxu0
      %v4634 = vadd.f32 0.0, %v4633
      %v4635 = vpop.f32.mrb[0].mxu0
      %v4636 = vpop.f32.mrb[0].mxu0
      %v4637 = vadd.f32 0.0, %v4636
      %v4638 = vpop.f32.mrb[0].mxu0
      %4639 = vmatprep.mubr.bf16.mxu0 0
      %4640 = vmatmul.mubr.bf16.gmra.mrb[0].mxu0 %v4497
      %v4641 = vpop.f32.mrb[0].mxu0
      %v4642 = vadd.f32 0.0, %v4641
      %v4643 = vpop.f32.mrb[0].mxu0
      %v4644 = vpop.f32.mrb[0].mxu0
      %v4645 = vadd.f32 0.0, %v4644
      %v4646 = vpop.f32.mrb[0].mxu0
      %4647 = vmatprep.mubr.bf16.mxu0 0
      %4648 = vmatmul.mubr.bf16.gmra.mrb[0].mxu0 %v4500
      %v4649 = vpop.f32.mrb[0].mxu0
      %v4650 = vadd.f32 0.0, %v4649
      %v4651 = vpop.f32.mrb[0].mxu0
      %v4652 = vpop.f32.mrb[0].mxu0
      %v4653 = vadd.f32 0.0, %v4652
      %v4654 = vpop.f32.mrb[0].mxu0
      %4655 = vmatprep.mubr.bf16.mxu0 0
      %4656 = vmatmul.mubr.bf16.gmra.mrb[0].mxu0 %v4503
      %v4657 = vpop.f32.mrb[0].mxu0
      %v4658 = vadd.f32 0.0, %v4657
      %v4659 = vpop.f32.mrb[0].mxu0
      %v4660 = vpop.f32.mrb[0].mxu0
      %v4661 = vadd.f32 0.0, %v4660
      %v4662 = vpop.f32.mrb[0].mxu0
      %4663 = vmatprep.mubr.bf16.mxu0 0
      %4664 = vmatmul.mubr.bf16.gmra.mrb[0].mxu0 %v4506
      %v4665 = vpop.f32.mrb[0].mxu0
      %v4666 = vadd.f32 0.0, %v4665
      %v4667 = vpop.f32.mrb[0].mxu0
      %v4668 = vpop.f32.mrb[0].mxu0
      %v4669 = vadd.f32 0.0, %v4668
      %v4670 = vpop.f32.mrb[0].mxu0
      %4671 = vdwg.mxu0
      %v4672 = vadd.f32 %v4202, %v4546
      %v4673 = vadd.f32 %v4203, %v4549
      %v4674 = vadd.f32 %v4204, %v4554
      %v4675 = vadd.f32 %v4205, %v4557
      %v4676 = vadd.f32 %v4206, %v4562
      %v4677 = vadd.f32 %v4207, %v4565
      %v4678 = vadd.f32 %v4208, %v4570
      %v4679 = vadd.f32 %v4209, %v4573
      %v4680 = vadd.f32 %v4210, %v4578
      %v4681 = vadd.f32 %v4211, %v4581
      %v4682 = vadd.f32 %v4212, %v4586
      %v4683 = vadd.f32 %v4213, %v4589
      %v4684 = vadd.f32 %v4214, %v4594
      %v4685 = vadd.f32 %v4215, %v4597
      %v4686 = vadd.f32 %v4216, %v4602
      %v4687 = vadd.f32 %v4217, %v4605
      %v4688 = vadd.f32 %v4218, %v4610
      %v4689 = vadd.f32 %v4219, %v4613
      %v4690 = vadd.f32 %v4220, %v4618
      %v4691 = vadd.f32 %v4221, %v4621
      %v4692 = vadd.f32 %v4222, %v4626
      %v4693 = vadd.f32 %v4223, %v4629
      %v4694 = vadd.f32 %v4224, %v4634
      %v4695 = vadd.f32 %v4225, %v4637
      %v4696 = vadd.f32 %v4226, %v4642
      %v4697 = vadd.f32 %v4227, %v4645
      %v4698 = vadd.f32 %v4228, %v4650
      %v4699 = vadd.f32 %v4229, %v4653
      %v4700 = vadd.f32 %v4230, %v4658
      %v4701 = vadd.f32 %v4231, %v4661
      %v4702 = vadd.f32 %v4232, %v4666
      %v4703 = vadd.f32 %v4233, %v4669
      %vm4704 = vcmask 64512
      %v4705 = vsel %vm4704, %v4672, 0.0
      %v4706 = vsel %vm4704, %v4673, 0.0
      %v4707 = vadd.f32 %v4705, %v4706
      %v4708 = vsel %vm4704, %v4674, 0.0
      %v4709 = vadd.f32 %v4707, %v4708
      %v4710 = vsel %vm4704, %v4675, 0.0
      %v4711 = vadd.f32 %v4709, %v4710
      %v4712 = vsel %vm4704, %v4676, 0.0
      %v4713 = vadd.f32 %v4711, %v4712
      %v4714 = vsel %vm4704, %v4677, 0.0
      %v4715 = vadd.f32 %v4713, %v4714
      %v4716 = vsel %vm4704, %v4678, 0.0
      %v4717 = vadd.f32 %v4715, %v4716
      %v4718 = vsel %vm4704, %v4679, 0.0
      %v4719 = vadd.f32 %v4717, %v4718
      %v4720 = vsel %vm4704, %v4680, 0.0
      %v4721 = vadd.f32 %v4719, %v4720
      %v4722 = vsel %vm4704, %v4681, 0.0
      %v4723 = vadd.f32 %v4721, %v4722
      %v4724 = vsel %vm4704, %v4682, 0.0
      %v4725 = vadd.f32 %v4723, %v4724
      %v4726 = vsel %vm4704, %v4683, 0.0
      %v4727 = vadd.f32 %v4725, %v4726
      %v4728 = vsel %vm4704, %v4684, 0.0
      %v4729 = vadd.f32 %v4727, %v4728
      %v4730 = vsel %vm4704, %v4685, 0.0
      %v4731 = vadd.f32 %v4729, %v4730
      %v4732 = vsel %vm4704, %v4686, 0.0
      %v4733 = vadd.f32 %v4731, %v4732
      %v4734 = vsel %vm4704, %v4687, 0.0
      %v4735 = vadd.f32 %v4733, %v4734
      %v4736 = vsel %vm4704, %v4688, 0.0
      %v4737 = vadd.f32 %v4735, %v4736
      %v4738 = vsel %vm4704, %v4689, 0.0
      %v4739 = vadd.f32 %v4737, %v4738
      %v4740 = vsel %vm4704, %v4690, 0.0
      %v4741 = vadd.f32 %v4739, %v4740
      %v4742 = vsel %vm4704, %v4691, 0.0
      %v4743 = vadd.f32 %v4741, %v4742
      %v4744 = vsel %vm4704, %v4692, 0.0
      %v4745 = vadd.f32 %v4743, %v4744
      %v4746 = vsel %vm4704, %v4693, 0.0
      %v4747 = vadd.f32 %v4745, %v4746
      %v4748 = vsel %vm4704, %v4694, 0.0
      %v4749 = vadd.f32 %v4747, %v4748
      %v4750 = vsel %vm4704, %v4695, 0.0
      %v4751 = vadd.f32 %v4749, %v4750
      %v4752 = vsel %vm4704, %v4696, 0.0
      %v4753 = vadd.f32 %v4751, %v4752
      %v4754 = vsel %vm4704, %v4697, 0.0
      %v4755 = vadd.f32 %v4753, %v4754
      %v4756 = vsel %vm4704, %v4698, 0.0
      %v4757 = vadd.f32 %v4755, %v4756
      %v4758 = vsel %vm4704, %v4699, 0.0
      %v4759 = vadd.f32 %v4757, %v4758
      %v4760 = vsel %vm4704, %v4700, 0.0
      %v4761 = vadd.f32 %v4759, %v4760
      %v4762 = vsel %vm4704, %v4701, 0.0
      %v4763 = vadd.f32 %v4761, %v4762
      %v4764 = vsel %vm4704, %v4702, 0.0
      %v4765 = vadd.f32 %v4763, %v4764
      %v4766 = vsel %vm4704, %v4703, 0.0
      %v4767 = vadd.f32 %v4765, %v4766
      %v4768 = vrot.slane %v4767, 4
      %v4769 = vadd.f32 %v4767, %v4768
      %v4770 = vrot.slane %v4769, 2
      %v4771 = vadd.f32 %v4769, %v4770
      %v4772 = vrot.slane %v4771, 1
      %v4773 = vadd.f32 %v4771, %v4772
      %v4774 = vrcp.pop 256.0
      %v4775 = vmul.f32 %v4773, %v4774
      %v4776 = vmul.f32 %v4672, %v4672
      %v4777 = vmul.f32 %v4673, %v4673
      %v4778 = vmul.f32 %v4674, %v4674
      %v4779 = vmul.f32 %v4675, %v4675
      %v4780 = vmul.f32 %v4676, %v4676
      %v4781 = vmul.f32 %v4677, %v4677
      %v4782 = vmul.f32 %v4678, %v4678
      %v4783 = vmul.f32 %v4679, %v4679
      %v4784 = vmul.f32 %v4680, %v4680
      %v4785 = vmul.f32 %v4681, %v4681
      %v4786 = vmul.f32 %v4682, %v4682
      %v4787 = vmul.f32 %v4683, %v4683
      %v4788 = vmul.f32 %v4684, %v4684
      %v4789 = vmul.f32 %v4685, %v4685
      %v4790 = vmul.f32 %v4686, %v4686
      %v4791 = vmul.f32 %v4687, %v4687
      %v4792 = vmul.f32 %v4688, %v4688
      %v4793 = vmul.f32 %v4689, %v4689
      %v4794 = vmul.f32 %v4690, %v4690
      %v4795 = vmul.f32 %v4691, %v4691
      %v4796 = vmul.f32 %v4692, %v4692
      %v4797 = vmul.f32 %v4693, %v4693
      %v4798 = vmul.f32 %v4694, %v4694
      %v4799 = vmul.f32 %v4695, %v4695
      %v4800 = vmul.f32 %v4696, %v4696
      %v4801 = vmul.f32 %v4697, %v4697
      %v4802 = vmul.f32 %v4698, %v4698
      %v4803 = vmul.f32 %v4699, %v4699
      %v4804 = vmul.f32 %v4700, %v4700
      %v4805 = vmul.f32 %v4701, %v4701
      %v4806 = vmul.f32 %v4702, %v4702
      %v4807 = vmul.f32 %v4703, %v4703
      %v4808 = vsel %vm4704, %v4776, 0.0
      %v4809 = vsel %vm4704, %v4777, 0.0
      %v4810 = vadd.f32 %v4808, %v4809
      %v4811 = vsel %vm4704, %v4778, 0.0
      %v4812 = vadd.f32 %v4810, %v4811
      %v4813 = vsel %vm4704, %v4779, 0.0
      %v4814 = vadd.f32 %v4812, %v4813
      %v4815 = vsel %vm4704, %v4780, 0.0
      %v4816 = vadd.f32 %v4814, %v4815
      %v4817 = vsel %vm4704, %v4781, 0.0
      %v4818 = vadd.f32 %v4816, %v4817
      %v4819 = vsel %vm4704, %v4782, 0.0
      %v4820 = vadd.f32 %v4818, %v4819
      %v4821 = vsel %vm4704, %v4783, 0.0
      %v4822 = vadd.f32 %v4820, %v4821
      %v4823 = vsel %vm4704, %v4784, 0.0
      %v4824 = vadd.f32 %v4822, %v4823
      %v4825 = vsel %vm4704, %v4785, 0.0
      %v4826 = vadd.f32 %v4824, %v4825
      %v4827 = vsel %vm4704, %v4786, 0.0
      %v4828 = vadd.f32 %v4826, %v4827
      %v4829 = vsel %vm4704, %v4787, 0.0
      %v4830 = vadd.f32 %v4828, %v4829
      %v4831 = vsel %vm4704, %v4788, 0.0
      %v4832 = vadd.f32 %v4830, %v4831
      %v4833 = vsel %vm4704, %v4789, 0.0
      %v4834 = vadd.f32 %v4832, %v4833
      %v4835 = vsel %vm4704, %v4790, 0.0
      %v4836 = vadd.f32 %v4834, %v4835
      %v4837 = vsel %vm4704, %v4791, 0.0
      %v4838 = vadd.f32 %v4836, %v4837
      %v4839 = vsel %vm4704, %v4792, 0.0
      %v4840 = vadd.f32 %v4838, %v4839
      %v4841 = vsel %vm4704, %v4793, 0.0
      %v4842 = vadd.f32 %v4840, %v4841
      %v4843 = vsel %vm4704, %v4794, 0.0
      %v4844 = vadd.f32 %v4842, %v4843
      %v4845 = vsel %vm4704, %v4795, 0.0
      %v4846 = vadd.f32 %v4844, %v4845
      %v4847 = vsel %vm4704, %v4796, 0.0
      %v4848 = vadd.f32 %v4846, %v4847
      %v4849 = vsel %vm4704, %v4797, 0.0
      %v4850 = vadd.f32 %v4848, %v4849
      %v4851 = vsel %vm4704, %v4798, 0.0
      %v4852 = vadd.f32 %v4850, %v4851
      %v4853 = vsel %vm4704, %v4799, 0.0
      %v4854 = vadd.f32 %v4852, %v4853
      %v4855 = vsel %vm4704, %v4800, 0.0
      %v4856 = vadd.f32 %v4854, %v4855
      %v4857 = vsel %vm4704, %v4801, 0.0
      %v4858 = vadd.f32 %v4856, %v4857
      %v4859 = vsel %vm4704, %v4802, 0.0
      %v4860 = vadd.f32 %v4858, %v4859
      %v4861 = vsel %vm4704, %v4803, 0.0
      %v4862 = vadd.f32 %v4860, %v4861
      %v4863 = vsel %vm4704, %v4804, 0.0
      %v4864 = vadd.f32 %v4862, %v4863
      %v4865 = vsel %vm4704, %v4805, 0.0
      %v4866 = vadd.f32 %v4864, %v4865
      %v4867 = vsel %vm4704, %v4806, 0.0
      %v4868 = vadd.f32 %v4866, %v4867
      %v4869 = vsel %vm4704, %v4807, 0.0
      %v4870 = vadd.f32 %v4868, %v4869
      %v4871 = vrot.slane %v4870, 4
      %v4872 = vadd.f32 %v4870, %v4871
      %v4873 = vrot.slane %v4872, 2
      %v4874 = vadd.f32 %v4872, %v4873
      %v4875 = vrot.slane %v4874, 1
      %v4876 = vadd.f32 %v4874, %v4875
      %v4877 = vmul.f32 %v4876, %v4774
      %v4878 = vmul.f32 %v4775, %v4775
      %v4879 = vsub.f32 %v4877, %v4878
      %v4880 = vmax.f32 %v4879, 0.0
      %v4881 = vsub.f32 %v4672, %v4775
      %v4882 = vsub.f32 %v4673, %v4775
      %v4883 = vsub.f32 %v4674, %v4775
      %v4884 = vsub.f32 %v4675, %v4775
      %v4885 = vsub.f32 %v4676, %v4775
      %v4886 = vsub.f32 %v4677, %v4775
      %v4887 = vsub.f32 %v4678, %v4775
      %v4888 = vsub.f32 %v4679, %v4775
      %v4889 = vsub.f32 %v4680, %v4775
      %v4890 = vsub.f32 %v4681, %v4775
      %v4891 = vsub.f32 %v4682, %v4775
      %v4892 = vsub.f32 %v4683, %v4775
      %v4893 = vsub.f32 %v4684, %v4775
      %v4894 = vsub.f32 %v4685, %v4775
      %v4895 = vsub.f32 %v4686, %v4775
      %v4896 = vsub.f32 %v4687, %v4775
      %v4897 = vsub.f32 %v4688, %v4775
      %v4898 = vsub.f32 %v4689, %v4775
      %v4899 = vsub.f32 %v4690, %v4775
      %v4900 = vsub.f32 %v4691, %v4775
      %v4901 = vsub.f32 %v4692, %v4775
      %v4902 = vsub.f32 %v4693, %v4775
      %v4903 = vsub.f32 %v4694, %v4775
      %v4904 = vsub.f32 %v4695, %v4775
      %v4905 = vsub.f32 %v4696, %v4775
      %v4906 = vsub.f32 %v4697, %v4775
      %v4907 = vsub.f32 %v4698, %v4775
      %v4908 = vsub.f32 %v4699, %v4775
      %v4909 = vsub.f32 %v4700, %v4775
      %v4910 = vsub.f32 %v4701, %v4775
      %v4911 = vsub.f32 %v4702, %v4775
      %v4912 = vsub.f32 %v4703, %v4775
      %v4913 = vadd.f32 %v4880, 1e-05
      %v4914 = vrsqrt.pop %v4913
      %v4915 = vmul.f32 %v4881, %v4914
      %v4916 = vmul.f32 %v4882, %v4914
      %v4917 = vmul.f32 %v4883, %v4914
      %v4918 = vmul.f32 %v4884, %v4914
      %v4919 = vmul.f32 %v4885, %v4914
      %v4920 = vmul.f32 %v4886, %v4914
      %v4921 = vmul.f32 %v4887, %v4914
      %v4922 = vmul.f32 %v4888, %v4914
      %v4923 = vmul.f32 %v4889, %v4914
      %v4924 = vmul.f32 %v4890, %v4914
      %v4925 = vmul.f32 %v4891, %v4914
      %v4926 = vmul.f32 %v4892, %v4914
      %v4927 = vmul.f32 %v4893, %v4914
      %v4928 = vmul.f32 %v4894, %v4914
      %v4929 = vmul.f32 %v4895, %v4914
      %v4930 = vmul.f32 %v4896, %v4914
      %v4931 = vmul.f32 %v4897, %v4914
      %v4932 = vmul.f32 %v4898, %v4914
      %v4933 = vmul.f32 %v4899, %v4914
      %v4934 = vmul.f32 %v4900, %v4914
      %v4935 = vmul.f32 %v4901, %v4914
      %v4936 = vmul.f32 %v4902, %v4914
      %v4937 = vmul.f32 %v4903, %v4914
      %v4938 = vmul.f32 %v4904, %v4914
      %v4939 = vmul.f32 %v4905, %v4914
      %v4940 = vmul.f32 %v4906, %v4914
      %v4941 = vmul.f32 %v4907, %v4914
      %v4942 = vmul.f32 %v4908, %v4914
      %v4943 = vmul.f32 %v4909, %v4914
      %v4944 = vmul.f32 %v4910, %v4914
      %v4945 = vmul.f32 %v4911, %v4914
      %v4946 = vmul.f32 %v4912, %v4914
      %v4947 = vmax.f32 %v4915, 0.0
      %v4948 = vmax.f32 %v4916, 0.0
      %v4949 = vmax.f32 %v4917, 0.0
      %v4950 = vmax.f32 %v4918, 0.0
      %v4951 = vmax.f32 %v4919, 0.0
      %v4952 = vmax.f32 %v4920, 0.0
      %v4953 = vmax.f32 %v4921, 0.0
      %v4954 = vmax.f32 %v4922, 0.0
      %v4955 = vmax.f32 %v4923, 0.0
      %v4956 = vmax.f32 %v4924, 0.0
      %v4957 = vmax.f32 %v4925, 0.0
      %v4958 = vmax.f32 %v4926, 0.0
      %v4959 = vmax.f32 %v4927, 0.0
      %v4960 = vmax.f32 %v4928, 0.0
      %v4961 = vmax.f32 %v4929, 0.0
      %v4962 = vmax.f32 %v4930, 0.0
      %v4963 = vmax.f32 %v4931, 0.0
      %v4964 = vmax.f32 %v4932, 0.0
      %v4965 = vmax.f32 %v4933, 0.0
      %v4966 = vmax.f32 %v4934, 0.0
      %v4967 = vmax.f32 %v4935, 0.0
      %v4968 = vmax.f32 %v4936, 0.0
      %v4969 = vmax.f32 %v4937, 0.0
      %v4970 = vmax.f32 %v4938, 0.0
      %v4971 = vmax.f32 %v4939, 0.0
      %v4972 = vmax.f32 %v4940, 0.0
      %v4973 = vmax.f32 %v4941, 0.0
      %v4974 = vmax.f32 %v4942, 0.0
      %v4975 = vmax.f32 %v4943, 0.0
      %v4976 = vmax.f32 %v4944, 0.0
      %v4977 = vmax.f32 %v4945, 0.0
      %v4978 = vmax.f32 %v4946, 0.0
      %4979 = vst.msk [vmem:[%s143] sm:$0xff] %vm4704, %v4947
      %4980 = vst.msk [vmem:[%s143 + $0x8] sm:$0xff] %vm4704, %v4948
      %4981 = vst.msk [vmem:[%s143 + $0x10] sm:$0xff] %vm4704, %v4949
      %4982 = vst.msk [vmem:[%s143 + $0x18] sm:$0xff] %vm4704, %v4950
      %4983 = vst.msk [vmem:[%s143 + $0x20] sm:$0xff] %vm4704, %v4951
      %4984 = vst.msk [vmem:[%s143 + $0x28] sm:$0xff] %vm4704, %v4952
      %4985 = vst.msk [vmem:[%s143 + $0x30] sm:$0xff] %vm4704, %v4953
      %4986 = vst.msk [vmem:[%s143 + $0x38] sm:$0xff] %vm4704, %v4954
      %4987 = vst.msk [vmem:[%s143 + $0x40] sm:$0xff] %vm4704, %v4955
      %4988 = vst.msk [vmem:[%s143 + $0x48] sm:$0xff] %vm4704, %v4956
      %4989 = vst.msk [vmem:[%s143 + $0x50] sm:$0xff] %vm4704, %v4957
      %4990 = vst.msk [vmem:[%s143 + $0x58] sm:$0xff] %vm4704, %v4958
      %4991 = vst.msk [vmem:[%s143 + $0x60] sm:$0xff] %vm4704, %v4959
      %4992 = vst.msk [vmem:[%s143 + $0x68] sm:$0xff] %vm4704, %v4960
      %4993 = vst.msk [vmem:[%s143 + $0x70] sm:$0xff] %vm4704, %v4961
      %4994 = vst.msk [vmem:[%s143 + $0x78] sm:$0xff] %vm4704, %v4962
      %4995 = vst.msk [vmem:[%s143 + $0x80] sm:$0xff] %vm4704, %v4963
      %4996 = vst.msk [vmem:[%s143 + $0x88] sm:$0xff] %vm4704, %v4964
      %4997 = vst.msk [vmem:[%s143 + $0x90] sm:$0xff] %vm4704, %v4965
      %4998 = vst.msk [vmem:[%s143 + $0x98] sm:$0xff] %vm4704, %v4966
      %4999 = vst.msk [vmem:[%s143 + $0xa0] sm:$0xff] %vm4704, %v4967
      %5000 = vst.msk [vmem:[%s143 + $0xa8] sm:$0xff] %vm4704, %v4968
      %5001 = vst.msk [vmem:[%s143 + $0xb0] sm:$0xff] %vm4704, %v4969
      %5002 = vst.msk [vmem:[%s143 + $0xb8] sm:$0xff] %vm4704, %v4970
      %5003 = vst.msk [vmem:[%s143 + $0xc0] sm:$0xff] %vm4704, %v4971
      %5004 = vst.msk [vmem:[%s143 + $0xc8] sm:$0xff] %vm4704, %v4972
      %5005 = vst.msk [vmem:[%s143 + $0xd0] sm:$0xff] %vm4704, %v4973
      %5006 = vst.msk [vmem:[%s143 + $0xd8] sm:$0xff] %vm4704, %v4974
      %5007 = vst.msk [vmem:[%s143 + $0xe0] sm:$0xff] %vm4704, %v4975
      %5008 = vst.msk [vmem:[%s143 + $0xe8] sm:$0xff] %vm4704, %v4976
      %5009 = vst.msk [vmem:[%s143 + $0xf0] sm:$0xff] %vm4704, %v4977
      %5010 = vst.msk [vmem:[%s143 + $0xf8] sm:$0xff] %vm4704, %v4978
      %p5011 = scmp.lt.s32.totalorder %s13, 1
      %s5012 = scalar_select %p5011, %s13, 1
      %s5013 = smul.addr %s5012, 32
      %s5014 = smul.addr %s5013, 8
      %s5015 = scalar_lea.vmem %s2, %s5014
      // Predicated region
      $region29: #{conv_block_forward.1} parent=27 // pred_check
        %p5016 = pneg %p78
      $region30: #{conv_block_forward.1} parent=27 // pred_check_branch
        %5018 = sbr.rel (%p5016) target = $region32
      $region31: #{conv_block_forward.1} parent=27 // pred_region
        _
      $region32: #{conv_block_forward.1} parent=27 // pred_fallthru
        _
    $region28: #{conv_block_forward.1} parent=5 // pred_fallthru
      _
    %p5019 = scmp.le.s32.totalorder 2, %s8
    // Predicated region
    $region33: #{conv_block_forward.1} parent=5 // pred_check
      %p5020 = pneg %p5019
    $region34: #{conv_block_forward.1} parent=5 // pred_check_branch
      %5022 = sbr.rel (%p5020) target = $region36
    $region35: #{conv_block_forward.1} parent=5 // pred_region
      %s5023 = ssub.s32 %s8, 2
      // Predicated region
      $region37: #{conv_block_forward.1} parent=35 // pred_check
        %p5024 = pneg %p84
      $region38: #{conv_block_forward.1} parent=35 // pred_check_branch
        %5026 = sbr.rel (%p5024) target = $region40
      $region39: #{conv_block_forward.1} parent=35 // pred_region
        %p5027 = scmp.lt.s32.totalorder %s14, 1
        %s5028 = scalar_select %p5027, %s14, 1
        %s5029 = smul.addr %s5028, 32
        %s5030 = smul.addr %s5029, 8
        %s5031 = scalar_lea.vmem %s2, %s5030
      $region40: #{conv_block_forward.1} parent=35 // pred_fallthru
        _
    $region36: #{conv_block_forward.1} parent=5 // pred_fallthru
      _
  $region6: #{conv_block_forward.1} parent=0 // loop_footer
    %s12 = sadd.s32 1, %s8
  $region7: #{conv_block_forward.1} parent=0 // loop_footer_branch
    %7 = sbr.rel target = $region3
  $region8: #{conv_block_forward.1} parent=0 // loop_exit
    _

</llo_original>
